<compile_context>
chip_gen: v7x
topology: tpu7x:2x2x1
jax: 0.10.0
libtpu: 0.0.40
codegen_flags: <defaults>
</compile_context>

<pallas_src>
import functools

import numpy as np
import jax
import jax.numpy as jnp
from jax.experimental import pallas as pl
from jax.experimental.pallas import tpu as pltpu


def _round_up(x, m):
    return ((x + m - 1) // m) * m


# ----------------------------------------------------------------------------
# In-kernel activation helper (exact math; safe on Mosaic + interpreter)
# ----------------------------------------------------------------------------

def _act(y, act):
    if act == "silu":
        return y * (1.0 / (1.0 + jnp.exp(-y)))
    if act == "sigmoid":
        return 1.0 / (1.0 + jnp.exp(-y))
    if act == "relu":
        return jnp.maximum(y, 0.0)
    if act == "relu6":
        return jnp.clip(y, 0.0, 6.0)
    return y


# ----------------------------------------------------------------------------
# Fused matmul kernel: out = act((A*[gate]) @ W * scale + bias) [+ residual]
# Grid: (image-group, M-blocks, N-blocks, K-blocks), reduction axis last.
# ----------------------------------------------------------------------------

def _mm_kernel(*refs, act, has_gate, has_res):
    a_ref, b_ref, s_ref, c_ref = refs[:4]
    p = 4
    g_ref = r_ref = None
    if has_gate:
        g_ref = refs[p]; p += 1
    if has_res:
        r_ref = refs[p]; p += 1
    o_ref, acc_ref = refs[p], refs[p + 1]

    @pl.when(pl.program_id(3) == 0)
    def _():
        acc_ref[...] = jnp.zeros_like(acc_ref)

    a = a_ref[...]
    if has_gate:
        a = a * g_ref[0]                       # (1, tk) broadcast over rows, bf16
    acc_ref[...] += jnp.dot(a, b_ref[...], preferred_element_type=jnp.float32)

    @pl.when(pl.program_id(3) == pl.num_programs(3) - 1)
    def _():
        y = _act(acc_ref[...] * s_ref[...] + c_ref[...], act)
        if has_res:
            y = y + r_ref[...].astype(jnp.float32)
        o_ref[...] = y.astype(o_ref.dtype)


@functools.lru_cache(maxsize=None)
def _build_mm(G, mb, nb, kb, tm, tk, tn, act, has_gate, has_res, out_dtype):
    in_specs = [
        pl.BlockSpec((tm, tk), lambda g, i, j, k: (g * mb + i, k)),
        pl.BlockSpec((tk, tn), lambda g, i, j, k: (k, j)),
        pl.BlockSpec((1, tn), lambda g, i, j, k: (0, j)),
        pl.BlockSpec((1, tn), lambda g, i, j, k: (0, j)),
    ]
    if has_gate:
        in_specs.append(pl.BlockSpec((1, 1, tk), lambda g, i, j, k: (g, 0, k)))
    if has_res:
        in_specs.append(pl.BlockSpec((tm, tn), lambda g, i, j, k: (g * mb + i, j)))
    f = pl.pallas_call(
        functools.partial(_mm_kernel, act=act, has_gate=has_gate, has_res=has_res),
        out_shape=jax.ShapeDtypeStruct((G * mb * tm, nb * tn), out_dtype),
        grid_spec=pltpu.PrefetchScalarGridSpec(
            num_scalar_prefetch=0,
            grid=(G, mb, nb, kb),
            in_specs=in_specs,
            out_specs=pl.BlockSpec((tm, tn), lambda g, i, j, k: (g * mb + i, j)),
            scratch_shapes=[pltpu.VMEM((tm, tn), jnp.float32)]),
        compiler_params=pltpu.CompilerParams(
            dimension_semantics=("parallel", "parallel", "parallel", "arbitrary")),
    )
    return jax.jit(f)


_TM_CANDIDATES = (1024, 512, 256, 128, 64, 32, 16, 8)


def matmul_fused(a, layer, act, residual=None, gate=None, rows_per_group=None,
                 out_dtype=jnp.bfloat16):
    """a: (M, K).  layer holds pre-padded bf16 weight (Kp, Np) and f32
    scale/bias (1, Np).  Optional SE gate (n_img, K) multiplies A per image."""
    M, K = a.shape
    Kp, Np, tk, tn = layer["Kp"], layer["Np"], layer["tk"], layer["tn"]
    cap = 1024 if Kp <= 512 else 512
    a = a.astype(jnp.bfloat16)

    if gate is not None:
        G = gate.shape[0]
        assert rows_per_group is not None and G * rows_per_group == M
        assert Kp == K and tk == Kp, "gated matmul requires a single K block"
        tm = next(t for t in _TM_CANDIDATES
                  if t <= min(cap, rows_per_group) and rows_per_group % t == 0)
        Mp = M
    else:
        G = 1
        tm = next(t for t in _TM_CANDIDATES if t <= min(cap, max(M, 8)))
        Mp = _round_up(M, tm)

    if Mp != M or Kp != K:
        a = jnp.pad(a, ((0, Mp - M), (0, Kp - K)))

    args = [a, layer["wp"], layer["scale"], layer["bias"]]
    if gate is not None:
        args.append(gate.reshape(G, 1, Kp).astype(jnp.bfloat16))
    if residual is not None:
        r = residual.astype(jnp.bfloat16)
        if Mp != r.shape[0] or Np != r.shape[1]:
            r = jnp.pad(r, ((0, Mp - r.shape[0]), (0, Np - r.shape[1])))
        args.append(r)

    mb = Mp // tm // G
    out = _build_mm(G, mb, Np // tn, Kp // tk, tm, tk, tn, act,
                    gate is not None, residual is not None, out_dtype)(*args)
    if Mp != M or Np != layer["cout"]:
        out = out[:M, :layer["cout"]]
    return out


# ----------------------------------------------------------------------------
# Depthwise conv kernels: BN + act + per-image SE average pool fused.
# Stride 1: contiguous pl.ds loads on the padded image.
# Stride 2: 2x2 phase (space-to-depth) decomposition done in the wrapper so the
#           kernel only ever does contiguous loads (no strided ref indexing).
# ----------------------------------------------------------------------------

def _dw_s1_kernel(x_ref, w_ref, s_ref, b_ref, o_ref, p_ref, *, k, act, inv_hw):
    ho, wo = o_ref.shape[1], o_ref.shape[2]
    acc = None
    for ki in range(k):
        for kj in range(k):
            v = x_ref[0, pl.ds(ki, ho), pl.ds(kj, wo), :]        # bf16
            t = v * w_ref[ki, kj, :]                              # -> f32
            acc = t if acc is None else acc + t
    y = _act(acc * s_ref[0, :] + b_ref[0, :], act)
    o_ref[...] = y.astype(o_ref.dtype)[None]
    p_ref[...] = (jnp.sum(jnp.sum(y, axis=0), axis=0) * inv_hw)[None, None, :]


def _dw_s2_kernel(x_ref, w_ref, s_ref, b_ref, o_ref, p_ref, *, k, act, inv_hw):
    ho, wo = o_ref.shape[1], o_ref.shape[2]
    acc = None
    for ki in range(k):
        for kj in range(k):
            ph = (ki % 2) * 2 + (kj % 2)
            v = x_ref[ph, 0, pl.ds(ki // 2, ho), pl.ds(kj // 2, wo), :]
            t = v * w_ref[ki, kj, :]
            acc = t if acc is None else acc + t
    y = _act(acc * s_ref[0, :] + b_ref[0, :], act)
    o_ref[...] = y.astype(o_ref.dtype)[None]
    p_ref[...] = (jnp.sum(jnp.sum(y, axis=0), axis=0) * inv_hw)[None, None, :]


@functools.lru_cache(maxsize=None)
def _build_dw_s1(n, hp, wp, c, ho, wo, k, act):
    f = pl.pallas_call(
        functools.partial(_dw_s1_kernel, k=k, act=act, inv_hw=1.0 / float(ho * wo)),
        out_shape=(jax.ShapeDtypeStruct((n, ho, wo, c), jnp.bfloat16),
                   jax.ShapeDtypeStruct((n, 1, c), jnp.float32)),
        grid=(n,),
        in_specs=[pl.BlockSpec((1, hp, wp, c), lambda i: (i, 0, 0, 0)),
                  pl.BlockSpec((k, k, c), lambda i: (0, 0, 0)),
                  pl.BlockSpec((1, c), lambda i: (0, 0)),
                  pl.BlockSpec((1, c), lambda i: (0, 0))],
        out_specs=(pl.BlockSpec((1, ho, wo, c), lambda i: (i, 0, 0, 0)),
                   pl.BlockSpec((1, 1, c), lambda i: (i, 0, 0))),
        compiler_params=pltpu.CompilerParams(dimension_semantics=("parallel",)),
    )
    return jax.jit(f)


@functools.lru_cache(maxsize=None)
def _build_dw_s2(n, hh, wh, c, ho, wo, k, act):
    f = pl.pallas_call(
        functools.partial(_dw_s2_kernel, k=k, act=act, inv_hw=1.0 / float(ho * wo)),
        out_shape=(jax.ShapeDtypeStruct((n, ho, wo, c), jnp.bfloat16),
                   jax.ShapeDtypeStruct((n, 1, c), jnp.float32)),
        grid=(n,),
        in_specs=[pl.BlockSpec((4, 1, hh, wh, c), lambda i: (0, i, 0, 0, 0)),
                  pl.BlockSpec((k, k, c), lambda i: (0, 0, 0)),
                  pl.BlockSpec((1, c), lambda i: (0, 0)),
                  pl.BlockSpec((1, c), lambda i: (0, 0))],
        out_specs=(pl.BlockSpec((1, ho, wo, c), lambda i: (i, 0, 0, 0)),
                   pl.BlockSpec((1, 1, c), lambda i: (i, 0, 0))),
        compiler_params=pltpu.CompilerParams(dimension_semantics=("parallel",)),
    )
    return jax.jit(f)


def dw_bn_act(x, layer, stride, act):
    """x: (N, H, W, C) bf16 -> (depthwise+BN+act output bf16, per-image mean f32)."""
    n, h, w, c = x.shape
    k = layer["k"]
    pad = (k - 1) // 2
    xp = jnp.pad(x.astype(jnp.bfloat16), ((0, 0), (pad, pad), (pad, pad), (0, 0)))
    hp, wp = h + 2 * pad, w + 2 * pad
    if stride == 1:
        ho, wo = hp - k + 1, wp - k + 1
        y, pooled = _build_dw_s1(n, hp, wp, c, ho, wo, k, act)(
            xp, layer["w"], layer["scale"], layer["bias"])
    else:
        ho = (hp - k) // 2 + 1
        wo = (wp - k) // 2 + 1
        eh, ew = hp % 2, wp % 2
        if eh or ew:   # make even so the 4 phases share a shape (extra rows unused)
            xp = jnp.pad(xp, ((0, 0), (0, eh), (0, ew), (0, 0)))
            hp, wp = hp + eh, wp + ew
        hh, wh = hp // 2, wp // 2
        phases = jnp.stack([xp[:, a::2, b::2, :] for a in (0, 1) for b in (0, 1)],
                           axis=0)                      # (4, n, hh, wh, c)
        y, pooled = _build_dw_s2(n, hh, wh, c, ho, wo, k, act)(
            phases, layer["w"], layer["scale"], layer["bias"])
    return y, pooled[:, 0, :]


# ----------------------------------------------------------------------------
# Squeeze-Excite MLP kernel (FC1 + SiLU + FC2 + sigmoid) in one call
# ----------------------------------------------------------------------------

def _se_kernel(p_ref, w1_ref, b1_ref, w2_ref, b2_ref, g_ref):
    z = jnp.dot(p_ref[...], w1_ref[...],
                preferred_element_type=jnp.float32) + b1_ref[...]
    z = _act(z, "silu")
    g = jnp.dot(z, w2_ref[...],
                preferred_element_type=jnp.float32) + b2_ref[...]
    g_ref[...] = _act(g, "sigmoid")


@functools.lru_cache(maxsize=None)
def _build_se(rows, cexp):
    f = pl.pallas_call(
        _se_kernel,
        out_shape=jax.ShapeDtypeStruct((rows, cexp), jnp.float32))
    return jax.jit(f)


# ----------------------------------------------------------------------------
# Conv layers built on the fused matmul (im2col / reshapes are plain-JAX glue)
# ----------------------------------------------------------------------------

def _im2col(x, k, stride, pad):
    n, h, w, c = x.shape
    if pad:
        x = jnp.pad(x, ((0, 0), (pad, pad), (pad, pad), (0, 0)))
    ho = (h + 2 * pad - k) // stride + 1
    wo = (w + 2 * pad - k) // stride + 1
    cols = []
    for ki in range(k):
        for kj in range(k):
            patch = x[:, ki:ki + (ho - 1) * stride + 1:stride,
                         kj:kj + (wo - 1) * stride + 1:stride, :]
            cols.append(patch.reshape(n * ho * wo, c))
    return jnp.concatenate(cols, axis=1), ho, wo


def conv_bn_act(x, layer, act, stride=1, pad=0, residual=None, gate=None):
    """Conv + folded-BN + act (+ residual, + per-image SE gate fused on A)."""
    n, h, w, cin = x.shape
    x = x.astype(jnp.bfloat16)
    k = layer["k"]
    if k == 1 and stride == 1 and pad == 0:
        ho, wo = h, w
        a = x.reshape(n * h * w, cin)
    else:
        a, ho, wo = _im2col(x, k, stride, pad)
    res = residual.reshape(n * ho * wo, -1) if residual is not None else None
    y = matmul_fused(a, layer, act, residual=res, gate=gate,
                     rows_per_group=(ho * wo if gate is not None else None))
    return y.reshape(n, ho, wo, layer["cout"])


def mbconv(x, bp, cfg):
    e, k, s, cin, cout = cfg
    h = x
    if e != 1:
        h = conv_bn_act(h, bp["expand"], "silu")
    h, pooled = dw_bn_act(h, bp["dw"], s, "silu")          # pooled: (N, Cexp) f32
    n, cexp = pooled.shape
    rows = max(8, _round_up(n, 8))
    pp = jnp.pad(pooled, ((0, rows - n), (0, 0)))
    gate = _build_se(rows, cexp)(pp, bp["se"]["w1"], bp["se"]["b1"],
                                 bp["se"]["w2"], bp["se"]["b2"])[:n]
    res = x if (s == 1 and cin == cout) else None
    return conv_bn_act(h, bp["project"], None, residual=res, gate=gate)


def inverted_residual(x, p):
    # MobileNetV2-style InvertedResidual, stride 2 -> no residual branch.
    h = conv_bn_act(x, p["expand"], "relu6")
    h, _ = dw_bn_act(h, p["dw"], 2, "relu6")
    return conv_bn_act(h, p["project"], None)


# EfficientNet-B0 block configuration: (expand, kernel, stride, cin, cout)
_B0_STAGES = [(1, 3, 1, 32, 16, 1), (6, 3, 2, 16, 24, 2), (6, 5, 2, 24, 40, 2),
              (6, 3, 2, 40, 80, 3), (6, 5, 1, 80, 112, 3), (6, 5, 2, 112, 192, 4),
              (6, 3, 1, 192, 320, 1)]
EFFNET_B0_BLOCKS = []
for (_e, _k, _s, _ci, _co, _n) in _B0_STAGES:
    for _j in range(_n):
        EFFNET_B0_BLOCKS.append((_e, _k, _s if _j == 0 else 1,
                                 _ci if _j == 0 else _co, _co))


def backbone_forward(x, p):
    h = conv_bn_act(x, p["stem"], "silu", stride=2, pad=1)      # features[0]
    for bp, cfg in zip(p["blocks"], EFFNET_B0_BLOCKS):           # features[1..7]
        h = mbconv(h, bp, cfg)
    return conv_bn_act(h, p["head"], "silu")                     # features[8]


def bronchonet_forward(x, params):
    """x: (B, T, 3, H, W) float32 (PyTorch NCHW frames). Returns (B, T-1, 6)."""
    B, T, C, H, W = x.shape
    n = B * (T - 1)
    xt = jnp.transpose(x[:, 1:], (0, 1, 3, 4, 2)).reshape(n, H, W, C)
    xt1 = jnp.transpose(x[:, :-1], (0, 1, 3, 4, 2)).reshape(n, H, W, C)
    ot = backbone_forward(xt, params["backbone_t"])
    ot1 = backbone_forward(xt1, params["backbone_t1"])
    o = jnp.concatenate([ot, ot1], axis=-1)                      # cat on channels
    o = conv_bn_act(o, params["fusion"], "relu", stride=1, pad=1)
    o = inverted_residual(o, params["latebone1"])
    o = inverted_residual(o, params["latebone2"])
    nb, h, w, c = o.shape
    # PyTorch .view(B, -1) flattens NCHW in (C, H, W) order:
    flat = jnp.transpose(o, (0, 3, 1, 2)).reshape(nb, c * h * w)
    y = matmul_fused(flat, params["linear"], None, out_dtype=jnp.float32)
    # stack over t then permute(1, 0, 2)  ==  reshape, since row = b*(T-1)+t
    return y.reshape(B, T - 1, 6)


# ----------------------------------------------------------------------------
# Deterministic synthetic parameters (pre-padded, bf16 weights, BN folded)
# ----------------------------------------------------------------------------

def _kn_dims(K, N):
    Np = _round_up(N, 128)
    if Np <= 512:
        tn = 128
    else:
        tn = 256 if Np % 256 == 0 else 128
    if K > 2048:
        Kp = _round_up(K, 512)
        tk = next(t for t in (4608, 4096, 3584, 3072, 2560, 2048, 1536, 1024, 512)
                  if Kp % t == 0)
    else:
        Kp = _round_up(K, 8)
        tk = Kp
    return Kp, Np, tk, tn


def _bn_fold(rng, c, conv_bias=None, eps=1e-5):
    gamma = 1.0 + 0.05 * rng.normal(size=c)
    beta = 0.05 * rng.normal(size=c)
    mean = 0.05 * rng.normal(size=c)
    var = np.abs(1.0 + 0.05 * rng.normal(size=c))
    scale = gamma / np.sqrt(var + eps)
    bias = beta - mean * scale
    if conv_bias is not None:
        bias = bias + conv_bias * scale          # fold conv bias into BN affine
    return scale.astype(np.float32), bias.astype(np.float32)


def _prep_conv(rng, k, cin, cout, conv_bias=False, identity_bn=False):
    K = k * k * cin
    Kp, Np, tk, tn = _kn_dims(K, cout)
    w = rng.normal(0.0, 1.0 / np.sqrt(K), size=(K, cout)).astype(np.float32)
    cb = (0.01 * rng.normal(size=cout)).astype(np.float32) if conv_bias else None
    if identity_bn:
        scale = np.ones(cout, np.float32)
        bias = cb if cb is not None else np.zeros(cout, np.float32)
    else:
        scale, bias = _bn_fold(rng, cout, cb)
    wp = np.zeros((Kp, Np), np.float32); wp[:K, :cout] = w
    sp = np.zeros((1, Np), np.float32); sp[0, :cout] = scale
    bp = np.zeros((1, Np), np.float32); bp[0, :cout] = bias
    return {"wp": jnp.asarray(wp, dtype=jnp.bfloat16),
            "scale": jnp.asarray(sp), "bias": jnp.asarray(bp),
            "k": k, "cout": cout, "Kp": Kp, "Np": Np, "tk": tk, "tn": tn}


def _prep_dw(rng, k, c):
    w = rng.normal(0.0, 1.0 / k, size=(k, k, c)).astype(np.float32)
    scale, bias = _bn_fold(rng, c)
    return {"w": jnp.asarray(w), "scale": jnp.asarray(scale.reshape(1, c)),
            "bias": jnp.asarray(bias.reshape(1, c)), "k": k}


def _prep_se(rng, cexp, csq):
    w1 = rng.normal(0, 1.0 / np.sqrt(cexp), size=(cexp, csq)).astype(np.float32)
    b1 = (0.01 * rng.normal(size=csq)).astype(np.float32)
    w2 = rng.normal(0, 1.0 / np.sqrt(csq), size=(csq, cexp)).astype(np.float32)
    b2 = (0.01 * rng.normal(size=cexp)).astype(np.float32)
    sq = _round_up(csq, 128)
    w1p = np.zeros((cexp, sq), np.float32); w1p[:, :csq] = w1
    b1p = np.zeros((1, sq), np.float32); b1p[0, :csq] = b1
    w2p = np.zeros((sq, cexp), np.float32); w2p[:csq, :] = w2
    return {"w1": jnp.asarray(w1p), "b1": jnp.asarray(b1p),
            "w2": jnp.asarray(w2p), "b2": jnp.asarray(b2.reshape(1, cexp))}


def _prep_ir(rng, cin, cout, expand_ratio=6):
    cexp = cin * expand_ratio
    return {"expand": _prep_conv(rng, 1, cin, cexp),
            "dw": _prep_dw(rng, 3, cexp),
            "project": _prep_conv(rng, 1, cexp, cout)}


def init_backbone(rng):
    p = {"stem": _prep_conv(rng, 3, 3, 32), "blocks": []}
    for (e, k, s, cin, cout) in EFFNET_B0_BLOCKS:
        cexp = cin * e
        csq = max(1, cin // 4)
        bp = {}
        if e != 1:
            bp["expand"] = _prep_conv(rng, 1, cin, cexp)
        bp["dw"] = _prep_dw(rng, k, cexp)
        bp["se"] = _prep_se(rng, cexp, csq)
        bp["project"] = _prep_conv(rng, 1, cexp, cout)
        p["blocks"].append(bp)
    p["head"] = _prep_conv(rng, 1, 320, 1280)
    return p


def init_params(seed=0):
    rng = np.random.default_rng(seed)
    return {
        "backbone_t": init_backbone(rng),
        "backbone_t1": init_backbone(rng),
        "fusion": _prep_conv(rng, 3, 2560, 256, conv_bias=True),
        "latebone1": _prep_ir(rng, 256, 128),
        "latebone2": _prep_ir(rng, 128, 64),
        "linear": _prep_conv(rng, 1, 256, 6, conv_bias=True, identity_bn=True),
    }


if __name__ == "__main__":
    # 256x256 frames: backbone /32 -> 8x8, latebone /4 -> 2x2, so the flatten is
    # 64*2*2 = 256, matching nn.Linear(256, 6).
    B, T, H, W = 2, 2, 256, 256
    x = jax.random.normal(jax.random.PRNGKey(0), (B, T, 3, H, W), dtype=jnp.float32)
    params = init_params(0)
    fwd = jax.jit(functools.partial(bronchonet_forward, params=params))
    out = jax.block_until_ready(fwd(x))
    assert out.shape == (B, T - 1, 6), out.shape
    print("KERNEL_OK")
</pallas_src>

<mosaic_0001>
module attributes {stable_mosaic.version = 11 : i64} {
  func.func @_mm_kernel(%arg0: i32, %arg1: i32, %arg2: i32, %arg3: i32, %arg4: memref<1024x32xbf16, #tpu.memory_space<vmem>>, %arg5: memref<32x128xbf16, #tpu.memory_space<vmem>>, %arg6: memref<1x128xf32, #tpu.memory_space<vmem>>, %arg7: memref<1x128xf32, #tpu.memory_space<vmem>>, %arg8: memref<1024x128xbf16, #tpu.memory_space<vmem>>, %arg9: memref<1024x128xf32, #tpu.memory_space<vmem>>) attributes {dimension_semantics = [#tpu.dimension_semantics<parallel>, #tpu.dimension_semantics<parallel>, #tpu.dimension_semantics<parallel>, #tpu.dimension_semantics<arbitrary>], iteration_bounds = array<i64: 1, 32, 1, 1>, scalar_prefetch = 0 : i64, scratch_operands = 1 : i64, tpu.core_type = #tpu.core_type<tc>, window_params = [{transform_indices = @transform_0, window_bounds = array<i64: 1024, 32>}, {transform_indices = @transform_1, window_bounds = array<i64: 32, 128>}, {transform_indices = @transform_2, window_bounds = array<i64: 1, 128>}, {transform_indices = @transform_3, window_bounds = array<i64: 1, 128>}, {transform_indices = @transform_4, window_bounds = array<i64: 1024, 128>}]} {
    %c0_i32 = arith.constant 0 : i32
    %0 = arith.cmpi eq, %arg3, %c0_i32 : i32
    %1 = arith.extui %0 : i1 to i32
    %c0_i32_0 = arith.constant 0 : i32
    %2 = arith.cmpi ne, %1, %c0_i32_0 : i32
    scf.if %2 {
      %cst_10 = arith.constant 0.000000e+00 : f32
      %12 = vector.broadcast %cst_10 : f32 to vector<1024x128xf32>
      %c0_11 = arith.constant 0 : index
      %c0_12 = arith.constant 0 : index
      %13 = vector.load %arg9[%c0_11, %c0_12] : memref<1024x128xf32, #tpu.memory_space<vmem>>, vector<1024x128xf32>
      tpu.vector_store %arg9[%c0_11, %c0_12], %12 {strides = array<i32>} : memref<1024x128xf32, #tpu.memory_space<vmem>>, vector<1024x128xf32>,
    } else {
    }
    %c0 = arith.constant 0 : index
    %c0_1 = arith.constant 0 : index
    %3 = vector.load %arg4[%c0, %c0_1] : memref<1024x32xbf16, #tpu.memory_space<vmem>>, vector<1024x32xbf16>
    %c0_2 = arith.constant 0 : index
    %c0_3 = arith.constant 0 : index
    %4 = vector.load %arg9[%c0_2, %c0_3] : memref<1024x128xf32, #tpu.memory_space<vmem>>, vector<1024x128xf32>
    %c0_4 = arith.constant 0 : index
    %c0_5 = arith.constant 0 : index
    %5 = vector.load %arg5[%c0_4, %c0_5] : memref<32x128xbf16, #tpu.memory_space<vmem>>, vector<32x128xbf16>
    %cst = arith.constant dense<0.000000e+00> : vector<1024x128xf32>
    %6 = tpu.matmul %3, %5, %cst {dimension_numbers = #tpu.dot_dimension_numbers<[1], [0], [0], [1], [0, 0, 1, 1], [], []>} : vector<1024x32xbf16>, vector<32x128xbf16>, vector<1024x128xf32> -> vector<1024x128xf32>
    %7 = arith.addf %4, %6 : vector<1024x128xf32>
    %c0_6 = arith.constant 0 : index
    %c0_7 = arith.constant 0 : index
    %8 = vector.load %arg9[%c0_6, %c0_7] : memref<1024x128xf32, #tpu.memory_space<vmem>>, vector<1024x128xf32>
    tpu.vector_store %arg9[%c0_6, %c0_7], %7 {strides = array<i32>} : memref<1024x128xf32, #tpu.memory_space<vmem>>, vector<1024x128xf32>,
    %c0_i32_8 = arith.constant 0 : i32
    %9 = arith.cmpi eq, %arg3, %c0_i32_8 : i32
    %10 = arith.extui %9 : i1 to i32
    %c0_i32_9 = arith.constant 0 : i32
    %11 = arith.cmpi ne, %10, %c0_i32_9 : i32
    scf.if %11 {
      %c0_10 = arith.constant 0 : index
      %c0_11 = arith.constant 0 : index
      %12 = vector.load %arg9[%c0_10, %c0_11] : memref<1024x128xf32, #tpu.memory_space<vmem>>, vector<1024x128xf32>
      %c0_12 = arith.constant 0 : index
      %c0_13 = arith.constant 0 : index
      %13 = vector.load %arg6[%c0_12, %c0_13] : memref<1x128xf32, #tpu.memory_space<vmem>>, vector<1x128xf32>
      %14 = vector.broadcast %13 : vector<1x128xf32> to vector<1024x128xf32>
      %15 = arith.mulf %12, %14 : vector<1024x128xf32>
      %c0_14 = arith.constant 0 : index
      %c0_15 = arith.constant 0 : index
      %16 = vector.load %arg7[%c0_14, %c0_15] : memref<1x128xf32, #tpu.memory_space<vmem>>, vector<1x128xf32>
      %17 = vector.broadcast %16 : vector<1x128xf32> to vector<1024x128xf32>
      %18 = arith.addf %15, %17 : vector<1024x128xf32>
      %cst_16 = arith.constant 0.000000e+00 : f32
      %19 = vector.broadcast %cst_16 : f32 to vector<1024x128xf32>
      %20 = arith.subf %19, %18 : vector<1024x128xf32>
      %21 = math.exp %20 : vector<1024x128xf32>
      %cst_17 = arith.constant 1.000000e+00 : f32
      %22 = vector.broadcast %cst_17 : f32 to vector<1024x128xf32>
      %23 = arith.addf %22, %21 : vector<1024x128xf32>
      %cst_18 = arith.constant 1.000000e+00 : f32
      %24 = vector.broadcast %cst_18 : f32 to vector<1024x128xf32>
      %25 = arith.divf %24, %23 : vector<1024x128xf32>
      %26 = arith.mulf %18, %25 : vector<1024x128xf32>
      %27 = arith.truncf %26 : vector<1024x128xf32> to vector<1024x128xbf16>
      %c0_19 = arith.constant 0 : index
      %c0_20 = arith.constant 0 : index
      %28 = vector.load %arg8[%c0_19, %c0_20] : memref<1024x128xbf16, #tpu.memory_space<vmem>>, vector<1024x128xbf16>
      tpu.vector_store %arg8[%c0_19, %c0_20], %27 {strides = array<i32>} : memref<1024x128xbf16, #tpu.memory_space<vmem>>, vector<1024x128xbf16>,
    } else {
    }
    return
  }
  func.func @transform_0(%arg0: i32, %arg1: i32, %arg2: i32, %arg3: i32) -> (i32, i32) {
    %c32_i32 = arith.constant 32 : i32
    %0 = arith.muli %arg0, %c32_i32 : i32
    %1 = arith.addi %0, %arg1 : i32
    %c0_i32 = arith.constant 0 : i32
    return %1, %arg3 : i32, i32
  }
  func.func @transform_1(%arg0: i32, %arg1: i32, %arg2: i32, %arg3: i32) -> (i32, i32) {
    %c0_i32 = arith.constant 0 : i32
    return %arg3, %arg2 : i32, i32
  }
  func.func @transform_2(%arg0: i32, %arg1: i32, %arg2: i32, %arg3: i32) -> (i32, i32) {
    %c0_i32 = arith.constant 0 : i32
    %c0_i32_0 = arith.constant 0 : i32
    return %c0_i32, %arg2 : i32, i32
  }
  func.func @transform_3(%arg0: i32, %arg1: i32, %arg2: i32, %arg3: i32) -> (i32, i32) {
    %c0_i32 = arith.constant 0 : i32
    %c0_i32_0 = arith.constant 0 : i32
    return %c0_i32, %arg2 : i32, i32
  }
  func.func @transform_4(%arg0: i32, %arg1: i32, %arg2: i32, %arg3: i32) -> (i32, i32) {
    %c32_i32 = arith.constant 32 : i32
    %0 = arith.muli %arg0, %c32_i32 : i32
    %1 = arith.addi %0, %arg1 : i32
    %c0_i32 = arith.constant 0 : i32
    return %1, %arg2 : i32, i32
  }
}

</mosaic_0001>

<llo_original>
// kernel: tpu_custom_call.1
$region0: #{tpu_custom_call.1}
  #allocation0 [shape = 'u32[]', space=smem, size = 0x4, offset = 0x4, fixed_abs, tag = 'smem constant byte address 0x4 - core index']
  #allocation1 [shape = 'u32[144,128]{1,0:T(1,128)}', space=vmem, size = 0x12000, scoped, tag = 'internal scratch']
  #allocation2 [shape = 'f32[1024,128]{1,0:T(8,128)}', space=vmem, size = 0x80000, scoped, tag = 'scratch operand']
  %s0 = inlined_call_operand.vmem [shape: bf16[32768,32], index: 0, kind: input, shape index: {}]
  %s1 = inlined_call_operand.vmem [shape: bf16[32,128], index: 1, kind: input, shape index: {}]
  %s2 = inlined_call_operand.vmem [shape: f32[1,128], index: 2, kind: input, shape index: {}]
  %s3 = inlined_call_operand.vmem [shape: f32[1,128], index: 3, kind: input, shape index: {}]
  %s4 = inlined_call_operand.hbm [shape: bf16[32768,128], index: 4, kind: output, shape index: {}]
  %s5 = sld [smem:[#allocation0]]
  $region57: #{tpu_custom_call.1} parent=0
    _
  %s7 = ssub.s32 1, %s5
  %s8 = scalar_select 0, %s7, %s5
  $region1: #{tpu_custom_call.1} parent=0
    #allocation3 [shape = 'u8[524288]{0}', space=vmem, size = 0x80000, scoped, tag = 'output window, operand 0']
    #allocation4 [shape = 's32[2]{0}', space=sflag, size = 0x8, scoped, tag = 'scoped memory for tpu_custom_call.1']
    %9 = vsyncpa [#allocation4], 0
    %s10 = scalar_lea.sflag [#allocation4], 1
    %11 = vsyncpa %s10, 0
    loop: start=0, step=1, limit=34
    $region2: #{tpu_custom_call.1} parent=1 // loop_pre_header
      _
    $region3: #{tpu_custom_call.1} parent=1 // loop_header
      %s13 = sphi 0, %s17
      %p14 = scmp.ge.s32.totalorder %s13, 34
      %s20 = sphi 0, %s46
      %s21 = sphi 0, %s42
      %s22 = sphi 0, %s38
      %s23 = sphi 0, %s34
      %s24 = sphi 0, %s20
      %s25 = sphi 0, %s21
      %s26 = sphi 0, %s22
      %s27 = sphi 0, %s23
      %s28 = sphi 0, %s24
      %s29 = sphi 0, %s25
      %s30 = sphi 0, %s26
      %s31 = sphi 0, %s27
      %s55 = sphi 0, %s57
      %s58 = sphi 0, %s55
      %s59 = sphi 0, %s58
      %s75 = sphi 0, %s59
      %s83 = sphi 0, %s85
      %s86 = sphi 0, %s83
      %s87 = sphi 0, %s86
      %s103 = sphi 0, %s87
      %s109 = sphi 0, %s111
      %s112 = sphi 0, %s109
      %s113 = sphi 0, %s112
      %s129 = sphi 0, %s113
      %s135 = sphi 0, %s137
      %s138 = sphi 0, %s135
      %s139 = sphi 0, %s138
      %s155 = sphi 0, %s139
      %s167 = sphi 0, %s169
      %s170 = sphi 0, %s167
      %s171 = sphi 0, %s170
      %s187 = sphi 0, %s171
    $region4: #{tpu_custom_call.1} parent=1 // loop_header_branch
      %16 = sbr.rel (%p14) target = $region8
    $region5: #{tpu_custom_call.1} parent=1 // loop_body
      %s18 = ssub.s32 %s13, 1
      %s19 = ssub.s32 %s13, 2
      %s32 = sadd.s32 1, %s23
      %p33 = scmp.ge.s32.totalorder %s32, 1
      %s34 = scalar_select %p33, 0, %s32
      %s35 = sadd.s32 1, %s22
      %s36 = scalar_select %p33, %s35, %s22
      %p37 = scmp.ge.s32.totalorder %s36, 1
      %s38 = scalar_select %p37, 0, %s36
      %s39 = sadd.s32 1, %s21
      %s40 = scalar_select %p37, %s39, %s21
      %p41 = scmp.ge.s32.totalorder %s40, 32
      %s42 = scalar_select %p41, 0, %s40
      %s43 = sadd.s32 1, %s20
      %s44 = scalar_select %p41, %s43, %s20
      %p45 = scmp.ge.s32.totalorder %s44, 1
      %s46 = scalar_select %p45, 0, %s44
      %s47 = smul.u32 %s20, 32
      %s48 = sadd.s32 %s47, %s21
      %s49 = smul.u32 %s46, 32
      %s50 = sadd.s32 %s49, %s42
      %s51 = ssub.s32 %s48, %s50
      %s52 = ssub.s32 %s23, %s34
      %s53 = sor.u32 %s51, %s52
      %p54 = scmp.eq.s32.totalorder %s53, 0
      %s56 = sadd.s32 %s55, 1
      %s57 = scalar_select %p54, %s55, %s56
      %p60 = pneg %p54
      %p61 = scmp.eq.s32.totalorder %s13, 31
      %p62 = por %p60, %p61
      %p63 = scmp.ne.s32.totalorder %s55, %s58
      %p64 = scmp.eq.s32.totalorder %s13, 0
      %p65 = por %p63, %p64
      %p66 = scmp.ne.s32.totalorder %s55, %s58
      %p67 = scmp.eq.s32.totalorder %s18, 31
      %p68 = por %p66, %p67
      %p69 = scmp.ne.s32.totalorder %s58, %s59
      %p70 = scmp.eq.s32.totalorder %s18, 0
      %p71 = por %p69, %p70
      %p72 = scmp.ne.s32.totalorder %s58, %s59
      %p73 = scmp.eq.s32.totalorder %s19, 31
      %p74 = por %p72, %p73
      %p76 = scmp.ne.s32.totalorder %s59, %s75
      %p77 = scmp.eq.s32.totalorder %s19, 0
      %p78 = por %p76, %p77
      %s79 = ssub.s32 %s23, %s34
      %s80 = ssub.s32 %s22, %s38
      %s81 = sor.u32 %s79, %s80
      %p82 = scmp.eq.s32.totalorder %s81, 0
      %s84 = sadd.s32 %s83, 1
      %s85 = scalar_select %p82, %s83, %s84
      %p88 = pneg %p82
      %p89 = scmp.eq.s32.totalorder %s13, 31
      %p90 = por %p88, %p89
      %p91 = scmp.ne.s32.totalorder %s83, %s86
      %p92 = scmp.eq.s32.totalorder %s13, 0
      %p93 = por %p91, %p92
      %p94 = scmp.ne.s32.totalorder %s83, %s86
      %p95 = scmp.eq.s32.totalorder %s18, 31
      %p96 = por %p94, %p95
      %p97 = scmp.ne.s32.totalorder %s86, %s87
      %p98 = scmp.eq.s32.totalorder %s18, 0
      %p99 = por %p97, %p98
      %p100 = scmp.ne.s32.totalorder %s86, %s87
      %p101 = scmp.eq.s32.totalorder %s19, 31
      %p102 = por %p100, %p101
      %p104 = scmp.ne.s32.totalorder %s87, %s103
      %p105 = scmp.eq.s32.totalorder %s19, 0
      %p106 = por %p104, %p105
      %s107 = ssub.s32 %s22, %s38
      %p108 = scmp.eq.s32.totalorder %s107, 0
      %s110 = sadd.s32 %s109, 1
      %s111 = scalar_select %p108, %s109, %s110
      %p114 = pneg %p108
      %p115 = scmp.eq.s32.totalorder %s13, 31
      %p116 = por %p114, %p115
      %p117 = scmp.ne.s32.totalorder %s109, %s112
      %p118 = scmp.eq.s32.totalorder %s13, 0
      %p119 = por %p117, %p118
      %p120 = scmp.ne.s32.totalorder %s109, %s112
      %p121 = scmp.eq.s32.totalorder %s18, 31
      %p122 = por %p120, %p121
      %p123 = scmp.ne.s32.totalorder %s112, %s113
      %p124 = scmp.eq.s32.totalorder %s18, 0
      %p125 = por %p123, %p124
      %p126 = scmp.ne.s32.totalorder %s112, %s113
      %p127 = scmp.eq.s32.totalorder %s19, 31
      %p128 = por %p126, %p127
      %p130 = scmp.ne.s32.totalorder %s113, %s129
      %p131 = scmp.eq.s32.totalorder %s19, 0
      %p132 = por %p130, %p131
      %s133 = ssub.s32 %s22, %s38
      %p134 = scmp.eq.s32.totalorder %s133, 0
      %s136 = sadd.s32 %s135, 1
      %s137 = scalar_select %p134, %s135, %s136
      %p140 = pneg %p134
      %p141 = scmp.eq.s32.totalorder %s13, 31
      %p142 = por %p140, %p141
      %p143 = scmp.ne.s32.totalorder %s135, %s138
      %p144 = scmp.eq.s32.totalorder %s13, 0
      %p145 = por %p143, %p144
      %p146 = scmp.ne.s32.totalorder %s135, %s138
      %p147 = scmp.eq.s32.totalorder %s18, 31
      %p148 = por %p146, %p147
      %p149 = scmp.ne.s32.totalorder %s138, %s139
      %p150 = scmp.eq.s32.totalorder %s18, 0
      %p151 = por %p149, %p150
      %p152 = scmp.ne.s32.totalorder %s138, %s139
      %p153 = scmp.eq.s32.totalorder %s19, 31
      %p154 = por %p152, %p153
      %p156 = scmp.ne.s32.totalorder %s139, %s155
      %p157 = scmp.eq.s32.totalorder %s19, 0
      %p158 = por %p156, %p157
      %s159 = smul.u32 %s20, 32
      %s160 = sadd.s32 %s159, %s21
      %s161 = smul.u32 %s46, 32
      %s162 = sadd.s32 %s161, %s42
      %s163 = ssub.s32 %s160, %s162
      %s164 = ssub.s32 %s22, %s38
      %s165 = sor.u32 %s163, %s164
      %p166 = scmp.eq.s32.totalorder %s165, 0
      %s168 = sadd.s32 %s167, 1
      %s169 = scalar_select %p166, %s167, %s168
      %p172 = pneg %p166
      %p173 = scmp.eq.s32.totalorder %s13, 31
      %p174 = por %p172, %p173
      %p175 = scmp.ne.s32.totalorder %s167, %s170
      %p176 = scmp.eq.s32.totalorder %s13, 0
      %p177 = por %p175, %p176
      %p178 = scmp.ne.s32.totalorder %s167, %s170
      %p179 = scmp.eq.s32.totalorder %s18, 31
      %p180 = por %p178, %p179
      %p181 = scmp.ne.s32.totalorder %s170, %s171
      %p182 = scmp.eq.s32.totalorder %s18, 0
      %p183 = por %p181, %p182
      %p184 = scmp.ne.s32.totalorder %s170, %s171
      %p185 = scmp.eq.s32.totalorder %s19, 31
      %p186 = por %p184, %p185
      %p188 = scmp.ne.s32.totalorder %s171, %s187
      %p189 = scmp.eq.s32.totalorder %s19, 0
      %p190 = por %p188, %p189
      %p191 = scmp.le.s32.totalorder 1, %s13
      %p192 = scmp.lt.s32.totalorder %s13, 33
      %p193 = pnand %p191, %p192
      %p194 = pneg %p193
      // Predicated region
      $region9: #{tpu_custom_call.1} parent=5 // pred_check
        _
      $region10: #{tpu_custom_call.1} parent=5 // pred_check_branch
        %196 = sbr.rel (%p193) target = $region12
      $region11: #{tpu_custom_call.1} parent=5 // pred_region
        %s197 = ssub.s32 %s13, 1
        // Predicated region
        $region13: #{tpu_custom_call.1} parent=11 // pred_check
          %p198 = pneg %p99
        $region14: #{tpu_custom_call.1} parent=11 // pred_check_branch
          %200 = sbr.rel (%p198) target = $region16
        $region15: #{tpu_custom_call.1} parent=11 // pred_region
          %s201 = smul.u32 4, %s27
          %p202 = scmp.lt.s32.totalorder %s201, 3
          %s203 = scalar_select %p202, %s201, 3
          %p204 = scmp.lt.s32.totalorder %s26, 0
          %s205 = scalar_select %p204, %s26, 0
          %s206 = sadd.s32 %s205, %s203
          %s207 = smul.addr %s206, 4
          %s208 = scalar_lea.vmem %s1, %s207
          %s209 = smul.u32 4, %s27
        $region16: #{tpu_custom_call.1} parent=11 // pred_fallthru
          _
        // Predicated region
        $region17: #{tpu_custom_call.1} parent=11 // pred_check
          %p210 = pneg %p125
        $region18: #{tpu_custom_call.1} parent=11 // pred_check_branch
          %212 = sbr.rel (%p210) target = $region20
        $region19: #{tpu_custom_call.1} parent=11 // pred_region
          %p213 = scmp.lt.s32.totalorder %s26, 0
          %s214 = scalar_select %p213, %s26, 0
          %s215 = scalar_lea.vmem %s2, %s214
        $region20: #{tpu_custom_call.1} parent=11 // pred_fallthru
          _
        // Predicated region
        $region21: #{tpu_custom_call.1} parent=11 // pred_check
          %p216 = pneg %p151
        $region22: #{tpu_custom_call.1} parent=11 // pred_check_branch
          %218 = sbr.rel (%p216) target = $region24
        $region23: #{tpu_custom_call.1} parent=11 // pred_region
          %p219 = scmp.lt.s32.totalorder %s26, 0
          %s220 = scalar_select %p219, %s26, 0
          %s221 = scalar_lea.vmem %s3, %s220
        $region24: #{tpu_custom_call.1} parent=11 // pred_fallthru
          _
      $region12: #{tpu_custom_call.1} parent=5 // pred_fallthru
        _
      %p222 = scmp.lt.s32.totalorder %s13, 32
      // Predicated region
      $region25: #{tpu_custom_call.1} parent=5 // pred_check
        %p223 = pneg %p222
      $region26: #{tpu_custom_call.1} parent=5 // pred_check_branch
        %225 = sbr.rel (%p223) target = $region28
      $region27: #{tpu_custom_call.1} parent=5 // pred_region
        // Predicated region
        $region29: #{tpu_custom_call.1} parent=27 // pred_check
          %p226 = pneg %p65
        $region30: #{tpu_custom_call.1} parent=27 // pred_check_branch
          %228 = sbr.rel (%p226) target = $region32
        $region31: #{tpu_custom_call.1} parent=27 // pred_region
          %s229 = smul.u32 %s20, 32
          %s230 = sadd.s32 %s229, %s21
          %s231 = smul.u32 128, %s230
          %p232 = scmp.lt.s32.totalorder %s231, 4095
          %s233 = scalar_select %p232, %s231, 4095
          %p234 = scmp.lt.s32.totalorder %s23, 0
          %s235 = scalar_select %p234, %s23, 0
          %s236 = sadd.s32 %s235, %s233
          %s237 = smul.addr %s236, 4
          %s238 = scalar_lea.vmem %s0, %s237
          %s239 = smul.u32 %s20, 32
          %s240 = sadd.s32 %s239, %s21
          %s241 = smul.u32 128, %s240
        $region32: #{tpu_custom_call.1} parent=27 // pred_fallthru
          _
      $region28: #{tpu_custom_call.1} parent=5 // pred_fallthru
        _
      %p242 = scmp.le.s32.totalorder 1, %s13
      %p243 = scmp.lt.s32.totalorder %s13, 33
      %p244 = pnand %p242, %p243
      %p245 = pneg %p244
      // Predicated region
      $region33: #{tpu_custom_call.1} parent=5 // pred_check
        _
      $region34: #{tpu_custom_call.1} parent=5 // pred_check_branch
        %247 = sbr.rel (%p244) target = $region36
      $region35: #{tpu_custom_call.1} parent=5 // pred_region
        %s248 = ssub.s32 %s13, 1
        %s249 = smul.u32 %s24, 32
        %s250 = sadd.s32 %s249, %s25
        %s251 = smul.u32 128, %s250
        %p252 = scmp.lt.s32.totalorder %s251, 4095
        %s253 = scalar_select %p252, %s251, 4095
        %p254 = scmp.lt.s32.totalorder %s27, 0
        %s255 = scalar_select %p254, %s27, 0
        %s256 = sadd.s32 %s255, %s253
        %s257 = smul.addr %s256, 4
        %s258 = scalar_lea.vmem %s0, %s257
        %p259 = pneg %p71
        %p260 = pneg %p68
        %s261 = smul.u32 4, %s27
        %p262 = scmp.lt.s32.totalorder %s261, 3
        %s263 = scalar_select %p262, %s261, 3
        %p264 = scmp.lt.s32.totalorder %s26, 0
        %s265 = scalar_select %p264, %s26, 0
        %s266 = sadd.s32 %s265, %s263
        %s267 = smul.addr %s266, 4
        %s268 = scalar_lea.vmem %s1, %s267
        %p269 = pneg %p99
        %p270 = pneg %p96
        %p271 = scmp.lt.s32.totalorder %s26, 0
        %s272 = scalar_select %p271, %s26, 0
        %s273 = scalar_lea.vmem %s2, %s272
        %p274 = pneg %p125
        %p275 = pneg %p122
        %p276 = scmp.lt.s32.totalorder %s26, 0
        %s277 = scalar_select %p276, %s26, 0
        %s278 = scalar_lea.vmem %s3, %s277
        %p279 = pneg %p151
        %p280 = pneg %p148
        %p281 = pneg %p183
        %p282 = pneg %p180
        %s283 = sand.u32 %s170, 1
        %s284 = scalar_lea.sflag [#allocation4], %s283
        %s285 = sand.u32 %s170, 1
        %s286 = smul.addr %s285, 512
        %s287 = scalar_lea.vmem [#allocation3], %s286
        %s288 = smul.u32 %s24, 32
        %s289 = sadd.s32 %s288, %s25
        %s290 = smul.u32 128, %s289
        %p291 = scmp.lt.s32.totalorder %s290, 4095
        %s292 = scalar_select %p291, %s290, 4095
        %p293 = scmp.lt.s32.totalorder %s27, 0
        %s294 = scalar_select %p293, %s27, 0
        %s295 = sadd.s32 %s294, %s292
        %s296 = smul.addr %s295, 4
        %s297 = scalar_lea.vmem %s0, %s296
        %s298 = smul.u32 %s24, 32
        %s299 = sadd.s32 %s298, %s25
        %s300 = smul.u32 128, %s299
        %s301 = smul.u32 4, %s27
        %p302 = scmp.lt.s32.totalorder %s301, 3
        %s303 = scalar_select %p302, %s301, 3
        %p304 = scmp.lt.s32.totalorder %s26, 0
        %s305 = scalar_select %p304, %s26, 0
        %s306 = sadd.s32 %s305, %s303
        %s307 = smul.addr %s306, 4
        %s308 = scalar_lea.vmem %s1, %s307
        %s309 = smul.u32 4, %s27
        %p310 = scmp.lt.s32.totalorder %s26, 0
        %s311 = scalar_select %p310, %s26, 0
        %s312 = scalar_lea.vmem %s2, %s311
        %p313 = scmp.lt.s32.totalorder %s26, 0
        %s314 = scalar_select %p313, %s26, 0
        %s315 = scalar_lea.vmem %s3, %s314
        %s316 = smul.u32 %s24, 32
        %s317 = sadd.s32 %s316, %s25
        %s318 = smul.u32 128, %s317
        %p320 = scmp.eq.s32.totalorder %s27, 0
        // Predicated region
        $region37: #{tpu_custom_call.1} parent=35 // pred_check
          %p321 = pneg %p320
        $region38: #{tpu_custom_call.1} parent=35 // pred_check_branch
          %323 = sbr.rel (%p321) target = $region40
        $region39: #{tpu_custom_call.1} parent=35 // pred_region
          %324 = vst [vmem:[#allocation2] sm:$0xff] 0.0
          %325 = vst [vmem:[#allocation2 + $0x8] sm:$0xff] 0.0
          %326 = vst [vmem:[#allocation2 + $0x10] sm:$0xff] 0.0
          %327 = vst [vmem:[#allocation2 + $0x18] sm:$0xff] 0.0
          %328 = vst [vmem:[#allocation2 + $0x20] sm:$0xff] 0.0
          %329 = vst [vmem:[#allocation2 + $0x28] sm:$0xff] 0.0
          %330 = vst [vmem:[#allocation2 + $0x30] sm:$0xff] 0.0
          %331 = vst [vmem:[#allocation2 + $0x38] sm:$0xff] 0.0
          %332 = vst [vmem:[#allocation2 + $0x40] sm:$0xff] 0.0
          %333 = vst [vmem:[#allocation2 + $0x48] sm:$0xff] 0.0
          %334 = vst [vmem:[#allocation2 + $0x50] sm:$0xff] 0.0
          %335 = vst [vmem:[#allocation2 + $0x58] sm:$0xff] 0.0
          %336 = vst [vmem:[#allocation2 + $0x60] sm:$0xff] 0.0
          %337 = vst [vmem:[#allocation2 + $0x68] sm:$0xff] 0.0
          %338 = vst [vmem:[#allocation2 + $0x70] sm:$0xff] 0.0
          %339 = vst [vmem:[#allocation2 + $0x78] sm:$0xff] 0.0
          %340 = vst [vmem:[#allocation2 + $0x80] sm:$0xff] 0.0
          %341 = vst [vmem:[#allocation2 + $0x88] sm:$0xff] 0.0
          %342 = vst [vmem:[#allocation2 + $0x90] sm:$0xff] 0.0
          %343 = vst [vmem:[#allocation2 + $0x98] sm:$0xff] 0.0
          %344 = vst [vmem:[#allocation2 + $0xa0] sm:$0xff] 0.0
          %345 = vst [vmem:[#allocation2 + $0xa8] sm:$0xff] 0.0
          %346 = vst [vmem:[#allocation2 + $0xb0] sm:$0xff] 0.0
          %347 = vst [vmem:[#allocation2 + $0xb8] sm:$0xff] 0.0
          %348 = vst [vmem:[#allocation2 + $0xc0] sm:$0xff] 0.0
          %349 = vst [vmem:[#allocation2 + $0xc8] sm:$0xff] 0.0
          %350 = vst [vmem:[#allocation2 + $0xd0] sm:$0xff] 0.0
          %351 = vst [vmem:[#allocation2 + $0xd8] sm:$0xff] 0.0
          %352 = vst [vmem:[#allocation2 + $0xe0] sm:$0xff] 0.0
          %353 = vst [vmem:[#allocation2 + $0xe8] sm:$0xff] 0.0
          %354 = vst [vmem:[#allocation2 + $0xf0] sm:$0xff] 0.0
          %355 = vst [vmem:[#allocation2 + $0xf8] sm:$0xff] 0.0
          %356 = vst [vmem:[#allocation2 + $0x100] sm:$0xff] 0.0
          %357 = vst [vmem:[#allocation2 + $0x108] sm:$0xff] 0.0
          %358 = vst [vmem:[#allocation2 + $0x110] sm:$0xff] 0.0
          %359 = vst [vmem:[#allocation2 + $0x118] sm:$0xff] 0.0
          %360 = vst [vmem:[#allocation2 + $0x120] sm:$0xff] 0.0
          %361 = vst [vmem:[#allocation2 + $0x128] sm:$0xff] 0.0
          %362 = vst [vmem:[#allocation2 + $0x130] sm:$0xff] 0.0
          %363 = vst [vmem:[#allocation2 + $0x138] sm:$0xff] 0.0
          %364 = vst [vmem:[#allocation2 + $0x140] sm:$0xff] 0.0
          %365 = vst [vmem:[#allocation2 + $0x148] sm:$0xff] 0.0
          %366 = vst [vmem:[#allocation2 + $0x150] sm:$0xff] 0.0
          %367 = vst [vmem:[#allocation2 + $0x158] sm:$0xff] 0.0
          %368 = vst [vmem:[#allocation2 + $0x160] sm:$0xff] 0.0
          %369 = vst [vmem:[#allocation2 + $0x168] sm:$0xff] 0.0
          %370 = vst [vmem:[#allocation2 + $0x170] sm:$0xff] 0.0
          %371 = vst [vmem:[#allocation2 + $0x178] sm:$0xff] 0.0
          %372 = vst [vmem:[#allocation2 + $0x180] sm:$0xff] 0.0
          %373 = vst [vmem:[#allocation2 + $0x188] sm:$0xff] 0.0
          %374 = vst [vmem:[#allocation2 + $0x190] sm:$0xff] 0.0
          %375 = vst [vmem:[#allocation2 + $0x198] sm:$0xff] 0.0
          %376 = vst [vmem:[#allocation2 + $0x1a0] sm:$0xff] 0.0
          %377 = vst [vmem:[#allocation2 + $0x1a8] sm:$0xff] 0.0
          %378 = vst [vmem:[#allocation2 + $0x1b0] sm:$0xff] 0.0
          %379 = vst [vmem:[#allocation2 + $0x1b8] sm:$0xff] 0.0
          %380 = vst [vmem:[#allocation2 + $0x1c0] sm:$0xff] 0.0
          %381 = vst [vmem:[#allocation2 + $0x1c8] sm:$0xff] 0.0
          %382 = vst [vmem:[#allocation2 + $0x1d0] sm:$0xff] 0.0
          %383 = vst [vmem:[#allocation2 + $0x1d8] sm:$0xff] 0.0
          %384 = vst [vmem:[#allocation2 + $0x1e0] sm:$0xff] 0.0
          %385 = vst [vmem:[#allocation2 + $0x1e8] sm:$0xff] 0.0
          %386 = vst [vmem:[#allocation2 + $0x1f0] sm:$0xff] 0.0
          %387 = vst [vmem:[#allocation2 + $0x1f8] sm:$0xff] 0.0
          %388 = vst [vmem:[#allocation2 + $0x200] sm:$0xff] 0.0
          %389 = vst [vmem:[#allocation2 + $0x208] sm:$0xff] 0.0
          %390 = vst [vmem:[#allocation2 + $0x210] sm:$0xff] 0.0
          %391 = vst [vmem:[#allocation2 + $0x218] sm:$0xff] 0.0
          %392 = vst [vmem:[#allocation2 + $0x220] sm:$0xff] 0.0
          %393 = vst [vmem:[#allocation2 + $0x228] sm:$0xff] 0.0
          %394 = vst [vmem:[#allocation2 + $0x230] sm:$0xff] 0.0
          %395 = vst [vmem:[#allocation2 + $0x238] sm:$0xff] 0.0
          %396 = vst [vmem:[#allocation2 + $0x240] sm:$0xff] 0.0
          %397 = vst [vmem:[#allocation2 + $0x248] sm:$0xff] 0.0
          %398 = vst [vmem:[#allocation2 + $0x250] sm:$0xff] 0.0
          %399 = vst [vmem:[#allocation2 + $0x258] sm:$0xff] 0.0
          %400 = vst [vmem:[#allocation2 + $0x260] sm:$0xff] 0.0
          %401 = vst [vmem:[#allocation2 + $0x268] sm:$0xff] 0.0
          %402 = vst [vmem:[#allocation2 + $0x270] sm:$0xff] 0.0
          %403 = vst [vmem:[#allocation2 + $0x278] sm:$0xff] 0.0
          %404 = vst [vmem:[#allocation2 + $0x280] sm:$0xff] 0.0
          %405 = vst [vmem:[#allocation2 + $0x288] sm:$0xff] 0.0
          %406 = vst [vmem:[#allocation2 + $0x290] sm:$0xff] 0.0
          %407 = vst [vmem:[#allocation2 + $0x298] sm:$0xff] 0.0
          %408 = vst [vmem:[#allocation2 + $0x2a0] sm:$0xff] 0.0
          %409 = vst [vmem:[#allocation2 + $0x2a8] sm:$0xff] 0.0
          %410 = vst [vmem:[#allocation2 + $0x2b0] sm:$0xff] 0.0
          %411 = vst [vmem:[#allocation2 + $0x2b8] sm:$0xff] 0.0
          %412 = vst [vmem:[#allocation2 + $0x2c0] sm:$0xff] 0.0
          %413 = vst [vmem:[#allocation2 + $0x2c8] sm:$0xff] 0.0
          %414 = vst [vmem:[#allocation2 + $0x2d0] sm:$0xff] 0.0
          %415 = vst [vmem:[#allocation2 + $0x2d8] sm:$0xff] 0.0
          %416 = vst [vmem:[#allocation2 + $0x2e0] sm:$0xff] 0.0
          %417 = vst [vmem:[#allocation2 + $0x2e8] sm:$0xff] 0.0
          %418 = vst [vmem:[#allocation2 + $0x2f0] sm:$0xff] 0.0
          %419 = vst [vmem:[#allocation2 + $0x2f8] sm:$0xff] 0.0
          %420 = vst [vmem:[#allocation2 + $0x300] sm:$0xff] 0.0
          %421 = vst [vmem:[#allocation2 + $0x308] sm:$0xff] 0.0
          %422 = vst [vmem:[#allocation2 + $0x310] sm:$0xff] 0.0
          %423 = vst [vmem:[#allocation2 + $0x318] sm:$0xff] 0.0
          %424 = vst [vmem:[#allocation2 + $0x320] sm:$0xff] 0.0
          %425 = vst [vmem:[#allocation2 + $0x328] sm:$0xff] 0.0
          %426 = vst [vmem:[#allocation2 + $0x330] sm:$0xff] 0.0
          %427 = vst [vmem:[#allocation2 + $0x338] sm:$0xff] 0.0
          %428 = vst [vmem:[#allocation2 + $0x340] sm:$0xff] 0.0
          %429 = vst [vmem:[#allocation2 + $0x348] sm:$0xff] 0.0
          %430 = vst [vmem:[#allocation2 + $0x350] sm:$0xff] 0.0
          %431 = vst [vmem:[#allocation2 + $0x358] sm:$0xff] 0.0
          %432 = vst [vmem:[#allocation2 + $0x360] sm:$0xff] 0.0
          %433 = vst [vmem:[#allocation2 + $0x368] sm:$0xff] 0.0
          %434 = vst [vmem:[#allocation2 + $0x370] sm:$0xff] 0.0
          %435 = vst [vmem:[#allocation2 + $0x378] sm:$0xff] 0.0
          %436 = vst [vmem:[#allocation2 + $0x380] sm:$0xff] 0.0
          %437 = vst [vmem:[#allocation2 + $0x388] sm:$0xff] 0.0
          %438 = vst [vmem:[#allocation2 + $0x390] sm:$0xff] 0.0
          %439 = vst [vmem:[#allocation2 + $0x398] sm:$0xff] 0.0
          %440 = vst [vmem:[#allocation2 + $0x3a0] sm:$0xff] 0.0
          %441 = vst [vmem:[#allocation2 + $0x3a8] sm:$0xff] 0.0
          %442 = vst [vmem:[#allocation2 + $0x3b0] sm:$0xff] 0.0
          %443 = vst [vmem:[#allocation2 + $0x3b8] sm:$0xff] 0.0
          %444 = vst [vmem:[#allocation2 + $0x3c0] sm:$0xff] 0.0
          %445 = vst [vmem:[#allocation2 + $0x3c8] sm:$0xff] 0.0
          %446 = vst [vmem:[#allocation2 + $0x3d0] sm:$0xff] 0.0
          %447 = vst [vmem:[#allocation2 + $0x3d8] sm:$0xff] 0.0
          %448 = vst [vmem:[#allocation2 + $0x3e0] sm:$0xff] 0.0
          %449 = vst [vmem:[#allocation2 + $0x3e8] sm:$0xff] 0.0
          %450 = vst [vmem:[#allocation2 + $0x3f0] sm:$0xff] 0.0
          %451 = vst [vmem:[#allocation2 + $0x3f8] sm:$0xff] 0.0
        $region40: #{tpu_custom_call.1} parent=35 // pred_fallthru
          _
        %v452 = vld [vmem:[%s297] sm:$0xf]
        %v453 = vld [vmem:[%s297 + $0x4] sm:$0xf]
        %v454 = vld [vmem:[%s297 + $0x8] sm:$0xf]
        %v455 = vld [vmem:[%s297 + $0xc] sm:$0xf]
        %v456 = vld [vmem:[%s297 + $0x10] sm:$0xf]
        %v457 = vld [vmem:[%s297 + $0x14] sm:$0xf]
        %v458 = vld [vmem:[%s297 + $0x18] sm:$0xf]
        %v459 = vld [vmem:[%s297 + $0x1c] sm:$0xf]
        %v460 = vld [vmem:[%s297 + $0x20] sm:$0xf]
        %v461 = vld [vmem:[%s297 + $0x24] sm:$0xf]
        %v462 = vld [vmem:[%s297 + $0x28] sm:$0xf]
        %v463 = vld [vmem:[%s297 + $0x2c] sm:$0xf]
        %v464 = vld [vmem:[%s297 + $0x30] sm:$0xf]
        %v465 = vld [vmem:[%s297 + $0x34] sm:$0xf]
        %v466 = vld [vmem:[%s297 + $0x38] sm:$0xf]
        %v467 = vld [vmem:[%s297 + $0x3c] sm:$0xf]
        %v468 = vld [vmem:[%s297 + $0x40] sm:$0xf]
        %v469 = vld [vmem:[%s297 + $0x44] sm:$0xf]
        %v470 = vld [vmem:[%s297 + $0x48] sm:$0xf]
        %v471 = vld [vmem:[%s297 + $0x4c] sm:$0xf]
        %v472 = vld [vmem:[%s297 + $0x50] sm:$0xf]
        %v473 = vld [vmem:[%s297 + $0x54] sm:$0xf]
        %v474 = vld [vmem:[%s297 + $0x58] sm:$0xf]
        %v475 = vld [vmem:[%s297 + $0x5c] sm:$0xf]
        %v476 = vld [vmem:[%s297 + $0x60] sm:$0xf]
        %v477 = vld [vmem:[%s297 + $0x64] sm:$0xf]
        %v478 = vld [vmem:[%s297 + $0x68] sm:$0xf]
        %v479 = vld [vmem:[%s297 + $0x6c] sm:$0xf]
        %v480 = vld [vmem:[%s297 + $0x70] sm:$0xf]
        %v481 = vld [vmem:[%s297 + $0x74] sm:$0xf]
        %v482 = vld [vmem:[%s297 + $0x78] sm:$0xf]
        %v483 = vld [vmem:[%s297 + $0x7c] sm:$0xf]
        %v484 = vld [vmem:[%s297 + $0x80] sm:$0xf]
        %v485 = vld [vmem:[%s297 + $0x84] sm:$0xf]
        %v486 = vld [vmem:[%s297 + $0x88] sm:$0xf]
        %v487 = vld [vmem:[%s297 + $0x8c] sm:$0xf]
        %v488 = vld [vmem:[%s297 + $0x90] sm:$0xf]
        %v489 = vld [vmem:[%s297 + $0x94] sm:$0xf]
        %v490 = vld [vmem:[%s297 + $0x98] sm:$0xf]
        %v491 = vld [vmem:[%s297 + $0x9c] sm:$0xf]
        %v492 = vld [vmem:[%s297 + $0xa0] sm:$0xf]
        %v493 = vld [vmem:[%s297 + $0xa4] sm:$0xf]
        %v494 = vld [vmem:[%s297 + $0xa8] sm:$0xf]
        %v495 = vld [vmem:[%s297 + $0xac] sm:$0xf]
        %v496 = vld [vmem:[%s297 + $0xb0] sm:$0xf]
        %v497 = vld [vmem:[%s297 + $0xb4] sm:$0xf]
        %v498 = vld [vmem:[%s297 + $0xb8] sm:$0xf]
        %v499 = vld [vmem:[%s297 + $0xbc] sm:$0xf]
        %v500 = vld [vmem:[%s297 + $0xc0] sm:$0xf]
        %v501 = vld [vmem:[%s297 + $0xc4] sm:$0xf]
        %v502 = vld [vmem:[%s297 + $0xc8] sm:$0xf]
        %v503 = vld [vmem:[%s297 + $0xcc] sm:$0xf]
        %v504 = vld [vmem:[%s297 + $0xd0] sm:$0xf]
        %v505 = vld [vmem:[%s297 + $0xd4] sm:$0xf]
        %v506 = vld [vmem:[%s297 + $0xd8] sm:$0xf]
        %v507 = vld [vmem:[%s297 + $0xdc] sm:$0xf]
        %v508 = vld [vmem:[%s297 + $0xe0] sm:$0xf]
        %v509 = vld [vmem:[%s297 + $0xe4] sm:$0xf]
        %v510 = vld [vmem:[%s297 + $0xe8] sm:$0xf]
        %v511 = vld [vmem:[%s297 + $0xec] sm:$0xf]
        %v512 = vld [vmem:[%s297 + $0xf0] sm:$0xf]
        %v513 = vld [vmem:[%s297 + $0xf4] sm:$0xf]
        %v514 = vld [vmem:[%s297 + $0xf8] sm:$0xf]
        %v515 = vld [vmem:[%s297 + $0xfc] sm:$0xf]
        %v516 = vld [vmem:[%s297 + $0x100] sm:$0xf]
        %v517 = vld [vmem:[%s297 + $0x104] sm:$0xf]
        %v518 = vld [vmem:[%s297 + $0x108] sm:$0xf]
        %v519 = vld [vmem:[%s297 + $0x10c] sm:$0xf]
        %v520 = vld [vmem:[%s297 + $0x110] sm:$0xf]
        %v521 = vld [vmem:[%s297 + $0x114] sm:$0xf]
        %v522 = vld [vmem:[%s297 + $0x118] sm:$0xf]
        %v523 = vld [vmem:[%s297 + $0x11c] sm:$0xf]
        %v524 = vld [vmem:[%s297 + $0x120] sm:$0xf]
        %v525 = vld [vmem:[%s297 + $0x124] sm:$0xf]
        %v526 = vld [vmem:[%s297 + $0x128] sm:$0xf]
        %v527 = vld [vmem:[%s297 + $0x12c] sm:$0xf]
        %v528 = vld [vmem:[%s297 + $0x130] sm:$0xf]
        %v529 = vld [vmem:[%s297 + $0x134] sm:$0xf]
        %v530 = vld [vmem:[%s297 + $0x138] sm:$0xf]
        %v531 = vld [vmem:[%s297 + $0x13c] sm:$0xf]
        %v532 = vld [vmem:[%s297 + $0x140] sm:$0xf]
        %v533 = vld [vmem:[%s297 + $0x144] sm:$0xf]
        %v534 = vld [vmem:[%s297 + $0x148] sm:$0xf]
        %v535 = vld [vmem:[%s297 + $0x14c] sm:$0xf]
        %v536 = vld [vmem:[%s297 + $0x150] sm:$0xf]
        %v537 = vld [vmem:[%s297 + $0x154] sm:$0xf]
        %v538 = vld [vmem:[%s297 + $0x158] sm:$0xf]
        %v539 = vld [vmem:[%s297 + $0x15c] sm:$0xf]
        %v540 = vld [vmem:[%s297 + $0x160] sm:$0xf]
        %v541 = vld [vmem:[%s297 + $0x164] sm:$0xf]
        %v542 = vld [vmem:[%s297 + $0x168] sm:$0xf]
        %v543 = vld [vmem:[%s297 + $0x16c] sm:$0xf]
        %v544 = vld [vmem:[%s297 + $0x170] sm:$0xf]
        %v545 = vld [vmem:[%s297 + $0x174] sm:$0xf]
        %v546 = vld [vmem:[%s297 + $0x178] sm:$0xf]
        %v547 = vld [vmem:[%s297 + $0x17c] sm:$0xf]
        %v548 = vld [vmem:[%s297 + $0x180] sm:$0xf]
        %v549 = vld [vmem:[%s297 + $0x184] sm:$0xf]
        %v550 = vld [vmem:[%s297 + $0x188] sm:$0xf]
        %v551 = vld [vmem:[%s297 + $0x18c] sm:$0xf]
        %v552 = vld [vmem:[%s297 + $0x190] sm:$0xf]
        %v553 = vld [vmem:[%s297 + $0x194] sm:$0xf]
        %v554 = vld [vmem:[%s297 + $0x198] sm:$0xf]
        %v555 = vld [vmem:[%s297 + $0x19c] sm:$0xf]
        %v556 = vld [vmem:[%s297 + $0x1a0] sm:$0xf]
        %v557 = vld [vmem:[%s297 + $0x1a4] sm:$0xf]
        %v558 = vld [vmem:[%s297 + $0x1a8] sm:$0xf]
        %v559 = vld [vmem:[%s297 + $0x1ac] sm:$0xf]
        %v560 = vld [vmem:[%s297 + $0x1b0] sm:$0xf]
        %v561 = vld [vmem:[%s297 + $0x1b4] sm:$0xf]
        %v562 = vld [vmem:[%s297 + $0x1b8] sm:$0xf]
        %v563 = vld [vmem:[%s297 + $0x1bc] sm:$0xf]
        %v564 = vld [vmem:[%s297 + $0x1c0] sm:$0xf]
        %v565 = vld [vmem:[%s297 + $0x1c4] sm:$0xf]
        %v566 = vld [vmem:[%s297 + $0x1c8] sm:$0xf]
        %v567 = vld [vmem:[%s297 + $0x1cc] sm:$0xf]
        %v568 = vld [vmem:[%s297 + $0x1d0] sm:$0xf]
        %v569 = vld [vmem:[%s297 + $0x1d4] sm:$0xf]
        %v570 = vld [vmem:[%s297 + $0x1d8] sm:$0xf]
        %v571 = vld [vmem:[%s297 + $0x1dc] sm:$0xf]
        %v572 = vld [vmem:[%s297 + $0x1e0] sm:$0xf]
        %v573 = vld [vmem:[%s297 + $0x1e4] sm:$0xf]
        %v574 = vld [vmem:[%s297 + $0x1e8] sm:$0xf]
        %v575 = vld [vmem:[%s297 + $0x1ec] sm:$0xf]
        %v576 = vld [vmem:[%s297 + $0x1f0] sm:$0xf]
        %v577 = vld [vmem:[%s297 + $0x1f4] sm:$0xf]
        %v578 = vld [vmem:[%s297 + $0x1f8] sm:$0xf]
        %v579 = vld [vmem:[%s297 + $0x1fc] sm:$0xf]
        %v580 = vld [vmem:[#allocation2] sm:$0xff]
        %v581 = vld [vmem:[#allocation2 + $0x8] sm:$0xff]
        %v582 = vld [vmem:[#allocation2 + $0x10] sm:$0xff]
        %v583 = vld [vmem:[#allocation2 + $0x18] sm:$0xff]
        %v584 = vld [vmem:[#allocation2 + $0x20] sm:$0xff]
        %v585 = vld [vmem:[#allocation2 + $0x28] sm:$0xff]
        %v586 = vld [vmem:[#allocation2 + $0x30] sm:$0xff]
        %v587 = vld [vmem:[#allocation2 + $0x38] sm:$0xff]
        %v588 = vld [vmem:[#allocation2 + $0x40] sm:$0xff]
        %v589 = vld [vmem:[#allocation2 + $0x48] sm:$0xff]
        %v590 = vld [vmem:[#allocation2 + $0x50] sm:$0xff]
        %v591 = vld [vmem:[#allocation2 + $0x58] sm:$0xff]
        %v592 = vld [vmem:[#allocation2 + $0x60] sm:$0xff]
        %v593 = vld [vmem:[#allocation2 + $0x68] sm:$0xff]
        %v594 = vld [vmem:[#allocation2 + $0x70] sm:$0xff]
        %v595 = vld [vmem:[#allocation2 + $0x78] sm:$0xff]
        %v596 = vld [vmem:[#allocation2 + $0x80] sm:$0xff]
        %v597 = vld [vmem:[#allocation2 + $0x88] sm:$0xff]
        %v598 = vld [vmem:[#allocation2 + $0x90] sm:$0xff]
        %v599 = vld [vmem:[#allocation2 + $0x98] sm:$0xff]
        %v600 = vld [vmem:[#allocation2 + $0xa0] sm:$0xff]
        %v601 = vld [vmem:[#allocation2 + $0xa8] sm:$0xff]
        %v602 = vld [vmem:[#allocation2 + $0xb0] sm:$0xff]
        %v603 = vld [vmem:[#allocation2 + $0xb8] sm:$0xff]
        %v604 = vld [vmem:[#allocation2 + $0xc0] sm:$0xff]
        %v605 = vld [vmem:[#allocation2 + $0xc8] sm:$0xff]
        %v606 = vld [vmem:[#allocation2 + $0xd0] sm:$0xff]
        %v607 = vld [vmem:[#allocation2 + $0xd8] sm:$0xff]
        %v608 = vld [vmem:[#allocation2 + $0xe0] sm:$0xff]
        %v609 = vld [vmem:[#allocation2 + $0xe8] sm:$0xff]
        %v610 = vld [vmem:[#allocation2 + $0xf0] sm:$0xff]
        %v611 = vld [vmem:[#allocation2 + $0xf8] sm:$0xff]
        %v612 = vld [vmem:[#allocation2 + $0x100] sm:$0xff]
        %v613 = vld [vmem:[#allocation2 + $0x108] sm:$0xff]
        %v614 = vld [vmem:[#allocation2 + $0x110] sm:$0xff]
        %v615 = vld [vmem:[#allocation2 + $0x118] sm:$0xff]
        %v616 = vld [vmem:[#allocation2 + $0x120] sm:$0xff]
        %v617 = vld [vmem:[#allocation2 + $0x128] sm:$0xff]
        %v618 = vld [vmem:[#allocation2 + $0x130] sm:$0xff]
        %v619 = vld [vmem:[#allocation2 + $0x138] sm:$0xff]
        %v620 = vld [vmem:[#allocation2 + $0x140] sm:$0xff]
        %v621 = vld [vmem:[#allocation2 + $0x148] sm:$0xff]
        %v622 = vld [vmem:[#allocation2 + $0x150] sm:$0xff]
        %v623 = vld [vmem:[#allocation2 + $0x158] sm:$0xff]
        %v624 = vld [vmem:[#allocation2 + $0x160] sm:$0xff]
        %v625 = vld [vmem:[#allocation2 + $0x168] sm:$0xff]
        %v626 = vld [vmem:[#allocation2 + $0x170] sm:$0xff]
        %v627 = vld [vmem:[#allocation2 + $0x178] sm:$0xff]
        %v628 = vld [vmem:[#allocation2 + $0x180] sm:$0xff]
        %v629 = vld [vmem:[#allocation2 + $0x188] sm:$0xff]
        %v630 = vld [vmem:[#allocation2 + $0x190] sm:$0xff]
        %v631 = vld [vmem:[#allocation2 + $0x198] sm:$0xff]
        %v632 = vld [vmem:[#allocation2 + $0x1a0] sm:$0xff]
        %v633 = vld [vmem:[#allocation2 + $0x1a8] sm:$0xff]
        %v634 = vld [vmem:[#allocation2 + $0x1b0] sm:$0xff]
        %v635 = vld [vmem:[#allocation2 + $0x1b8] sm:$0xff]
        %v636 = vld [vmem:[#allocation2 + $0x1c0] sm:$0xff]
        %v637 = vld [vmem:[#allocation2 + $0x1c8] sm:$0xff]
        %v638 = vld [vmem:[#allocation2 + $0x1d0] sm:$0xff]
        %v639 = vld [vmem:[#allocation2 + $0x1d8] sm:$0xff]
        %v640 = vld [vmem:[#allocation2 + $0x1e0] sm:$0xff]
        %v641 = vld [vmem:[#allocation2 + $0x1e8] sm:$0xff]
        %v642 = vld [vmem:[#allocation2 + $0x1f0] sm:$0xff]
        %v643 = vld [vmem:[#allocation2 + $0x1f8] sm:$0xff]
        %v644 = vld [vmem:[#allocation2 + $0x200] sm:$0xff]
        %v645 = vld [vmem:[#allocation2 + $0x208] sm:$0xff]
        %v646 = vld [vmem:[#allocation2 + $0x210] sm:$0xff]
        %v647 = vld [vmem:[#allocation2 + $0x218] sm:$0xff]
        %v648 = vld [vmem:[#allocation2 + $0x220] sm:$0xff]
        %v649 = vld [vmem:[#allocation2 + $0x228] sm:$0xff]
        %v650 = vld [vmem:[#allocation2 + $0x230] sm:$0xff]
        %v651 = vld [vmem:[#allocation2 + $0x238] sm:$0xff]
        %v652 = vld [vmem:[#allocation2 + $0x240] sm:$0xff]
        %v653 = vld [vmem:[#allocation2 + $0x248] sm:$0xff]
        %v654 = vld [vmem:[#allocation2 + $0x250] sm:$0xff]
        %v655 = vld [vmem:[#allocation2 + $0x258] sm:$0xff]
        %v656 = vld [vmem:[#allocation2 + $0x260] sm:$0xff]
        %v657 = vld [vmem:[#allocation2 + $0x268] sm:$0xff]
        %v658 = vld [vmem:[#allocation2 + $0x270] sm:$0xff]
        %v659 = vld [vmem:[#allocation2 + $0x278] sm:$0xff]
        %v660 = vld [vmem:[#allocation2 + $0x280] sm:$0xff]
        %v661 = vld [vmem:[#allocation2 + $0x288] sm:$0xff]
        %v662 = vld [vmem:[#allocation2 + $0x290] sm:$0xff]
        %v663 = vld [vmem:[#allocation2 + $0x298] sm:$0xff]
        %v664 = vld [vmem:[#allocation2 + $0x2a0] sm:$0xff]
        %v665 = vld [vmem:[#allocation2 + $0x2a8] sm:$0xff]
        %v666 = vld [vmem:[#allocation2 + $0x2b0] sm:$0xff]
        %v667 = vld [vmem:[#allocation2 + $0x2b8] sm:$0xff]
        %v668 = vld [vmem:[#allocation2 + $0x2c0] sm:$0xff]
        %v669 = vld [vmem:[#allocation2 + $0x2c8] sm:$0xff]
        %v670 = vld [vmem:[#allocation2 + $0x2d0] sm:$0xff]
        %v671 = vld [vmem:[#allocation2 + $0x2d8] sm:$0xff]
        %v672 = vld [vmem:[#allocation2 + $0x2e0] sm:$0xff]
        %v673 = vld [vmem:[#allocation2 + $0x2e8] sm:$0xff]
        %v674 = vld [vmem:[#allocation2 + $0x2f0] sm:$0xff]
        %v675 = vld [vmem:[#allocation2 + $0x2f8] sm:$0xff]
        %v676 = vld [vmem:[#allocation2 + $0x300] sm:$0xff]
        %v677 = vld [vmem:[#allocation2 + $0x308] sm:$0xff]
        %v678 = vld [vmem:[#allocation2 + $0x310] sm:$0xff]
        %v679 = vld [vmem:[#allocation2 + $0x318] sm:$0xff]
        %v680 = vld [vmem:[#allocation2 + $0x320] sm:$0xff]
        %v681 = vld [vmem:[#allocation2 + $0x328] sm:$0xff]
        %v682 = vld [vmem:[#allocation2 + $0x330] sm:$0xff]
        %v683 = vld [vmem:[#allocation2 + $0x338] sm:$0xff]
        %v684 = vld [vmem:[#allocation2 + $0x340] sm:$0xff]
        %v685 = vld [vmem:[#allocation2 + $0x348] sm:$0xff]
        %v686 = vld [vmem:[#allocation2 + $0x350] sm:$0xff]
        %v687 = vld [vmem:[#allocation2 + $0x358] sm:$0xff]
        %v688 = vld [vmem:[#allocation2 + $0x360] sm:$0xff]
        %v689 = vld [vmem:[#allocation2 + $0x368] sm:$0xff]
        %v690 = vld [vmem:[#allocation2 + $0x370] sm:$0xff]
        %v691 = vld [vmem:[#allocation2 + $0x378] sm:$0xff]
        %v692 = vld [vmem:[#allocation2 + $0x380] sm:$0xff]
        %v693 = vld [vmem:[#allocation2 + $0x388] sm:$0xff]
        %v694 = vld [vmem:[#allocation2 + $0x390] sm:$0xff]
        %v695 = vld [vmem:[#allocation2 + $0x398] sm:$0xff]
        %v696 = vld [vmem:[#allocation2 + $0x3a0] sm:$0xff]
        %v697 = vld [vmem:[#allocation2 + $0x3a8] sm:$0xff]
        %v698 = vld [vmem:[#allocation2 + $0x3b0] sm:$0xff]
        %v699 = vld [vmem:[#allocation2 + $0x3b8] sm:$0xff]
        %v700 = vld [vmem:[#allocation2 + $0x3c0] sm:$0xff]
        %v701 = vld [vmem:[#allocation2 + $0x3c8] sm:$0xff]
        %v702 = vld [vmem:[#allocation2 + $0x3d0] sm:$0xff]
        %v703 = vld [vmem:[#allocation2 + $0x3d8] sm:$0xff]
        %v704 = vld [vmem:[#allocation2 + $0x3e0] sm:$0xff]
        %v705 = vld [vmem:[#allocation2 + $0x3e8] sm:$0xff]
        %v706 = vld [vmem:[#allocation2 + $0x3f0] sm:$0xff]
        %v707 = vld [vmem:[#allocation2 + $0x3f8] sm:$0xff]
        %v708 = vld [vmem:[%s308] sm:$0xf]
        %v709 = vld [vmem:[%s308 + $0x4] sm:$0xf]
        %v710 = vld [vmem:[%s308 + $0x8] sm:$0xf]
        %v711 = vld [vmem:[%s308 + $0xc] sm:$0xf]
        %v840 = vunpack.c.l.b16 %v452
        %v841 = vunpack.c.l.b16 %v453
        %v842 = vunpack.c.l.b16 %v454
        %v843 = vunpack.c.l.b16 %v455
        %v844 = vunpack.c.l.b16 %v456
        %v845 = vunpack.c.l.b16 %v457
        %v846 = vunpack.c.l.b16 %v458
        %v847 = vunpack.c.l.b16 %v459
        %v848 = vunpack.c.l.b16 %v460
        %v849 = vunpack.c.l.b16 %v461
        %v850 = vunpack.c.l.b16 %v462
        %v851 = vunpack.c.l.b16 %v463
        %v852 = vunpack.c.l.b16 %v464
        %v853 = vunpack.c.l.b16 %v465
        %v854 = vunpack.c.l.b16 %v466
        %v855 = vunpack.c.l.b16 %v467
        %v856 = vunpack.c.l.b16 %v468
        %v857 = vunpack.c.l.b16 %v469
        %v858 = vunpack.c.l.b16 %v470
        %v859 = vunpack.c.l.b16 %v471
        %v860 = vunpack.c.l.b16 %v472
        %v861 = vunpack.c.l.b16 %v473
        %v862 = vunpack.c.l.b16 %v474
        %v863 = vunpack.c.l.b16 %v475
        %v864 = vunpack.c.l.b16 %v476
        %v865 = vunpack.c.l.b16 %v477
        %v866 = vunpack.c.l.b16 %v478
        %v867 = vunpack.c.l.b16 %v479
        %v868 = vunpack.c.l.b16 %v480
        %v869 = vunpack.c.l.b16 %v481
        %v870 = vunpack.c.l.b16 %v482
        %v871 = vunpack.c.l.b16 %v483
        %v872 = vunpack.c.l.b16 %v484
        %v873 = vunpack.c.l.b16 %v485
        %v874 = vunpack.c.l.b16 %v486
        %v875 = vunpack.c.l.b16 %v487
        %v876 = vunpack.c.l.b16 %v488
        %v877 = vunpack.c.l.b16 %v489
        %v878 = vunpack.c.l.b16 %v490
        %v879 = vunpack.c.l.b16 %v491
        %v880 = vunpack.c.l.b16 %v492
        %v881 = vunpack.c.l.b16 %v493
        %v882 = vunpack.c.l.b16 %v494
        %v883 = vunpack.c.l.b16 %v495
        %v884 = vunpack.c.l.b16 %v496
        %v885 = vunpack.c.l.b16 %v497
        %v886 = vunpack.c.l.b16 %v498
        %v887 = vunpack.c.l.b16 %v499
        %v888 = vunpack.c.l.b16 %v500
        %v889 = vunpack.c.l.b16 %v501
        %v890 = vunpack.c.l.b16 %v502
        %v891 = vunpack.c.l.b16 %v503
        %v892 = vunpack.c.l.b16 %v504
        %v893 = vunpack.c.l.b16 %v505
        %v894 = vunpack.c.l.b16 %v506
        %v895 = vunpack.c.l.b16 %v507
        %v896 = vunpack.c.l.b16 %v508
        %v897 = vunpack.c.l.b16 %v509
        %v898 = vunpack.c.l.b16 %v510
        %v899 = vunpack.c.l.b16 %v511
        %v900 = vunpack.c.l.b16 %v512
        %v901 = vunpack.c.l.b16 %v513
        %v902 = vunpack.c.l.b16 %v514
        %v903 = vunpack.c.l.b16 %v515
        %v904 = vunpack.c.l.b16 %v516
        %v905 = vunpack.c.l.b16 %v517
        %v906 = vunpack.c.l.b16 %v518
        %v907 = vunpack.c.l.b16 %v519
        %v908 = vunpack.c.l.b16 %v520
        %v909 = vunpack.c.l.b16 %v521
        %v910 = vunpack.c.l.b16 %v522
        %v911 = vunpack.c.l.b16 %v523
        %v912 = vunpack.c.l.b16 %v524
        %v913 = vunpack.c.l.b16 %v525
        %v914 = vunpack.c.l.b16 %v526
        %v915 = vunpack.c.l.b16 %v527
        %v916 = vunpack.c.l.b16 %v528
        %v917 = vunpack.c.l.b16 %v529
        %v918 = vunpack.c.l.b16 %v530
        %v919 = vunpack.c.l.b16 %v531
        %v920 = vunpack.c.l.b16 %v532
        %v921 = vunpack.c.l.b16 %v533
        %v922 = vunpack.c.l.b16 %v534
        %v923 = vunpack.c.l.b16 %v535
        %v924 = vunpack.c.l.b16 %v536
        %v925 = vunpack.c.l.b16 %v537
        %v926 = vunpack.c.l.b16 %v538
        %v927 = vunpack.c.l.b16 %v539
        %v928 = vunpack.c.l.b16 %v540
        %v929 = vunpack.c.l.b16 %v541
        %v930 = vunpack.c.l.b16 %v542
        %v931 = vunpack.c.l.b16 %v543
        %v932 = vunpack.c.l.b16 %v544
        %v933 = vunpack.c.l.b16 %v545
        %v934 = vunpack.c.l.b16 %v546
        %v935 = vunpack.c.l.b16 %v547
        %v936 = vunpack.c.l.b16 %v548
        %v937 = vunpack.c.l.b16 %v549
        %v938 = vunpack.c.l.b16 %v550
        %v939 = vunpack.c.l.b16 %v551
        %v940 = vunpack.c.l.b16 %v552
        %v941 = vunpack.c.l.b16 %v553
        %v942 = vunpack.c.l.b16 %v554
        %v943 = vunpack.c.l.b16 %v555
        %v944 = vunpack.c.l.b16 %v556
        %v945 = vunpack.c.l.b16 %v557
        %v946 = vunpack.c.l.b16 %v558
        %v947 = vunpack.c.l.b16 %v559
        %v948 = vunpack.c.l.b16 %v560
        %v949 = vunpack.c.l.b16 %v561
        %v950 = vunpack.c.l.b16 %v562
        %v951 = vunpack.c.l.b16 %v563
        %v952 = vunpack.c.l.b16 %v564
        %v953 = vunpack.c.l.b16 %v565
        %v954 = vunpack.c.l.b16 %v566
        %v955 = vunpack.c.l.b16 %v567
        %v956 = vunpack.c.l.b16 %v568
        %v957 = vunpack.c.l.b16 %v569
        %v958 = vunpack.c.l.b16 %v570
        %v959 = vunpack.c.l.b16 %v571
        %v960 = vunpack.c.l.b16 %v572
        %v961 = vunpack.c.l.b16 %v573
        %v962 = vunpack.c.l.b16 %v574
        %v963 = vunpack.c.l.b16 %v575
        %v964 = vunpack.c.l.b16 %v576
        %v965 = vunpack.c.l.b16 %v577
        %v966 = vunpack.c.l.b16 %v578
        %v967 = vunpack.c.l.b16 %v579
        %v968 = vpack.c.b16 %v841, %v840
        %v969 = vpack.c.b16 %v843, %v842
        %v970 = vpack.c.b16 %v845, %v844
        %v971 = vpack.c.b16 %v847, %v846
        %v972 = vpack.c.b16 %v849, %v848
        %v973 = vpack.c.b16 %v851, %v850
        %v974 = vpack.c.b16 %v853, %v852
        %v975 = vpack.c.b16 %v855, %v854
        %v976 = vpack.c.b16 %v857, %v856
        %v977 = vpack.c.b16 %v859, %v858
        %v978 = vpack.c.b16 %v861, %v860
        %v979 = vpack.c.b16 %v863, %v862
        %v980 = vpack.c.b16 %v865, %v864
        %v981 = vpack.c.b16 %v867, %v866
        %v982 = vpack.c.b16 %v869, %v868
        %v983 = vpack.c.b16 %v871, %v870
        %v984 = vpack.c.b16 %v873, %v872
        %v985 = vpack.c.b16 %v875, %v874
        %v986 = vpack.c.b16 %v877, %v876
        %v987 = vpack.c.b16 %v879, %v878
        %v988 = vpack.c.b16 %v881, %v880
        %v989 = vpack.c.b16 %v883, %v882
        %v990 = vpack.c.b16 %v885, %v884
        %v991 = vpack.c.b16 %v887, %v886
        %v992 = vpack.c.b16 %v889, %v888
        %v993 = vpack.c.b16 %v891, %v890
        %v994 = vpack.c.b16 %v893, %v892
        %v995 = vpack.c.b16 %v895, %v894
        %v996 = vpack.c.b16 %v897, %v896
        %v997 = vpack.c.b16 %v899, %v898
        %v998 = vpack.c.b16 %v901, %v900
        %v999 = vpack.c.b16 %v903, %v902
        %v1000 = vpack.c.b16 %v905, %v904
        %v1001 = vpack.c.b16 %v907, %v906
        %v1002 = vpack.c.b16 %v909, %v908
        %v1003 = vpack.c.b16 %v911, %v910
        %v1004 = vpack.c.b16 %v913, %v912
        %v1005 = vpack.c.b16 %v915, %v914
        %v1006 = vpack.c.b16 %v917, %v916
        %v1007 = vpack.c.b16 %v919, %v918
        %v1008 = vpack.c.b16 %v921, %v920
        %v1009 = vpack.c.b16 %v923, %v922
        %v1010 = vpack.c.b16 %v925, %v924
        %v1011 = vpack.c.b16 %v927, %v926
        %v1012 = vpack.c.b16 %v929, %v928
        %v1013 = vpack.c.b16 %v931, %v930
        %v1014 = vpack.c.b16 %v933, %v932
        %v1015 = vpack.c.b16 %v935, %v934
        %v1016 = vpack.c.b16 %v937, %v936
        %v1017 = vpack.c.b16 %v939, %v938
        %v1018 = vpack.c.b16 %v941, %v940
        %v1019 = vpack.c.b16 %v943, %v942
        %v1020 = vpack.c.b16 %v945, %v944
        %v1021 = vpack.c.b16 %v947, %v946
        %v1022 = vpack.c.b16 %v949, %v948
        %v1023 = vpack.c.b16 %v951, %v950
        %v1024 = vpack.c.b16 %v953, %v952
        %v1025 = vpack.c.b16 %v955, %v954
        %v1026 = vpack.c.b16 %v957, %v956
        %v1027 = vpack.c.b16 %v959, %v958
        %v1028 = vpack.c.b16 %v961, %v960
        %v1029 = vpack.c.b16 %v963, %v962
        %v1030 = vpack.c.b16 %v965, %v964
        %v1031 = vpack.c.b16 %v967, %v966
        %v1036 = vunpack.c.l.b16 %v708
        %v1037 = vunpack.c.l.b16 %v709
        %v1038 = vunpack.c.l.b16 %v710
        %v1039 = vunpack.c.l.b16 %v711
        %v1040 = vpack.c.b16 %v1037, %v1036
        %v1041 = vpack.c.b16 %v1039, %v1038
        %vm1044 = vcmask 261120
        %v1046 = vsel %vm1044, %v968, 0
        %v1049 = vsel %vm1044, %v969, 0
        %v1052 = vsel %vm1044, %v970, 0
        %v1055 = vsel %vm1044, %v971, 0
        %v1058 = vsel %vm1044, %v972, 0
        %v1061 = vsel %vm1044, %v973, 0
        %v1064 = vsel %vm1044, %v974, 0
        %v1067 = vsel %vm1044, %v975, 0
        %v1070 = vsel %vm1044, %v976, 0
        %v1073 = vsel %vm1044, %v977, 0
        %v1076 = vsel %vm1044, %v978, 0
        %v1079 = vsel %vm1044, %v979, 0
        %v1082 = vsel %vm1044, %v980, 0
        %v1085 = vsel %vm1044, %v981, 0
        %v1088 = vsel %vm1044, %v982, 0
        %v1091 = vsel %vm1044, %v983, 0
        %v1094 = vsel %vm1044, %v984, 0
        %v1097 = vsel %vm1044, %v985, 0
        %v1100 = vsel %vm1044, %v986, 0
        %v1103 = vsel %vm1044, %v987, 0
        %v1106 = vsel %vm1044, %v988, 0
        %v1109 = vsel %vm1044, %v989, 0
        %v1112 = vsel %vm1044, %v990, 0
        %v1115 = vsel %vm1044, %v991, 0
        %v1118 = vsel %vm1044, %v992, 0
        %v1121 = vsel %vm1044, %v993, 0
        %v1124 = vsel %vm1044, %v994, 0
        %v1127 = vsel %vm1044, %v995, 0
        %v1130 = vsel %vm1044, %v996, 0
        %v1133 = vsel %vm1044, %v997, 0
        %v1136 = vsel %vm1044, %v998, 0
        %v1139 = vsel %vm1044, %v999, 0
        %v1142 = vsel %vm1044, %v1000, 0
        %v1145 = vsel %vm1044, %v1001, 0
        %v1148 = vsel %vm1044, %v1002, 0
        %v1151 = vsel %vm1044, %v1003, 0
        %v1154 = vsel %vm1044, %v1004, 0
        %v1157 = vsel %vm1044, %v1005, 0
        %v1160 = vsel %vm1044, %v1006, 0
        %v1163 = vsel %vm1044, %v1007, 0
        %v1166 = vsel %vm1044, %v1008, 0
        %v1169 = vsel %vm1044, %v1009, 0
        %v1172 = vsel %vm1044, %v1010, 0
        %v1175 = vsel %vm1044, %v1011, 0
        %v1178 = vsel %vm1044, %v1012, 0
        %v1181 = vsel %vm1044, %v1013, 0
        %v1184 = vsel %vm1044, %v1014, 0
        %v1187 = vsel %vm1044, %v1015, 0
        %v1190 = vsel %vm1044, %v1016, 0
        %v1193 = vsel %vm1044, %v1017, 0
        %v1196 = vsel %vm1044, %v1018, 0
        %v1199 = vsel %vm1044, %v1019, 0
        %v1202 = vsel %vm1044, %v1020, 0
        %v1205 = vsel %vm1044, %v1021, 0
        %v1208 = vsel %vm1044, %v1022, 0
        %v1211 = vsel %vm1044, %v1023, 0
        %v1214 = vsel %vm1044, %v1024, 0
        %v1217 = vsel %vm1044, %v1025, 0
        %v1220 = vsel %vm1044, %v1026, 0
        %v1223 = vsel %vm1044, %v1027, 0
        %v1226 = vsel %vm1044, %v1028, 0
        %v1229 = vsel %vm1044, %v1029, 0
        %v1232 = vsel %vm1044, %v1030, 0
        %v1235 = vsel %vm1044, %v1031, 0
        %1237 = vmatprep.subr.bf16.mxu0 0
        %1238 = vmatpush1.bf16.msra.mxu0 %v1040
        %1239 = vmatprep.subr.bf16.mxu0 0
        %1240 = vmatpush1.bf16.msra.mxu0 %v1041
        %1241 = vmatprep.subr.bf16.mxu0 0
        %1242 = vmatpush1.bf16.msra.mxu0 0
        %1243 = vmatprep.subr.bf16.mxu0 0
        %1244 = vmatpush1.bf16.msra.mxu0 0
        %1245 = vmatprep.subr.bf16.mxu0 0
        %1246 = vmatpush1.bf16.msra.mxu0 0
        %1247 = vmatprep.subr.bf16.mxu0 0
        %1248 = vmatpush1.bf16.msra.mxu0 0
        %1249 = vmatprep.subr.bf16.mxu0 0
        %1250 = vmatpush1.bf16.msra.mxu0 0
        %1251 = vmatprep.subr.bf16.mxu0 0
        %1252 = vmatpush1.bf16.msra.mxu0 0
        %1253 = vmatprep.subr.bf16.mxu0 0
        %1254 = vmatpush1.bf16.msra.mxu0 0
        %1255 = vmatprep.subr.bf16.mxu0 0
        %1256 = vmatpush1.bf16.msra.mxu0 0
        %1257 = vmatprep.subr.bf16.mxu0 0
        %1258 = vmatpush1.bf16.msra.mxu0 0
        %1259 = vmatprep.subr.bf16.mxu0 0
        %1260 = vmatpush1.bf16.msra.mxu0 0
        %1261 = vmatprep.subr.bf16.mxu0 0
        %1262 = vmatpush1.bf16.msra.mxu0 0
        %1263 = vmatprep.subr.bf16.mxu0 0
        %1264 = vmatpush1.bf16.msra.mxu0 0
        %1265 = vmatprep.subr.bf16.mxu0 0
        %1266 = vmatpush1.bf16.msra.mxu0 0
        %1267 = vmatprep.subr.bf16.mxu0 0
        %1268 = vmatpush1.bf16.msra.mxu0 0
        %1269 = vmatprep.mubr.bf16.mxu0 0
        %1270 = vmatmul.mubr.bf16.gmra.mrb[0].mxu0 %v1046
        %v1271 = vpop.f32.mrb[0].mxu0
        %v1272 = vadd.f32 0.0, %v1271
        %v1273 = vpop.f32.mrb[0].mxu0
        %v1274 = vpop.f32.mrb[0].mxu0
        %v1275 = vadd.f32 0.0, %v1274
        %v1276 = vpop.f32.mrb[0].mxu0
        %1277 = vmatprep.mubr.bf16.mxu0 0
        %1278 = vmatmul.mubr.bf16.gmra.mrb[0].mxu0 %v1049
        %v1279 = vpop.f32.mrb[0].mxu0
        %v1280 = vadd.f32 0.0, %v1279
        %v1281 = vpop.f32.mrb[0].mxu0
        %v1282 = vpop.f32.mrb[0].mxu0
        %v1283 = vadd.f32 0.0, %v1282
        %v1284 = vpop.f32.mrb[0].mxu0
        %1285 = vmatprep.mubr.bf16.mxu0 0
        %1286 = vmatmul.mubr.bf16.gmra.mrb[0].mxu0 %v1052
        %v1287 = vpop.f32.mrb[0].mxu0
        %v1288 = vadd.f32 0.0, %v1287
        %v1289 = vpop.f32.mrb[0].mxu0
        %v1290 = vpop.f32.mrb[0].mxu0
        %v1291 = vadd.f32 0.0, %v1290
        %v1292 = vpop.f32.mrb[0].mxu0
        %1293 = vmatprep.mubr.bf16.mxu0 0
        %1294 = vmatmul.mubr.bf16.gmra.mrb[0].mxu0 %v1055
        %v1295 = vpop.f32.mrb[0].mxu0
        %v1296 = vadd.f32 0.0, %v1295
        %v1297 = vpop.f32.mrb[0].mxu0
        %v1298 = vpop.f32.mrb[0].mxu0
        %v1299 = vadd.f32 0.0, %v1298
        %v1300 = vpop.f32.mrb[0].mxu0
        %1301 = vmatprep.mubr.bf16.mxu0 0
        %1302 = vmatmul.mubr.bf16.gmra.mrb[0].mxu0 %v1058
        %v1303 = vpop.f32.mrb[0].mxu0
        %v1304 = vadd.f32 0.0, %v1303
        %v1305 = vpop.f32.mrb[0].mxu0
        %v1306 = vpop.f32.mrb[0].mxu0
        %v1307 = vadd.f32 0.0, %v1306
        %v1308 = vpop.f32.mrb[0].mxu0
        %1309 = vmatprep.mubr.bf16.mxu0 0
        %1310 = vmatmul.mubr.bf16.gmra.mrb[0].mxu0 %v1061
        %v1311 = vpop.f32.mrb[0].mxu0
        %v1312 = vadd.f32 0.0, %v1311
        %v1313 = vpop.f32.mrb[0].mxu0
        %v1314 = vpop.f32.mrb[0].mxu0
        %v1315 = vadd.f32 0.0, %v1314
        %v1316 = vpop.f32.mrb[0].mxu0
        %1317 = vmatprep.mubr.bf16.mxu0 0
        %1318 = vmatmul.mubr.bf16.gmra.mrb[0].mxu0 %v1064
        %v1319 = vpop.f32.mrb[0].mxu0
        %v1320 = vadd.f32 0.0, %v1319
        %v1321 = vpop.f32.mrb[0].mxu0
        %v1322 = vpop.f32.mrb[0].mxu0
        %v1323 = vadd.f32 0.0, %v1322
        %v1324 = vpop.f32.mrb[0].mxu0
        %1325 = vmatprep.mubr.bf16.mxu0 0
        %1326 = vmatmul.mubr.bf16.gmra.mrb[0].mxu0 %v1067
        %v1327 = vpop.f32.mrb[0].mxu0
        %v1328 = vadd.f32 0.0, %v1327
        %v1329 = vpop.f32.mrb[0].mxu0
        %v1330 = vpop.f32.mrb[0].mxu0
        %v1331 = vadd.f32 0.0, %v1330
        %v1332 = vpop.f32.mrb[0].mxu0
        %1333 = vmatprep.mubr.bf16.mxu0 0
        %1334 = vmatmul.mubr.bf16.gmra.mrb[0].mxu0 %v1070
        %v1335 = vpop.f32.mrb[0].mxu0
        %v1336 = vadd.f32 0.0, %v1335
        %v1337 = vpop.f32.mrb[0].mxu0
        %v1338 = vpop.f32.mrb[0].mxu0
        %v1339 = vadd.f32 0.0, %v1338
        %v1340 = vpop.f32.mrb[0].mxu0
        %1341 = vmatprep.mubr.bf16.mxu0 0
        %1342 = vmatmul.mubr.bf16.gmra.mrb[0].mxu0 %v1073
        %v1343 = vpop.f32.mrb[0].mxu0
        %v1344 = vadd.f32 0.0, %v1343
        %v1345 = vpop.f32.mrb[0].mxu0
        %v1346 = vpop.f32.mrb[0].mxu0
        %v1347 = vadd.f32 0.0, %v1346
        %v1348 = vpop.f32.mrb[0].mxu0
        %1349 = vmatprep.mubr.bf16.mxu0 0
        %1350 = vmatmul.mubr.bf16.gmra.mrb[0].mxu0 %v1076
        %v1351 = vpop.f32.mrb[0].mxu0
        %v1352 = vadd.f32 0.0, %v1351
        %v1353 = vpop.f32.mrb[0].mxu0
        %v1354 = vpop.f32.mrb[0].mxu0
        %v1355 = vadd.f32 0.0, %v1354
        %v1356 = vpop.f32.mrb[0].mxu0
        %1357 = vmatprep.mubr.bf16.mxu0 0
        %1358 = vmatmul.mubr.bf16.gmra.mrb[0].mxu0 %v1079
        %v1359 = vpop.f32.mrb[0].mxu0
        %v1360 = vadd.f32 0.0, %v1359
        %v1361 = vpop.f32.mrb[0].mxu0
        %v1362 = vpop.f32.mrb[0].mxu0
        %v1363 = vadd.f32 0.0, %v1362
        %v1364 = vpop.f32.mrb[0].mxu0
        %1365 = vmatprep.mubr.bf16.mxu0 0
        %1366 = vmatmul.mubr.bf16.gmra.mrb[0].mxu0 %v1082
        %v1367 = vpop.f32.mrb[0].mxu0
        %v1368 = vadd.f32 0.0, %v1367
        %v1369 = vpop.f32.mrb[0].mxu0
        %v1370 = vpop.f32.mrb[0].mxu0
        %v1371 = vadd.f32 0.0, %v1370
        %v1372 = vpop.f32.mrb[0].mxu0
        %1373 = vmatprep.mubr.bf16.mxu0 0
        %1374 = vmatmul.mubr.bf16.gmra.mrb[0].mxu0 %v1085
        %v1375 = vpop.f32.mrb[0].mxu0
        %v1376 = vadd.f32 0.0, %v1375
        %v1377 = vpop.f32.mrb[0].mxu0
        %v1378 = vpop.f32.mrb[0].mxu0
        %v1379 = vadd.f32 0.0, %v1378
        %v1380 = vpop.f32.mrb[0].mxu0
        %1381 = vmatprep.mubr.bf16.mxu0 0
        %1382 = vmatmul.mubr.bf16.gmra.mrb[0].mxu0 %v1088
        %v1383 = vpop.f32.mrb[0].mxu0
        %v1384 = vadd.f32 0.0, %v1383
        %v1385 = vpop.f32.mrb[0].mxu0
        %v1386 = vpop.f32.mrb[0].mxu0
        %v1387 = vadd.f32 0.0, %v1386
        %v1388 = vpop.f32.mrb[0].mxu0
        %1389 = vmatprep.mubr.bf16.mxu0 0
        %1390 = vmatmul.mubr.bf16.gmra.mrb[0].mxu0 %v1091
        %v1391 = vpop.f32.mrb[0].mxu0
        %v1392 = vadd.f32 0.0, %v1391
        %v1393 = vpop.f32.mrb[0].mxu0
        %v1394 = vpop.f32.mrb[0].mxu0
        %v1395 = vadd.f32 0.0, %v1394
        %v1396 = vpop.f32.mrb[0].mxu0
        %1397 = vmatprep.mubr.bf16.mxu0 0
        %1398 = vmatmul.mubr.bf16.gmra.mrb[0].mxu0 %v1094
        %v1399 = vpop.f32.mrb[0].mxu0
        %v1400 = vadd.f32 0.0, %v1399
        %v1401 = vpop.f32.mrb[0].mxu0
        %v1402 = vpop.f32.mrb[0].mxu0
        %v1403 = vadd.f32 0.0, %v1402
        %v1404 = vpop.f32.mrb[0].mxu0
        %1405 = vmatprep.mubr.bf16.mxu0 0
        %1406 = vmatmul.mubr.bf16.gmra.mrb[0].mxu0 %v1097
        %v1407 = vpop.f32.mrb[0].mxu0
        %v1408 = vadd.f32 0.0, %v1407
        %v1409 = vpop.f32.mrb[0].mxu0
        %v1410 = vpop.f32.mrb[0].mxu0
        %v1411 = vadd.f32 0.0, %v1410
        %v1412 = vpop.f32.mrb[0].mxu0
        %1413 = vmatprep.mubr.bf16.mxu0 0
        %1414 = vmatmul.mubr.bf16.gmra.mrb[0].mxu0 %v1100
        %v1415 = vpop.f32.mrb[0].mxu0
        %v1416 = vadd.f32 0.0, %v1415
        %v1417 = vpop.f32.mrb[0].mxu0
        %v1418 = vpop.f32.mrb[0].mxu0
        %v1419 = vadd.f32 0.0, %v1418
        %v1420 = vpop.f32.mrb[0].mxu0
        %1421 = vmatprep.mubr.bf16.mxu0 0
        %1422 = vmatmul.mubr.bf16.gmra.mrb[0].mxu0 %v1103
        %v1423 = vpop.f32.mrb[0].mxu0
        %v1424 = vadd.f32 0.0, %v1423
        %v1425 = vpop.f32.mrb[0].mxu0
        %v1426 = vpop.f32.mrb[0].mxu0
        %v1427 = vadd.f32 0.0, %v1426
        %v1428 = vpop.f32.mrb[0].mxu0
        %1429 = vmatprep.mubr.bf16.mxu0 0
        %1430 = vmatmul.mubr.bf16.gmra.mrb[0].mxu0 %v1106
        %v1431 = vpop.f32.mrb[0].mxu0
        %v1432 = vadd.f32 0.0, %v1431
        %v1433 = vpop.f32.mrb[0].mxu0
        %v1434 = vpop.f32.mrb[0].mxu0
        %v1435 = vadd.f32 0.0, %v1434
        %v1436 = vpop.f32.mrb[0].mxu0
        %1437 = vmatprep.mubr.bf16.mxu0 0
        %1438 = vmatmul.mubr.bf16.gmra.mrb[0].mxu0 %v1109
        %v1439 = vpop.f32.mrb[0].mxu0
        %v1440 = vadd.f32 0.0, %v1439
        %v1441 = vpop.f32.mrb[0].mxu0
        %v1442 = vpop.f32.mrb[0].mxu0
        %v1443 = vadd.f32 0.0, %v1442
        %v1444 = vpop.f32.mrb[0].mxu0
        %1445 = vmatprep.mubr.bf16.mxu0 0
        %1446 = vmatmul.mubr.bf16.gmra.mrb[0].mxu0 %v1112
        %v1447 = vpop.f32.mrb[0].mxu0
        %v1448 = vadd.f32 0.0, %v1447
        %v1449 = vpop.f32.mrb[0].mxu0
        %v1450 = vpop.f32.mrb[0].mxu0
        %v1451 = vadd.f32 0.0, %v1450
        %v1452 = vpop.f32.mrb[0].mxu0
        %1453 = vmatprep.mubr.bf16.mxu0 0
        %1454 = vmatmul.mubr.bf16.gmra.mrb[0].mxu0 %v1115
        %v1455 = vpop.f32.mrb[0].mxu0
        %v1456 = vadd.f32 0.0, %v1455
        %v1457 = vpop.f32.mrb[0].mxu0
        %v1458 = vpop.f32.mrb[0].mxu0
        %v1459 = vadd.f32 0.0, %v1458
        %v1460 = vpop.f32.mrb[0].mxu0
        %1461 = vmatprep.mubr.bf16.mxu0 0
        %1462 = vmatmul.mubr.bf16.gmra.mrb[0].mxu0 %v1118
        %v1463 = vpop.f32.mrb[0].mxu0
        %v1464 = vadd.f32 0.0, %v1463
        %v1465 = vpop.f32.mrb[0].mxu0
        %v1466 = vpop.f32.mrb[0].mxu0
        %v1467 = vadd.f32 0.0, %v1466
        %v1468 = vpop.f32.mrb[0].mxu0
        %1469 = vmatprep.mubr.bf16.mxu0 0
        %1470 = vmatmul.mubr.bf16.gmra.mrb[0].mxu0 %v1121
        %v1471 = vpop.f32.mrb[0].mxu0
        %v1472 = vadd.f32 0.0, %v1471
        %v1473 = vpop.f32.mrb[0].mxu0
        %v1474 = vpop.f32.mrb[0].mxu0
        %v1475 = vadd.f32 0.0, %v1474
        %v1476 = vpop.f32.mrb[0].mxu0
        %1477 = vmatprep.mubr.bf16.mxu0 0
        %1478 = vmatmul.mubr.bf16.gmra.mrb[0].mxu0 %v1124
        %v1479 = vpop.f32.mrb[0].mxu0
        %v1480 = vadd.f32 0.0, %v1479
        %v1481 = vpop.f32.mrb[0].mxu0
        %v1482 = vpop.f32.mrb[0].mxu0
        %v1483 = vadd.f32 0.0, %v1482
        %v1484 = vpop.f32.mrb[0].mxu0
        %1485 = vmatprep.mubr.bf16.mxu0 0
        %1486 = vmatmul.mubr.bf16.gmra.mrb[0].mxu0 %v1127
        %v1487 = vpop.f32.mrb[0].mxu0
        %v1488 = vadd.f32 0.0, %v1487
        %v1489 = vpop.f32.mrb[0].mxu0
        %v1490 = vpop.f32.mrb[0].mxu0
        %v1491 = vadd.f32 0.0, %v1490
        %v1492 = vpop.f32.mrb[0].mxu0
        %1493 = vmatprep.mubr.bf16.mxu0 0
        %1494 = vmatmul.mubr.bf16.gmra.mrb[0].mxu0 %v1130
        %v1495 = vpop.f32.mrb[0].mxu0
        %v1496 = vadd.f32 0.0, %v1495
        %v1497 = vpop.f32.mrb[0].mxu0
        %v1498 = vpop.f32.mrb[0].mxu0
        %v1499 = vadd.f32 0.0, %v1498
        %v1500 = vpop.f32.mrb[0].mxu0
        %1501 = vmatprep.mubr.bf16.mxu0 0
        %1502 = vmatmul.mubr.bf16.gmra.mrb[0].mxu0 %v1133
        %v1503 = vpop.f32.mrb[0].mxu0
        %v1504 = vadd.f32 0.0, %v1503
        %v1505 = vpop.f32.mrb[0].mxu0
        %v1506 = vpop.f32.mrb[0].mxu0
        %v1507 = vadd.f32 0.0, %v1506
        %v1508 = vpop.f32.mrb[0].mxu0
        %1509 = vmatprep.mubr.bf16.mxu0 0
        %1510 = vmatmul.mubr.bf16.gmra.mrb[0].mxu0 %v1136
        %v1511 = vpop.f32.mrb[0].mxu0
        %v1512 = vadd.f32 0.0, %v1511
        %v1513 = vpop.f32.mrb[0].mxu0
        %v1514 = vpop.f32.mrb[0].mxu0
        %v1515 = vadd.f32 0.0, %v1514
        %v1516 = vpop.f32.mrb[0].mxu0
        %1517 = vmatprep.mubr.bf16.mxu0 0
        %1518 = vmatmul.mubr.bf16.gmra.mrb[0].mxu0 %v1139
        %v1519 = vpop.f32.mrb[0].mxu0
        %v1520 = vadd.f32 0.0, %v1519
        %v1521 = vpop.f32.mrb[0].mxu0
        %v1522 = vpop.f32.mrb[0].mxu0
        %v1523 = vadd.f32 0.0, %v1522
        %v1524 = vpop.f32.mrb[0].mxu0
        %1525 = vmatprep.mubr.bf16.mxu0 0
        %1526 = vmatmul.mubr.bf16.gmra.mrb[0].mxu0 %v1142
        %v1527 = vpop.f32.mrb[0].mxu0
        %v1528 = vadd.f32 0.0, %v1527
        %v1529 = vpop.f32.mrb[0].mxu0
        %v1530 = vpop.f32.mrb[0].mxu0
        %v1531 = vadd.f32 0.0, %v1530
        %v1532 = vpop.f32.mrb[0].mxu0
        %1533 = vmatprep.mubr.bf16.mxu0 0
        %1534 = vmatmul.mubr.bf16.gmra.mrb[0].mxu0 %v1145
        %v1535 = vpop.f32.mrb[0].mxu0
        %v1536 = vadd.f32 0.0, %v1535
        %v1537 = vpop.f32.mrb[0].mxu0
        %v1538 = vpop.f32.mrb[0].mxu0
        %v1539 = vadd.f32 0.0, %v1538
        %v1540 = vpop.f32.mrb[0].mxu0
        %1541 = vmatprep.mubr.bf16.mxu0 0
        %1542 = vmatmul.mubr.bf16.gmra.mrb[0].mxu0 %v1148
        %v1543 = vpop.f32.mrb[0].mxu0
        %v1544 = vadd.f32 0.0, %v1543
        %v1545 = vpop.f32.mrb[0].mxu0
        %v1546 = vpop.f32.mrb[0].mxu0
        %v1547 = vadd.f32 0.0, %v1546
        %v1548 = vpop.f32.mrb[0].mxu0
        %1549 = vmatprep.mubr.bf16.mxu0 0
        %1550 = vmatmul.mubr.bf16.gmra.mrb[0].mxu0 %v1151
        %v1551 = vpop.f32.mrb[0].mxu0
        %v1552 = vadd.f32 0.0, %v1551
        %v1553 = vpop.f32.mrb[0].mxu0
        %v1554 = vpop.f32.mrb[0].mxu0
        %v1555 = vadd.f32 0.0, %v1554
        %v1556 = vpop.f32.mrb[0].mxu0
        %1557 = vmatprep.mubr.bf16.mxu0 0
        %1558 = vmatmul.mubr.bf16.gmra.mrb[0].mxu0 %v1154
        %v1559 = vpop.f32.mrb[0].mxu0
        %v1560 = vadd.f32 0.0, %v1559
        %v1561 = vpop.f32.mrb[0].mxu0
        %v1562 = vpop.f32.mrb[0].mxu0
        %v1563 = vadd.f32 0.0, %v1562
        %v1564 = vpop.f32.mrb[0].mxu0
        %1565 = vmatprep.mubr.bf16.mxu0 0
        %1566 = vmatmul.mubr.bf16.gmra.mrb[0].mxu0 %v1157
        %v1567 = vpop.f32.mrb[0].mxu0
        %v1568 = vadd.f32 0.0, %v1567
        %v1569 = vpop.f32.mrb[0].mxu0
        %v1570 = vpop.f32.mrb[0].mxu0
        %v1571 = vadd.f32 0.0, %v1570
        %v1572 = vpop.f32.mrb[0].mxu0
        %1573 = vmatprep.mubr.bf16.mxu0 0
        %1574 = vmatmul.mubr.bf16.gmra.mrb[0].mxu0 %v1160
        %v1575 = vpop.f32.mrb[0].mxu0
        %v1576 = vadd.f32 0.0, %v1575
        %v1577 = vpop.f32.mrb[0].mxu0
        %v1578 = vpop.f32.mrb[0].mxu0
        %v1579 = vadd.f32 0.0, %v1578
        %v1580 = vpop.f32.mrb[0].mxu0
        %1581 = vmatprep.mubr.bf16.mxu0 0
        %1582 = vmatmul.mubr.bf16.gmra.mrb[0].mxu0 %v1163
        %v1583 = vpop.f32.mrb[0].mxu0
        %v1584 = vadd.f32 0.0, %v1583
        %v1585 = vpop.f32.mrb[0].mxu0
        %v1586 = vpop.f32.mrb[0].mxu0
        %v1587 = vadd.f32 0.0, %v1586
        %v1588 = vpop.f32.mrb[0].mxu0
        %1589 = vmatprep.mubr.bf16.mxu0 0
        %1590 = vmatmul.mubr.bf16.gmra.mrb[0].mxu0 %v1166
        %v1591 = vpop.f32.mrb[0].mxu0
        %v1592 = vadd.f32 0.0, %v1591
        %v1593 = vpop.f32.mrb[0].mxu0
        %v1594 = vpop.f32.mrb[0].mxu0
        %v1595 = vadd.f32 0.0, %v1594
        %v1596 = vpop.f32.mrb[0].mxu0
        %1597 = vmatprep.mubr.bf16.mxu0 0
        %1598 = vmatmul.mubr.bf16.gmra.mrb[0].mxu0 %v1169
        %v1599 = vpop.f32.mrb[0].mxu0
        %v1600 = vadd.f32 0.0, %v1599
        %v1601 = vpop.f32.mrb[0].mxu0
        %v1602 = vpop.f32.mrb[0].mxu0
        %v1603 = vadd.f32 0.0, %v1602
        %v1604 = vpop.f32.mrb[0].mxu0
        %1605 = vmatprep.mubr.bf16.mxu0 0
        %1606 = vmatmul.mubr.bf16.gmra.mrb[0].mxu0 %v1172
        %v1607 = vpop.f32.mrb[0].mxu0
        %v1608 = vadd.f32 0.0, %v1607
        %v1609 = vpop.f32.mrb[0].mxu0
        %v1610 = vpop.f32.mrb[0].mxu0
        %v1611 = vadd.f32 0.0, %v1610
        %v1612 = vpop.f32.mrb[0].mxu0
        %1613 = vmatprep.mubr.bf16.mxu0 0
        %1614 = vmatmul.mubr.bf16.gmra.mrb[0].mxu0 %v1175
        %v1615 = vpop.f32.mrb[0].mxu0
        %v1616 = vadd.f32 0.0, %v1615
        %v1617 = vpop.f32.mrb[0].mxu0
        %v1618 = vpop.f32.mrb[0].mxu0
        %v1619 = vadd.f32 0.0, %v1618
        %v1620 = vpop.f32.mrb[0].mxu0
        %1621 = vmatprep.mubr.bf16.mxu0 0
        %1622 = vmatmul.mubr.bf16.gmra.mrb[0].mxu0 %v1178
        %v1623 = vpop.f32.mrb[0].mxu0
        %v1624 = vadd.f32 0.0, %v1623
        %v1625 = vpop.f32.mrb[0].mxu0
        %v1626 = vpop.f32.mrb[0].mxu0
        %v1627 = vadd.f32 0.0, %v1626
        %v1628 = vpop.f32.mrb[0].mxu0
        %1629 = vmatprep.mubr.bf16.mxu0 0
        %1630 = vmatmul.mubr.bf16.gmra.mrb[0].mxu0 %v1181
        %v1631 = vpop.f32.mrb[0].mxu0
        %v1632 = vadd.f32 0.0, %v1631
        %v1633 = vpop.f32.mrb[0].mxu0
        %v1634 = vpop.f32.mrb[0].mxu0
        %v1635 = vadd.f32 0.0, %v1634
        %v1636 = vpop.f32.mrb[0].mxu0
        %1637 = vmatprep.mubr.bf16.mxu0 0
        %1638 = vmatmul.mubr.bf16.gmra.mrb[0].mxu0 %v1184
        %v1639 = vpop.f32.mrb[0].mxu0
        %v1640 = vadd.f32 0.0, %v1639
        %v1641 = vpop.f32.mrb[0].mxu0
        %v1642 = vpop.f32.mrb[0].mxu0
        %v1643 = vadd.f32 0.0, %v1642
        %v1644 = vpop.f32.mrb[0].mxu0
        %1645 = vmatprep.mubr.bf16.mxu0 0
        %1646 = vmatmul.mubr.bf16.gmra.mrb[0].mxu0 %v1187
        %v1647 = vpop.f32.mrb[0].mxu0
        %v1648 = vadd.f32 0.0, %v1647
        %v1649 = vpop.f32.mrb[0].mxu0
        %v1650 = vpop.f32.mrb[0].mxu0
        %v1651 = vadd.f32 0.0, %v1650
        %v1652 = vpop.f32.mrb[0].mxu0
        %1653 = vmatprep.mubr.bf16.mxu0 0
        %1654 = vmatmul.mubr.bf16.gmra.mrb[0].mxu0 %v1190
        %v1655 = vpop.f32.mrb[0].mxu0
        %v1656 = vadd.f32 0.0, %v1655
        %v1657 = vpop.f32.mrb[0].mxu0
        %v1658 = vpop.f32.mrb[0].mxu0
        %v1659 = vadd.f32 0.0, %v1658
        %v1660 = vpop.f32.mrb[0].mxu0
        %1661 = vmatprep.mubr.bf16.mxu0 0
        %1662 = vmatmul.mubr.bf16.gmra.mrb[0].mxu0 %v1193
        %v1663 = vpop.f32.mrb[0].mxu0
        %v1664 = vadd.f32 0.0, %v1663
        %v1665 = vpop.f32.mrb[0].mxu0
        %v1666 = vpop.f32.mrb[0].mxu0
        %v1667 = vadd.f32 0.0, %v1666
        %v1668 = vpop.f32.mrb[0].mxu0
        %1669 = vmatprep.mubr.bf16.mxu0 0
        %1670 = vmatmul.mubr.bf16.gmra.mrb[0].mxu0 %v1196
        %v1671 = vpop.f32.mrb[0].mxu0
        %v1672 = vadd.f32 0.0, %v1671
        %v1673 = vpop.f32.mrb[0].mxu0
        %v1674 = vpop.f32.mrb[0].mxu0
        %v1675 = vadd.f32 0.0, %v1674
        %v1676 = vpop.f32.mrb[0].mxu0
        %1677 = vmatprep.mubr.bf16.mxu0 0
        %1678 = vmatmul.mubr.bf16.gmra.mrb[0].mxu0 %v1199
        %v1679 = vpop.f32.mrb[0].mxu0
        %v1680 = vadd.f32 0.0, %v1679
        %v1681 = vpop.f32.mrb[0].mxu0
        %v1682 = vpop.f32.mrb[0].mxu0
        %v1683 = vadd.f32 0.0, %v1682
        %v1684 = vpop.f32.mrb[0].mxu0
        %1685 = vmatprep.mubr.bf16.mxu0 0
        %1686 = vmatmul.mubr.bf16.gmra.mrb[0].mxu0 %v1202
        %v1687 = vpop.f32.mrb[0].mxu0
        %v1688 = vadd.f32 0.0, %v1687
        %v1689 = vpop.f32.mrb[0].mxu0
        %v1690 = vpop.f32.mrb[0].mxu0
        %v1691 = vadd.f32 0.0, %v1690
        %v1692 = vpop.f32.mrb[0].mxu0
        %1693 = vmatprep.mubr.bf16.mxu0 0
        %1694 = vmatmul.mubr.bf16.gmra.mrb[0].mxu0 %v1205
        %v1695 = vpop.f32.mrb[0].mxu0
        %v1696 = vadd.f32 0.0, %v1695
        %v1697 = vpop.f32.mrb[0].mxu0
        %v1698 = vpop.f32.mrb[0].mxu0
        %v1699 = vadd.f32 0.0, %v1698
        %v1700 = vpop.f32.mrb[0].mxu0
        %1701 = vmatprep.mubr.bf16.mxu0 0
        %1702 = vmatmul.mubr.bf16.gmra.mrb[0].mxu0 %v1208
        %v1703 = vpop.f32.mrb[0].mxu0
        %v1704 = vadd.f32 0.0, %v1703
        %v1705 = vpop.f32.mrb[0].mxu0
        %v1706 = vpop.f32.mrb[0].mxu0
        %v1707 = vadd.f32 0.0, %v1706
        %v1708 = vpop.f32.mrb[0].mxu0
        %1709 = vmatprep.mubr.bf16.mxu0 0
        %1710 = vmatmul.mubr.bf16.gmra.mrb[0].mxu0 %v1211
        %v1711 = vpop.f32.mrb[0].mxu0
        %v1712 = vadd.f32 0.0, %v1711
        %v1713 = vpop.f32.mrb[0].mxu0
        %v1714 = vpop.f32.mrb[0].mxu0
        %v1715 = vadd.f32 0.0, %v1714
        %v1716 = vpop.f32.mrb[0].mxu0
        %1717 = vmatprep.mubr.bf16.mxu0 0
        %1718 = vmatmul.mubr.bf16.gmra.mrb[0].mxu0 %v1214
        %v1719 = vpop.f32.mrb[0].mxu0
        %v1720 = vadd.f32 0.0, %v1719
        %v1721 = vpop.f32.mrb[0].mxu0
        %v1722 = vpop.f32.mrb[0].mxu0
        %v1723 = vadd.f32 0.0, %v1722
        %v1724 = vpop.f32.mrb[0].mxu0
        %1725 = vmatprep.mubr.bf16.mxu0 0
        %1726 = vmatmul.mubr.bf16.gmra.mrb[0].mxu0 %v1217
        %v1727 = vpop.f32.mrb[0].mxu0
        %v1728 = vadd.f32 0.0, %v1727
        %v1729 = vpop.f32.mrb[0].mxu0
        %v1730 = vpop.f32.mrb[0].mxu0
        %v1731 = vadd.f32 0.0, %v1730
        %v1732 = vpop.f32.mrb[0].mxu0
        %1733 = vmatprep.mubr.bf16.mxu0 0
        %1734 = vmatmul.mubr.bf16.gmra.mrb[0].mxu0 %v1220
        %v1735 = vpop.f32.mrb[0].mxu0
        %v1736 = vadd.f32 0.0, %v1735
        %v1737 = vpop.f32.mrb[0].mxu0
        %v1738 = vpop.f32.mrb[0].mxu0
        %v1739 = vadd.f32 0.0, %v1738
        %v1740 = vpop.f32.mrb[0].mxu0
        %1741 = vmatprep.mubr.bf16.mxu0 0
        %1742 = vmatmul.mubr.bf16.gmra.mrb[0].mxu0 %v1223
        %v1743 = vpop.f32.mrb[0].mxu0
        %v1744 = vadd.f32 0.0, %v1743
        %v1745 = vpop.f32.mrb[0].mxu0
        %v1746 = vpop.f32.mrb[0].mxu0
        %v1747 = vadd.f32 0.0, %v1746
        %v1748 = vpop.f32.mrb[0].mxu0
        %1749 = vmatprep.mubr.bf16.mxu0 0
        %1750 = vmatmul.mubr.bf16.gmra.mrb[0].mxu0 %v1226
        %v1751 = vpop.f32.mrb[0].mxu0
        %v1752 = vadd.f32 0.0, %v1751
        %v1753 = vpop.f32.mrb[0].mxu0
        %v1754 = vpop.f32.mrb[0].mxu0
        %v1755 = vadd.f32 0.0, %v1754
        %v1756 = vpop.f32.mrb[0].mxu0
        %1757 = vmatprep.mubr.bf16.mxu0 0
        %1758 = vmatmul.mubr.bf16.gmra.mrb[0].mxu0 %v1229
        %v1759 = vpop.f32.mrb[0].mxu0
        %v1760 = vadd.f32 0.0, %v1759
        %v1761 = vpop.f32.mrb[0].mxu0
        %v1762 = vpop.f32.mrb[0].mxu0
        %v1763 = vadd.f32 0.0, %v1762
        %v1764 = vpop.f32.mrb[0].mxu0
        %1765 = vmatprep.mubr.bf16.mxu0 0
        %1766 = vmatmul.mubr.bf16.gmra.mrb[0].mxu0 %v1232
        %v1767 = vpop.f32.mrb[0].mxu0
        %v1768 = vadd.f32 0.0, %v1767
        %v1769 = vpop.f32.mrb[0].mxu0
        %v1770 = vpop.f32.mrb[0].mxu0
        %v1771 = vadd.f32 0.0, %v1770
        %v1772 = vpop.f32.mrb[0].mxu0
        %1773 = vmatprep.mubr.bf16.mxu0 0
        %1774 = vmatmul.mubr.bf16.gmra.mrb[0].mxu0 %v1235
        %v1775 = vpop.f32.mrb[0].mxu0
        %v1776 = vadd.f32 0.0, %v1775
        %v1777 = vpop.f32.mrb[0].mxu0
        %v1778 = vpop.f32.mrb[0].mxu0
        %v1779 = vadd.f32 0.0, %v1778
        %v1780 = vpop.f32.mrb[0].mxu0
        %1781 = vdwg.mxu0
        %v1782 = vadd.f32 %v580, %v1272
        %v1783 = vadd.f32 %v581, %v1275
        %v1784 = vadd.f32 %v582, %v1280
        %v1785 = vadd.f32 %v583, %v1283
        %v1786 = vadd.f32 %v584, %v1288
        %v1787 = vadd.f32 %v585, %v1291
        %v1788 = vadd.f32 %v586, %v1296
        %v1789 = vadd.f32 %v587, %v1299
        %v1790 = vadd.f32 %v588, %v1304
        %v1791 = vadd.f32 %v589, %v1307
        %v1792 = vadd.f32 %v590, %v1312
        %v1793 = vadd.f32 %v591, %v1315
        %v1794 = vadd.f32 %v592, %v1320
        %v1795 = vadd.f32 %v593, %v1323
        %v1796 = vadd.f32 %v594, %v1328
        %v1797 = vadd.f32 %v595, %v1331
        %v1798 = vadd.f32 %v596, %v1336
        %v1799 = vadd.f32 %v597, %v1339
        %v1800 = vadd.f32 %v598, %v1344
        %v1801 = vadd.f32 %v599, %v1347
        %v1802 = vadd.f32 %v600, %v1352
        %v1803 = vadd.f32 %v601, %v1355
        %v1804 = vadd.f32 %v602, %v1360
        %v1805 = vadd.f32 %v603, %v1363
        %v1806 = vadd.f32 %v604, %v1368
        %v1807 = vadd.f32 %v605, %v1371
        %v1808 = vadd.f32 %v606, %v1376
        %v1809 = vadd.f32 %v607, %v1379
        %v1810 = vadd.f32 %v608, %v1384
        %v1811 = vadd.f32 %v609, %v1387
        %v1812 = vadd.f32 %v610, %v1392
        %v1813 = vadd.f32 %v611, %v1395
        %v1814 = vadd.f32 %v612, %v1400
        %v1815 = vadd.f32 %v613, %v1403
        %v1816 = vadd.f32 %v614, %v1408
        %v1817 = vadd.f32 %v615, %v1411
        %v1818 = vadd.f32 %v616, %v1416
        %v1819 = vadd.f32 %v617, %v1419
        %v1820 = vadd.f32 %v618, %v1424
        %v1821 = vadd.f32 %v619, %v1427
        %v1822 = vadd.f32 %v620, %v1432
        %v1823 = vadd.f32 %v621, %v1435
        %v1824 = vadd.f32 %v622, %v1440
        %v1825 = vadd.f32 %v623, %v1443
        %v1826 = vadd.f32 %v624, %v1448
        %v1827 = vadd.f32 %v625, %v1451
        %v1828 = vadd.f32 %v626, %v1456
        %v1829 = vadd.f32 %v627, %v1459
        %v1830 = vadd.f32 %v628, %v1464
        %v1831 = vadd.f32 %v629, %v1467
        %v1832 = vadd.f32 %v630, %v1472
        %v1833 = vadd.f32 %v631, %v1475
        %v1834 = vadd.f32 %v632, %v1480
        %v1835 = vadd.f32 %v633, %v1483
        %v1836 = vadd.f32 %v634, %v1488
        %v1837 = vadd.f32 %v635, %v1491
        %v1838 = vadd.f32 %v636, %v1496
        %v1839 = vadd.f32 %v637, %v1499
        %v1840 = vadd.f32 %v638, %v1504
        %v1841 = vadd.f32 %v639, %v1507
        %v1842 = vadd.f32 %v640, %v1512
        %v1843 = vadd.f32 %v641, %v1515
        %v1844 = vadd.f32 %v642, %v1520
        %v1845 = vadd.f32 %v643, %v1523
        %v1846 = vadd.f32 %v644, %v1528
        %v1847 = vadd.f32 %v645, %v1531
        %v1848 = vadd.f32 %v646, %v1536
        %v1849 = vadd.f32 %v647, %v1539
        %v1850 = vadd.f32 %v648, %v1544
        %v1851 = vadd.f32 %v649, %v1547
        %v1852 = vadd.f32 %v650, %v1552
        %v1853 = vadd.f32 %v651, %v1555
        %v1854 = vadd.f32 %v652, %v1560
        %v1855 = vadd.f32 %v653, %v1563
        %v1856 = vadd.f32 %v654, %v1568
        %v1857 = vadd.f32 %v655, %v1571
        %v1858 = vadd.f32 %v656, %v1576
        %v1859 = vadd.f32 %v657, %v1579
        %v1860 = vadd.f32 %v658, %v1584
        %v1861 = vadd.f32 %v659, %v1587
        %v1862 = vadd.f32 %v660, %v1592
        %v1863 = vadd.f32 %v661, %v1595
        %v1864 = vadd.f32 %v662, %v1600
        %v1865 = vadd.f32 %v663, %v1603
        %v1866 = vadd.f32 %v664, %v1608
        %v1867 = vadd.f32 %v665, %v1611
        %v1868 = vadd.f32 %v666, %v1616
        %v1869 = vadd.f32 %v667, %v1619
        %v1870 = vadd.f32 %v668, %v1624
        %v1871 = vadd.f32 %v669, %v1627
        %v1872 = vadd.f32 %v670, %v1632
        %v1873 = vadd.f32 %v671, %v1635
        %v1874 = vadd.f32 %v672, %v1640
        %v1875 = vadd.f32 %v673, %v1643
        %v1876 = vadd.f32 %v674, %v1648
        %v1877 = vadd.f32 %v675, %v1651
        %v1878 = vadd.f32 %v676, %v1656
        %v1879 = vadd.f32 %v677, %v1659
        %v1880 = vadd.f32 %v678, %v1664
        %v1881 = vadd.f32 %v679, %v1667
        %v1882 = vadd.f32 %v680, %v1672
        %v1883 = vadd.f32 %v681, %v1675
        %v1884 = vadd.f32 %v682, %v1680
        %v1885 = vadd.f32 %v683, %v1683
        %v1886 = vadd.f32 %v684, %v1688
        %v1887 = vadd.f32 %v685, %v1691
        %v1888 = vadd.f32 %v686, %v1696
        %v1889 = vadd.f32 %v687, %v1699
        %v1890 = vadd.f32 %v688, %v1704
        %v1891 = vadd.f32 %v689, %v1707
        %v1892 = vadd.f32 %v690, %v1712
        %v1893 = vadd.f32 %v691, %v1715
        %v1894 = vadd.f32 %v692, %v1720
        %v1895 = vadd.f32 %v693, %v1723
        %v1896 = vadd.f32 %v694, %v1728
        %v1897 = vadd.f32 %v695, %v1731
        %v1898 = vadd.f32 %v696, %v1736
        %v1899 = vadd.f32 %v697, %v1739
        %v1900 = vadd.f32 %v698, %v1744
        %v1901 = vadd.f32 %v699, %v1747
        %v1902 = vadd.f32 %v700, %v1752
        %v1903 = vadd.f32 %v701, %v1755
        %v1904 = vadd.f32 %v702, %v1760
        %v1905 = vadd.f32 %v703, %v1763
        %v1906 = vadd.f32 %v704, %v1768
        %v1907 = vadd.f32 %v705, %v1771
        %v1908 = vadd.f32 %v706, %v1776
        %v1909 = vadd.f32 %v707, %v1779
        %1910 = vst [vmem:[#allocation2] sm:$0xff] %v1782
        %1911 = vst [vmem:[#allocation2 + $0x8] sm:$0xff] %v1783
        %1912 = vst [vmem:[#allocation2 + $0x10] sm:$0xff] %v1784
        %1913 = vst [vmem:[#allocation2 + $0x18] sm:$0xff] %v1785
        %1914 = vst [vmem:[#allocation2 + $0x20] sm:$0xff] %v1786
        %1915 = vst [vmem:[#allocation2 + $0x28] sm:$0xff] %v1787
        %1916 = vst [vmem:[#allocation2 + $0x30] sm:$0xff] %v1788
        %1917 = vst [vmem:[#allocation2 + $0x38] sm:$0xff] %v1789
        %1918 = vst [vmem:[#allocation2 + $0x40] sm:$0xff] %v1790
        %1919 = vst [vmem:[#allocation2 + $0x48] sm:$0xff] %v1791
        %1920 = vst [vmem:[#allocation2 + $0x50] sm:$0xff] %v1792
        %1921 = vst [vmem:[#allocation2 + $0x58] sm:$0xff] %v1793
        %1922 = vst [vmem:[#allocation2 + $0x60] sm:$0xff] %v1794
        %1923 = vst [vmem:[#allocation2 + $0x68] sm:$0xff] %v1795
        %1924 = vst [vmem:[#allocation2 + $0x70] sm:$0xff] %v1796
        %1925 = vst [vmem:[#allocation2 + $0x78] sm:$0xff] %v1797
        %1926 = vst [vmem:[#allocation2 + $0x80] sm:$0xff] %v1798
        %1927 = vst [vmem:[#allocation2 + $0x88] sm:$0xff] %v1799
        %1928 = vst [vmem:[#allocation2 + $0x90] sm:$0xff] %v1800
        %1929 = vst [vmem:[#allocation2 + $0x98] sm:$0xff] %v1801
        %1930 = vst [vmem:[#allocation2 + $0xa0] sm:$0xff] %v1802
        %1931 = vst [vmem:[#allocation2 + $0xa8] sm:$0xff] %v1803
        %1932 = vst [vmem:[#allocation2 + $0xb0] sm:$0xff] %v1804
        %1933 = vst [vmem:[#allocation2 + $0xb8] sm:$0xff] %v1805
        %1934 = vst [vmem:[#allocation2 + $0xc0] sm:$0xff] %v1806
        %1935 = vst [vmem:[#allocation2 + $0xc8] sm:$0xff] %v1807
        %1936 = vst [vmem:[#allocation2 + $0xd0] sm:$0xff] %v1808
        %1937 = vst [vmem:[#allocation2 + $0xd8] sm:$0xff] %v1809
        %1938 = vst [vmem:[#allocation2 + $0xe0] sm:$0xff] %v1810
        %1939 = vst [vmem:[#allocation2 + $0xe8] sm:$0xff] %v1811
        %1940 = vst [vmem:[#allocation2 + $0xf0] sm:$0xff] %v1812
        %1941 = vst [vmem:[#allocation2 + $0xf8] sm:$0xff] %v1813
        %1942 = vst [vmem:[#allocation2 + $0x100] sm:$0xff] %v1814
        %1943 = vst [vmem:[#allocation2 + $0x108] sm:$0xff] %v1815
        %1944 = vst [vmem:[#allocation2 + $0x110] sm:$0xff] %v1816
        %1945 = vst [vmem:[#allocation2 + $0x118] sm:$0xff] %v1817
        %1946 = vst [vmem:[#allocation2 + $0x120] sm:$0xff] %v1818
        %1947 = vst [vmem:[#allocation2 + $0x128] sm:$0xff] %v1819
        %1948 = vst [vmem:[#allocation2 + $0x130] sm:$0xff] %v1820
        %1949 = vst [vmem:[#allocation2 + $0x138] sm:$0xff] %v1821
        %1950 = vst [vmem:[#allocation2 + $0x140] sm:$0xff] %v1822
        %1951 = vst [vmem:[#allocation2 + $0x148] sm:$0xff] %v1823
        %1952 = vst [vmem:[#allocation2 + $0x150] sm:$0xff] %v1824
        %1953 = vst [vmem:[#allocation2 + $0x158] sm:$0xff] %v1825
        %1954 = vst [vmem:[#allocation2 + $0x160] sm:$0xff] %v1826
        %1955 = vst [vmem:[#allocation2 + $0x168] sm:$0xff] %v1827
        %1956 = vst [vmem:[#allocation2 + $0x170] sm:$0xff] %v1828
        %1957 = vst [vmem:[#allocation2 + $0x178] sm:$0xff] %v1829
        %1958 = vst [vmem:[#allocation2 + $0x180] sm:$0xff] %v1830
        %1959 = vst [vmem:[#allocation2 + $0x188] sm:$0xff] %v1831
        %1960 = vst [vmem:[#allocation2 + $0x190] sm:$0xff] %v1832
        %1961 = vst [vmem:[#allocation2 + $0x198] sm:$0xff] %v1833
        %1962 = vst [vmem:[#allocation2 + $0x1a0] sm:$0xff] %v1834
        %1963 = vst [vmem:[#allocation2 + $0x1a8] sm:$0xff] %v1835
        %1964 = vst [vmem:[#allocation2 + $0x1b0] sm:$0xff] %v1836
        %1965 = vst [vmem:[#allocation2 + $0x1b8] sm:$0xff] %v1837
        %1966 = vst [vmem:[#allocation2 + $0x1c0] sm:$0xff] %v1838
        %1967 = vst [vmem:[#allocation2 + $0x1c8] sm:$0xff] %v1839
        %1968 = vst [vmem:[#allocation2 + $0x1d0] sm:$0xff] %v1840
        %1969 = vst [vmem:[#allocation2 + $0x1d8] sm:$0xff] %v1841
        %1970 = vst [vmem:[#allocation2 + $0x1e0] sm:$0xff] %v1842
        %1971 = vst [vmem:[#allocation2 + $0x1e8] sm:$0xff] %v1843
        %1972 = vst [vmem:[#allocation2 + $0x1f0] sm:$0xff] %v1844
        %1973 = vst [vmem:[#allocation2 + $0x1f8] sm:$0xff] %v1845
        %1974 = vst [vmem:[#allocation2 + $0x200] sm:$0xff] %v1846
        %1975 = vst [vmem:[#allocation2 + $0x208] sm:$0xff] %v1847
        %1976 = vst [vmem:[#allocation2 + $0x210] sm:$0xff] %v1848
        %1977 = vst [vmem:[#allocation2 + $0x218] sm:$0xff] %v1849
        %1978 = vst [vmem:[#allocation2 + $0x220] sm:$0xff] %v1850
        %1979 = vst [vmem:[#allocation2 + $0x228] sm:$0xff] %v1851
        %1980 = vst [vmem:[#allocation2 + $0x230] sm:$0xff] %v1852
        %1981 = vst [vmem:[#allocation2 + $0x238] sm:$0xff] %v1853
        %1982 = vst [vmem:[#allocation2 + $0x240] sm:$0xff] %v1854
        %1983 = vst [vmem:[#allocation2 + $0x248] sm:$0xff] %v1855
        %1984 = vst [vmem:[#allocation2 + $0x250] sm:$0xff] %v1856
        %1985 = vst [vmem:[#allocation2 + $0x258] sm:$0xff] %v1857
        %1986 = vst [vmem:[#allocation2 + $0x260] sm:$0xff] %v1858
        %1987 = vst [vmem:[#allocation2 + $0x268] sm:$0xff] %v1859
        %1988 = vst [vmem:[#allocation2 + $0x270] sm:$0xff] %v1860
        %1989 = vst [vmem:[#allocation2 + $0x278] sm:$0xff] %v1861
        %1990 = vst [vmem:[#allocation2 + $0x280] sm:$0xff] %v1862
        %1991 = vst [vmem:[#allocation2 + $0x288] sm:$0xff] %v1863
        %1992 = vst [vmem:[#allocation2 + $0x290] sm:$0xff] %v1864
        %1993 = vst [vmem:[#allocation2 + $0x298] sm:$0xff] %v1865
        %1994 = vst [vmem:[#allocation2 + $0x2a0] sm:$0xff] %v1866
        %1995 = vst [vmem:[#allocation2 + $0x2a8] sm:$0xff] %v1867
        %1996 = vst [vmem:[#allocation2 + $0x2b0] sm:$0xff] %v1868
        %1997 = vst [vmem:[#allocation2 + $0x2b8] sm:$0xff] %v1869
        %1998 = vst [vmem:[#allocation2 + $0x2c0] sm:$0xff] %v1870
        %1999 = vst [vmem:[#allocation2 + $0x2c8] sm:$0xff] %v1871
        %2000 = vst [vmem:[#allocation2 + $0x2d0] sm:$0xff] %v1872
        %2001 = vst [vmem:[#allocation2 + $0x2d8] sm:$0xff] %v1873
        %2002 = vst [vmem:[#allocation2 + $0x2e0] sm:$0xff] %v1874
        %2003 = vst [vmem:[#allocation2 + $0x2e8] sm:$0xff] %v1875
        %2004 = vst [vmem:[#allocation2 + $0x2f0] sm:$0xff] %v1876
        %2005 = vst [vmem:[#allocation2 + $0x2f8] sm:$0xff] %v1877
        %2006 = vst [vmem:[#allocation2 + $0x300] sm:$0xff] %v1878
        %2007 = vst [vmem:[#allocation2 + $0x308] sm:$0xff] %v1879
        %2008 = vst [vmem:[#allocation2 + $0x310] sm:$0xff] %v1880
        %2009 = vst [vmem:[#allocation2 + $0x318] sm:$0xff] %v1881
        %2010 = vst [vmem:[#allocation2 + $0x320] sm:$0xff] %v1882
        %2011 = vst [vmem:[#allocation2 + $0x328] sm:$0xff] %v1883
        %2012 = vst [vmem:[#allocation2 + $0x330] sm:$0xff] %v1884
        %2013 = vst [vmem:[#allocation2 + $0x338] sm:$0xff] %v1885
        %2014 = vst [vmem:[#allocation2 + $0x340] sm:$0xff] %v1886
        %2015 = vst [vmem:[#allocation2 + $0x348] sm:$0xff] %v1887
        %2016 = vst [vmem:[#allocation2 + $0x350] sm:$0xff] %v1888
        %2017 = vst [vmem:[#allocation2 + $0x358] sm:$0xff] %v1889
        %2018 = vst [vmem:[#allocation2 + $0x360] sm:$0xff] %v1890
        %2019 = vst [vmem:[#allocation2 + $0x368] sm:$0xff] %v1891
        %2020 = vst [vmem:[#allocation2 + $0x370] sm:$0xff] %v1892
        %2021 = vst [vmem:[#allocation2 + $0x378] sm:$0xff] %v1893
        %2022 = vst [vmem:[#allocation2 + $0x380] sm:$0xff] %v1894
        %2023 = vst [vmem:[#allocation2 + $0x388] sm:$0xff] %v1895
        %2024 = vst [vmem:[#allocation2 + $0x390] sm:$0xff] %v1896
        %2025 = vst [vmem:[#allocation2 + $0x398] sm:$0xff] %v1897
        %2026 = vst [vmem:[#allocation2 + $0x3a0] sm:$0xff] %v1898
        %2027 = vst [vmem:[#allocation2 + $0x3a8] sm:$0xff] %v1899
        %2028 = vst [vmem:[#allocation2 + $0x3b0] sm:$0xff] %v1900
        %2029 = vst [vmem:[#allocation2 + $0x3b8] sm:$0xff] %v1901
        %2030 = vst [vmem:[#allocation2 + $0x3c0] sm:$0xff] %v1902
        %2031 = vst [vmem:[#allocation2 + $0x3c8] sm:$0xff] %v1903
        %2032 = vst [vmem:[#allocation2 + $0x3d0] sm:$0xff] %v1904
        %2033 = vst [vmem:[#allocation2 + $0x3d8] sm:$0xff] %v1905
        %2034 = vst [vmem:[#allocation2 + $0x3e0] sm:$0xff] %v1906
        %2035 = vst [vmem:[#allocation2 + $0x3e8] sm:$0xff] %v1907
        %2036 = vst [vmem:[#allocation2 + $0x3f0] sm:$0xff] %v1908
        %2037 = vst [vmem:[#allocation2 + $0x3f8] sm:$0xff] %v1909
        // Predicated region
        $region41: #{tpu_custom_call.1} parent=35 // pred_check
          %p2038 = pneg %p320
        $region42: #{tpu_custom_call.1} parent=35 // pred_check_branch
          %2040 = sbr.rel (%p2038) target = $region44
        $region43: #{tpu_custom_call.1} parent=35 // pred_region
          %v2041 = vld [vmem:[#allocation2] sm:$0xff]
          %v2042 = vld [vmem:[#allocation2 + $0x8] sm:$0xff]
          %v2043 = vld [vmem:[#allocation2 + $0x10] sm:$0xff]
          %v2044 = vld [vmem:[#allocation2 + $0x18] sm:$0xff]
          %v2045 = vld [vmem:[#allocation2 + $0x20] sm:$0xff]
          %v2046 = vld [vmem:[#allocation2 + $0x28] sm:$0xff]
          %v2047 = vld [vmem:[#allocation2 + $0x30] sm:$0xff]
          %v2048 = vld [vmem:[#allocation2 + $0x38] sm:$0xff]
          %v2049 = vld [vmem:[#allocation2 + $0x40] sm:$0xff]
          %v2050 = vld [vmem:[#allocation2 + $0x48] sm:$0xff]
          %v2051 = vld [vmem:[#allocation2 + $0x50] sm:$0xff]
          %v2052 = vld [vmem:[#allocation2 + $0x58] sm:$0xff]
          %v2053 = vld [vmem:[#allocation2 + $0x60] sm:$0xff]
          %v2054 = vld [vmem:[#allocation2 + $0x68] sm:$0xff]
          %v2055 = vld [vmem:[#allocation2 + $0x70] sm:$0xff]
          %v2056 = vld [vmem:[#allocation2 + $0x78] sm:$0xff]
          %v2057 = vld [vmem:[#allocation2 + $0x80] sm:$0xff]
          %v2058 = vld [vmem:[#allocation2 + $0x88] sm:$0xff]
          %v2059 = vld [vmem:[#allocation2 + $0x90] sm:$0xff]
          %v2060 = vld [vmem:[#allocation2 + $0x98] sm:$0xff]
          %v2061 = vld [vmem:[#allocation2 + $0xa0] sm:$0xff]
          %v2062 = vld [vmem:[#allocation2 + $0xa8] sm:$0xff]
          %v2063 = vld [vmem:[#allocation2 + $0xb0] sm:$0xff]
          %v2064 = vld [vmem:[#allocation2 + $0xb8] sm:$0xff]
          %v2065 = vld [vmem:[#allocation2 + $0xc0] sm:$0xff]
          %v2066 = vld [vmem:[#allocation2 + $0xc8] sm:$0xff]
          %v2067 = vld [vmem:[#allocation2 + $0xd0] sm:$0xff]
          %v2068 = vld [vmem:[#allocation2 + $0xd8] sm:$0xff]
          %v2069 = vld [vmem:[#allocation2 + $0xe0] sm:$0xff]
          %v2070 = vld [vmem:[#allocation2 + $0xe8] sm:$0xff]
          %v2071 = vld [vmem:[#allocation2 + $0xf0] sm:$0xff]
          %v2072 = vld [vmem:[#allocation2 + $0xf8] sm:$0xff]
          %v2073 = vld [vmem:[#allocation2 + $0x100] sm:$0xff]
          %v2074 = vld [vmem:[#allocation2 + $0x108] sm:$0xff]
          %v2075 = vld [vmem:[#allocation2 + $0x110] sm:$0xff]
          %v2076 = vld [vmem:[#allocation2 + $0x118] sm:$0xff]
          %v2077 = vld [vmem:[#allocation2 + $0x120] sm:$0xff]
          %v2078 = vld [vmem:[#allocation2 + $0x128] sm:$0xff]
          %v2079 = vld [vmem:[#allocation2 + $0x130] sm:$0xff]
          %v2080 = vld [vmem:[#allocation2 + $0x138] sm:$0xff]
          %v2081 = vld [vmem:[#allocation2 + $0x140] sm:$0xff]
          %v2082 = vld [vmem:[#allocation2 + $0x148] sm:$0xff]
          %v2083 = vld [vmem:[#allocation2 + $0x150] sm:$0xff]
          %v2084 = vld [vmem:[#allocation2 + $0x158] sm:$0xff]
          %v2085 = vld [vmem:[#allocation2 + $0x160] sm:$0xff]
          %v2086 = vld [vmem:[#allocation2 + $0x168] sm:$0xff]
          %v2087 = vld [vmem:[#allocation2 + $0x170] sm:$0xff]
          %v2088 = vld [vmem:[#allocation2 + $0x178] sm:$0xff]
          %v2089 = vld [vmem:[#allocation2 + $0x180] sm:$0xff]
          %v2090 = vld [vmem:[#allocation2 + $0x188] sm:$0xff]
          %v2091 = vld [vmem:[#allocation2 + $0x190] sm:$0xff]
          %v2092 = vld [vmem:[#allocation2 + $0x198] sm:$0xff]
          %v2093 = vld [vmem:[#allocation2 + $0x1a0] sm:$0xff]
          %v2094 = vld [vmem:[#allocation2 + $0x1a8] sm:$0xff]
          %v2095 = vld [vmem:[#allocation2 + $0x1b0] sm:$0xff]
          %v2096 = vld [vmem:[#allocation2 + $0x1b8] sm:$0xff]
          %v2097 = vld [vmem:[#allocation2 + $0x1c0] sm:$0xff]
          %v2098 = vld [vmem:[#allocation2 + $0x1c8] sm:$0xff]
          %v2099 = vld [vmem:[#allocation2 + $0x1d0] sm:$0xff]
          %v2100 = vld [vmem:[#allocation2 + $0x1d8] sm:$0xff]
          %v2101 = vld [vmem:[#allocation2 + $0x1e0] sm:$0xff]
          %v2102 = vld [vmem:[#allocation2 + $0x1e8] sm:$0xff]
          %v2103 = vld [vmem:[#allocation2 + $0x1f0] sm:$0xff]
          %v2104 = vld [vmem:[#allocation2 + $0x1f8] sm:$0xff]
          %v2105 = vld [vmem:[#allocation2 + $0x200] sm:$0xff]
          %v2106 = vld [vmem:[#allocation2 + $0x208] sm:$0xff]
          %v2107 = vld [vmem:[#allocation2 + $0x210] sm:$0xff]
          %v2108 = vld [vmem:[#allocation2 + $0x218] sm:$0xff]
          %v2109 = vld [vmem:[#allocation2 + $0x220] sm:$0xff]
          %v2110 = vld [vmem:[#allocation2 + $0x228] sm:$0xff]
          %v2111 = vld [vmem:[#allocation2 + $0x230] sm:$0xff]
          %v2112 = vld [vmem:[#allocation2 + $0x238] sm:$0xff]
          %v2113 = vld [vmem:[#allocation2 + $0x240] sm:$0xff]
          %v2114 = vld [vmem:[#allocation2 + $0x248] sm:$0xff]
          %v2115 = vld [vmem:[#allocation2 + $0x250] sm:$0xff]
          %v2116 = vld [vmem:[#allocation2 + $0x258] sm:$0xff]
          %v2117 = vld [vmem:[#allocation2 + $0x260] sm:$0xff]
          %v2118 = vld [vmem:[#allocation2 + $0x268] sm:$0xff]
          %v2119 = vld [vmem:[#allocation2 + $0x270] sm:$0xff]
          %v2120 = vld [vmem:[#allocation2 + $0x278] sm:$0xff]
          %v2121 = vld [vmem:[#allocation2 + $0x280] sm:$0xff]
          %v2122 = vld [vmem:[#allocation2 + $0x288] sm:$0xff]
          %v2123 = vld [vmem:[#allocation2 + $0x290] sm:$0xff]
          %v2124 = vld [vmem:[#allocation2 + $0x298] sm:$0xff]
          %v2125 = vld [vmem:[#allocation2 + $0x2a0] sm:$0xff]
          %v2126 = vld [vmem:[#allocation2 + $0x2a8] sm:$0xff]
          %v2127 = vld [vmem:[#allocation2 + $0x2b0] sm:$0xff]
          %v2128 = vld [vmem:[#allocation2 + $0x2b8] sm:$0xff]
          %v2129 = vld [vmem:[#allocation2 + $0x2c0] sm:$0xff]
          %v2130 = vld [vmem:[#allocation2 + $0x2c8] sm:$0xff]
          %v2131 = vld [vmem:[#allocation2 + $0x2d0] sm:$0xff]
          %v2132 = vld [vmem:[#allocation2 + $0x2d8] sm:$0xff]
          %v2133 = vld [vmem:[#allocation2 + $0x2e0] sm:$0xff]
          %v2134 = vld [vmem:[#allocation2 + $0x2e8] sm:$0xff]
          %v2135 = vld [vmem:[#allocation2 + $0x2f0] sm:$0xff]
          %v2136 = vld [vmem:[#allocation2 + $0x2f8] sm:$0xff]
          %v2137 = vld [vmem:[#allocation2 + $0x300] sm:$0xff]
          %v2138 = vld [vmem:[#allocation2 + $0x308] sm:$0xff]
          %v2139 = vld [vmem:[#allocation2 + $0x310] sm:$0xff]
          %v2140 = vld [vmem:[#allocation2 + $0x318] sm:$0xff]
          %v2141 = vld [vmem:[#allocation2 + $0x320] sm:$0xff]
          %v2142 = vld [vmem:[#allocation2 + $0x328] sm:$0xff]
          %v2143 = vld [vmem:[#allocation2 + $0x330] sm:$0xff]
          %v2144 = vld [vmem:[#allocation2 + $0x338] sm:$0xff]
          %v2145 = vld [vmem:[#allocation2 + $0x340] sm:$0xff]
          %v2146 = vld [vmem:[#allocation2 + $0x348] sm:$0xff]
          %v2147 = vld [vmem:[#allocation2 + $0x350] sm:$0xff]
          %v2148 = vld [vmem:[#allocation2 + $0x358] sm:$0xff]
          %v2149 = vld [vmem:[#allocation2 + $0x360] sm:$0xff]
          %v2150 = vld [vmem:[#allocation2 + $0x368] sm:$0xff]
          %v2151 = vld [vmem:[#allocation2 + $0x370] sm:$0xff]
          %v2152 = vld [vmem:[#allocation2 + $0x378] sm:$0xff]
          %v2153 = vld [vmem:[#allocation2 + $0x380] sm:$0xff]
          %v2154 = vld [vmem:[#allocation2 + $0x388] sm:$0xff]
          %v2155 = vld [vmem:[#allocation2 + $0x390] sm:$0xff]
          %v2156 = vld [vmem:[#allocation2 + $0x398] sm:$0xff]
          %v2157 = vld [vmem:[#allocation2 + $0x3a0] sm:$0xff]
          %v2158 = vld [vmem:[#allocation2 + $0x3a8] sm:$0xff]
          %v2159 = vld [vmem:[#allocation2 + $0x3b0] sm:$0xff]
          %v2160 = vld [vmem:[#allocation2 + $0x3b8] sm:$0xff]
          %v2161 = vld [vmem:[#allocation2 + $0x3c0] sm:$0xff]
          %v2162 = vld [vmem:[#allocation2 + $0x3c8] sm:$0xff]
          %v2163 = vld [vmem:[#allocation2 + $0x3d0] sm:$0xff]
          %v2164 = vld [vmem:[#allocation2 + $0x3d8] sm:$0xff]
          %v2165 = vld [vmem:[#allocation2 + $0x3e0] sm:$0xff]
          %v2166 = vld [vmem:[#allocation2 + $0x3e8] sm:$0xff]
          %v2167 = vld [vmem:[#allocation2 + $0x3f0] sm:$0xff]
          %v2168 = vld [vmem:[#allocation2 + $0x3f8] sm:$0xff]
          %v2169 = vld [vmem:[%s312] sm:$0x1]
          %v2171 = vlaneseq
          %v2172 = vshrl.u32 %v2171, 7
          %v2173 = vsub.s32 0, %v2172
          %v2174 = vrot.slane %v2169, %v2173
          %v2176 = vmul.f32 %v2041, %v2174
          %v2177 = vmul.f32 %v2042, %v2174
          %v2178 = vmul.f32 %v2043, %v2174
          %v2179 = vmul.f32 %v2044, %v2174
          %v2180 = vmul.f32 %v2045, %v2174
          %v2181 = vmul.f32 %v2046, %v2174
          %v2182 = vmul.f32 %v2047, %v2174
          %v2183 = vmul.f32 %v2048, %v2174
          %v2184 = vmul.f32 %v2049, %v2174
          %v2185 = vmul.f32 %v2050, %v2174
          %v2186 = vmul.f32 %v2051, %v2174
          %v2187 = vmul.f32 %v2052, %v2174
          %v2188 = vmul.f32 %v2053, %v2174
          %v2189 = vmul.f32 %v2054, %v2174
          %v2190 = vmul.f32 %v2055, %v2174
          %v2191 = vmul.f32 %v2056, %v2174
          %v2192 = vmul.f32 %v2057, %v2174
          %v2193 = vmul.f32 %v2058, %v2174
          %v2194 = vmul.f32 %v2059, %v2174
          %v2195 = vmul.f32 %v2060, %v2174
          %v2196 = vmul.f32 %v2061, %v2174
          %v2197 = vmul.f32 %v2062, %v2174
          %v2198 = vmul.f32 %v2063, %v2174
          %v2199 = vmul.f32 %v2064, %v2174
          %v2200 = vmul.f32 %v2065, %v2174
          %v2201 = vmul.f32 %v2066, %v2174
          %v2202 = vmul.f32 %v2067, %v2174
          %v2203 = vmul.f32 %v2068, %v2174
          %v2204 = vmul.f32 %v2069, %v2174
          %v2205 = vmul.f32 %v2070, %v2174
          %v2206 = vmul.f32 %v2071, %v2174
          %v2207 = vmul.f32 %v2072, %v2174
          %v2208 = vmul.f32 %v2073, %v2174
          %v2209 = vmul.f32 %v2074, %v2174
          %v2210 = vmul.f32 %v2075, %v2174
          %v2211 = vmul.f32 %v2076, %v2174
          %v2212 = vmul.f32 %v2077, %v2174
          %v2213 = vmul.f32 %v2078, %v2174
          %v2214 = vmul.f32 %v2079, %v2174
          %v2215 = vmul.f32 %v2080, %v2174
          %v2216 = vmul.f32 %v2081, %v2174
          %v2217 = vmul.f32 %v2082, %v2174
          %v2218 = vmul.f32 %v2083, %v2174
          %v2219 = vmul.f32 %v2084, %v2174
          %v2220 = vmul.f32 %v2085, %v2174
          %v2221 = vmul.f32 %v2086, %v2174
          %v2222 = vmul.f32 %v2087, %v2174
          %v2223 = vmul.f32 %v2088, %v2174
          %v2224 = vmul.f32 %v2089, %v2174
          %v2225 = vmul.f32 %v2090, %v2174
          %v2226 = vmul.f32 %v2091, %v2174
          %v2227 = vmul.f32 %v2092, %v2174
          %v2228 = vmul.f32 %v2093, %v2174
          %v2229 = vmul.f32 %v2094, %v2174
          %v2230 = vmul.f32 %v2095, %v2174
          %v2231 = vmul.f32 %v2096, %v2174
          %v2232 = vmul.f32 %v2097, %v2174
          %v2233 = vmul.f32 %v2098, %v2174
          %v2234 = vmul.f32 %v2099, %v2174
          %v2235 = vmul.f32 %v2100, %v2174
          %v2236 = vmul.f32 %v2101, %v2174
          %v2237 = vmul.f32 %v2102, %v2174
          %v2238 = vmul.f32 %v2103, %v2174
          %v2239 = vmul.f32 %v2104, %v2174
          %v2240 = vmul.f32 %v2105, %v2174
          %v2241 = vmul.f32 %v2106, %v2174
          %v2242 = vmul.f32 %v2107, %v2174
          %v2243 = vmul.f32 %v2108, %v2174
          %v2244 = vmul.f32 %v2109, %v2174
          %v2245 = vmul.f32 %v2110, %v2174
          %v2246 = vmul.f32 %v2111, %v2174
          %v2247 = vmul.f32 %v2112, %v2174
          %v2248 = vmul.f32 %v2113, %v2174
          %v2249 = vmul.f32 %v2114, %v2174
          %v2250 = vmul.f32 %v2115, %v2174
          %v2251 = vmul.f32 %v2116, %v2174
          %v2252 = vmul.f32 %v2117, %v2174
          %v2253 = vmul.f32 %v2118, %v2174
          %v2254 = vmul.f32 %v2119, %v2174
          %v2255 = vmul.f32 %v2120, %v2174
          %v2256 = vmul.f32 %v2121, %v2174
          %v2257 = vmul.f32 %v2122, %v2174
          %v2258 = vmul.f32 %v2123, %v2174
          %v2259 = vmul.f32 %v2124, %v2174
          %v2260 = vmul.f32 %v2125, %v2174
          %v2261 = vmul.f32 %v2126, %v2174
          %v2262 = vmul.f32 %v2127, %v2174
          %v2263 = vmul.f32 %v2128, %v2174
          %v2264 = vmul.f32 %v2129, %v2174
          %v2265 = vmul.f32 %v2130, %v2174
          %v2266 = vmul.f32 %v2131, %v2174
          %v2267 = vmul.f32 %v2132, %v2174
          %v2268 = vmul.f32 %v2133, %v2174
          %v2269 = vmul.f32 %v2134, %v2174
          %v2270 = vmul.f32 %v2135, %v2174
          %v2271 = vmul.f32 %v2136, %v2174
          %v2272 = vmul.f32 %v2137, %v2174
          %v2273 = vmul.f32 %v2138, %v2174
          %v2274 = vmul.f32 %v2139, %v2174
          %v2275 = vmul.f32 %v2140, %v2174
          %v2276 = vmul.f32 %v2141, %v2174
          %v2277 = vmul.f32 %v2142, %v2174
          %v2278 = vmul.f32 %v2143, %v2174
          %v2279 = vmul.f32 %v2144, %v2174
          %v2280 = vmul.f32 %v2145, %v2174
          %v2281 = vmul.f32 %v2146, %v2174
          %v2282 = vmul.f32 %v2147, %v2174
          %v2283 = vmul.f32 %v2148, %v2174
          %v2284 = vmul.f32 %v2149, %v2174
          %v2285 = vmul.f32 %v2150, %v2174
          %v2286 = vmul.f32 %v2151, %v2174
          %v2287 = vmul.f32 %v2152, %v2174
          %v2288 = vmul.f32 %v2153, %v2174
          %v2289 = vmul.f32 %v2154, %v2174
          %v2290 = vmul.f32 %v2155, %v2174
          %v2291 = vmul.f32 %v2156, %v2174
          %v2292 = vmul.f32 %v2157, %v2174
          %v2293 = vmul.f32 %v2158, %v2174
          %v2294 = vmul.f32 %v2159, %v2174
          %v2295 = vmul.f32 %v2160, %v2174
          %v2296 = vmul.f32 %v2161, %v2174
          %v2297 = vmul.f32 %v2162, %v2174
          %v2298 = vmul.f32 %v2163, %v2174
          %v2299 = vmul.f32 %v2164, %v2174
          %v2300 = vmul.f32 %v2165, %v2174
          %v2301 = vmul.f32 %v2166, %v2174
          %v2302 = vmul.f32 %v2167, %v2174
          %v2303 = vmul.f32 %v2168, %v2174
          %v2304 = vld [vmem:[%s315] sm:$0x1]
          %v2306 = vlaneseq
          %v2307 = vshrl.u32 %v2306, 7
          %v2308 = vsub.s32 0, %v2307
          %v2309 = vrot.slane %v2304, %v2308
          %v2311 = vadd.f32 %v2176, %v2309
          %v2312 = vadd.f32 %v2177, %v2309
          %v2313 = vadd.f32 %v2178, %v2309
          %v2314 = vadd.f32 %v2179, %v2309
          %v2315 = vadd.f32 %v2180, %v2309
          %v2316 = vadd.f32 %v2181, %v2309
          %v2317 = vadd.f32 %v2182, %v2309
          %v2318 = vadd.f32 %v2183, %v2309
          %v2319 = vadd.f32 %v2184, %v2309
          %v2320 = vadd.f32 %v2185, %v2309
          %v2321 = vadd.f32 %v2186, %v2309
          %v2322 = vadd.f32 %v2187, %v2309
          %v2323 = vadd.f32 %v2188, %v2309
          %v2324 = vadd.f32 %v2189, %v2309
          %v2325 = vadd.f32 %v2190, %v2309
          %v2326 = vadd.f32 %v2191, %v2309
          %v2327 = vadd.f32 %v2192, %v2309
          %v2328 = vadd.f32 %v2193, %v2309
          %v2329 = vadd.f32 %v2194, %v2309
          %v2330 = vadd.f32 %v2195, %v2309
          %v2331 = vadd.f32 %v2196, %v2309
          %v2332 = vadd.f32 %v2197, %v2309
          %v2333 = vadd.f32 %v2198, %v2309
          %v2334 = vadd.f32 %v2199, %v2309
          %v2335 = vadd.f32 %v2200, %v2309
          %v2336 = vadd.f32 %v2201, %v2309
          %v2337 = vadd.f32 %v2202, %v2309
          %v2338 = vadd.f32 %v2203, %v2309
          %v2339 = vadd.f32 %v2204, %v2309
          %v2340 = vadd.f32 %v2205, %v2309
          %v2341 = vadd.f32 %v2206, %v2309
          %v2342 = vadd.f32 %v2207, %v2309
          %v2343 = vadd.f32 %v2208, %v2309
          %v2344 = vadd.f32 %v2209, %v2309
          %v2345 = vadd.f32 %v2210, %v2309
          %v2346 = vadd.f32 %v2211, %v2309
          %v2347 = vadd.f32 %v2212, %v2309
          %v2348 = vadd.f32 %v2213, %v2309
          %v2349 = vadd.f32 %v2214, %v2309
          %v2350 = vadd.f32 %v2215, %v2309
          %v2351 = vadd.f32 %v2216, %v2309
          %v2352 = vadd.f32 %v2217, %v2309
          %v2353 = vadd.f32 %v2218, %v2309
          %v2354 = vadd.f32 %v2219, %v2309
          %v2355 = vadd.f32 %v2220, %v2309
          %v2356 = vadd.f32 %v2221, %v2309
          %v2357 = vadd.f32 %v2222, %v2309
          %v2358 = vadd.f32 %v2223, %v2309
          %v2359 = vadd.f32 %v2224, %v2309
          %v2360 = vadd.f32 %v2225, %v2309
          %v2361 = vadd.f32 %v2226, %v2309
          %v2362 = vadd.f32 %v2227, %v2309
          %v2363 = vadd.f32 %v2228, %v2309
          %v2364 = vadd.f32 %v2229, %v2309
          %v2365 = vadd.f32 %v2230, %v2309
          %v2366 = vadd.f32 %v2231, %v2309
          %v2367 = vadd.f32 %v2232, %v2309
          %v2368 = vadd.f32 %v2233, %v2309
          %v2369 = vadd.f32 %v2234, %v2309
          %v2370 = vadd.f32 %v2235, %v2309
          %v2371 = vadd.f32 %v2236, %v2309
          %v2372 = vadd.f32 %v2237, %v2309
          %v2373 = vadd.f32 %v2238, %v2309
          %v2374 = vadd.f32 %v2239, %v2309
          %v2375 = vadd.f32 %v2240, %v2309
          %v2376 = vadd.f32 %v2241, %v2309
          %v2377 = vadd.f32 %v2242, %v2309
          %v2378 = vadd.f32 %v2243, %v2309
          %v2379 = vadd.f32 %v2244, %v2309
          %v2380 = vadd.f32 %v2245, %v2309
          %v2381 = vadd.f32 %v2246, %v2309
          %v2382 = vadd.f32 %v2247, %v2309
          %v2383 = vadd.f32 %v2248, %v2309
          %v2384 = vadd.f32 %v2249, %v2309
          %v2385 = vadd.f32 %v2250, %v2309
          %v2386 = vadd.f32 %v2251, %v2309
          %v2387 = vadd.f32 %v2252, %v2309
          %v2388 = vadd.f32 %v2253, %v2309
          %v2389 = vadd.f32 %v2254, %v2309
          %v2390 = vadd.f32 %v2255, %v2309
          %v2391 = vadd.f32 %v2256, %v2309
          %v2392 = vadd.f32 %v2257, %v2309
          %v2393 = vadd.f32 %v2258, %v2309
          %v2394 = vadd.f32 %v2259, %v2309
          %v2395 = vadd.f32 %v2260, %v2309
          %v2396 = vadd.f32 %v2261, %v2309
          %v2397 = vadd.f32 %v2262, %v2309
          %v2398 = vadd.f32 %v2263, %v2309
          %v2399 = vadd.f32 %v2264, %v2309
          %v2400 = vadd.f32 %v2265, %v2309
          %v2401 = vadd.f32 %v2266, %v2309
          %v2402 = vadd.f32 %v2267, %v2309
          %v2403 = vadd.f32 %v2268, %v2309
          %v2404 = vadd.f32 %v2269, %v2309
          %v2405 = vadd.f32 %v2270, %v2309
          %v2406 = vadd.f32 %v2271, %v2309
          %v2407 = vadd.f32 %v2272, %v2309
          %v2408 = vadd.f32 %v2273, %v2309
          %v2409 = vadd.f32 %v2274, %v2309
          %v2410 = vadd.f32 %v2275, %v2309
          %v2411 = vadd.f32 %v2276, %v2309
          %v2412 = vadd.f32 %v2277, %v2309
          %v2413 = vadd.f32 %v2278, %v2309
          %v2414 = vadd.f32 %v2279, %v2309
          %v2415 = vadd.f32 %v2280, %v2309
          %v2416 = vadd.f32 %v2281, %v2309
          %v2417 = vadd.f32 %v2282, %v2309
          %v2418 = vadd.f32 %v2283, %v2309
          %v2419 = vadd.f32 %v2284, %v2309
          %v2420 = vadd.f32 %v2285, %v2309
          %v2421 = vadd.f32 %v2286, %v2309
          %v2422 = vadd.f32 %v2287, %v2309
          %v2423 = vadd.f32 %v2288, %v2309
          %v2424 = vadd.f32 %v2289, %v2309
          %v2425 = vadd.f32 %v2290, %v2309
          %v2426 = vadd.f32 %v2291, %v2309
          %v2427 = vadd.f32 %v2292, %v2309
          %v2428 = vadd.f32 %v2293, %v2309
          %v2429 = vadd.f32 %v2294, %v2309
          %v2430 = vadd.f32 %v2295, %v2309
          %v2431 = vadd.f32 %v2296, %v2309
          %v2432 = vadd.f32 %v2297, %v2309
          %v2433 = vadd.f32 %v2298, %v2309
          %v2434 = vadd.f32 %v2299, %v2309
          %v2435 = vadd.f32 %v2300, %v2309
          %v2436 = vadd.f32 %v2301, %v2309
          %v2437 = vadd.f32 %v2302, %v2309
          %v2438 = vadd.f32 %v2303, %v2309
          %v2439 = vsub.f32 0.0, %v2311
          %v2440 = vsub.f32 0.0, %v2312
          %v2441 = vsub.f32 0.0, %v2313
          %v2442 = vsub.f32 0.0, %v2314
          %v2443 = vsub.f32 0.0, %v2315
          %v2444 = vsub.f32 0.0, %v2316
          %v2445 = vsub.f32 0.0, %v2317
          %v2446 = vsub.f32 0.0, %v2318
          %v2447 = vsub.f32 0.0, %v2319
          %v2448 = vsub.f32 0.0, %v2320
          %v2449 = vsub.f32 0.0, %v2321
          %v2450 = vsub.f32 0.0, %v2322
          %v2451 = vsub.f32 0.0, %v2323
          %v2452 = vsub.f32 0.0, %v2324
          %v2453 = vsub.f32 0.0, %v2325
          %v2454 = vsub.f32 0.0, %v2326
          %v2455 = vsub.f32 0.0, %v2327
          %v2456 = vsub.f32 0.0, %v2328
          %v2457 = vsub.f32 0.0, %v2329
          %v2458 = vsub.f32 0.0, %v2330
          %v2459 = vsub.f32 0.0, %v2331
          %v2460 = vsub.f32 0.0, %v2332
          %v2461 = vsub.f32 0.0, %v2333
          %v2462 = vsub.f32 0.0, %v2334
          %v2463 = vsub.f32 0.0, %v2335
          %v2464 = vsub.f32 0.0, %v2336
          %v2465 = vsub.f32 0.0, %v2337
          %v2466 = vsub.f32 0.0, %v2338
          %v2467 = vsub.f32 0.0, %v2339
          %v2468 = vsub.f32 0.0, %v2340
          %v2469 = vsub.f32 0.0, %v2341
          %v2470 = vsub.f32 0.0, %v2342
          %v2471 = vsub.f32 0.0, %v2343
          %v2472 = vsub.f32 0.0, %v2344
          %v2473 = vsub.f32 0.0, %v2345
          %v2474 = vsub.f32 0.0, %v2346
          %v2475 = vsub.f32 0.0, %v2347
          %v2476 = vsub.f32 0.0, %v2348
          %v2477 = vsub.f32 0.0, %v2349
          %v2478 = vsub.f32 0.0, %v2350
          %v2479 = vsub.f32 0.0, %v2351
          %v2480 = vsub.f32 0.0, %v2352
          %v2481 = vsub.f32 0.0, %v2353
          %v2482 = vsub.f32 0.0, %v2354
          %v2483 = vsub.f32 0.0, %v2355
          %v2484 = vsub.f32 0.0, %v2356
          %v2485 = vsub.f32 0.0, %v2357
          %v2486 = vsub.f32 0.0, %v2358
          %v2487 = vsub.f32 0.0, %v2359
          %v2488 = vsub.f32 0.0, %v2360
          %v2489 = vsub.f32 0.0, %v2361
          %v2490 = vsub.f32 0.0, %v2362
          %v2491 = vsub.f32 0.0, %v2363
          %v2492 = vsub.f32 0.0, %v2364
          %v2493 = vsub.f32 0.0, %v2365
          %v2494 = vsub.f32 0.0, %v2366
          %v2495 = vsub.f32 0.0, %v2367
          %v2496 = vsub.f32 0.0, %v2368
          %v2497 = vsub.f32 0.0, %v2369
          %v2498 = vsub.f32 0.0, %v2370
          %v2499 = vsub.f32 0.0, %v2371
          %v2500 = vsub.f32 0.0, %v2372
          %v2501 = vsub.f32 0.0, %v2373
          %v2502 = vsub.f32 0.0, %v2374
          %v2503 = vsub.f32 0.0, %v2375
          %v2504 = vsub.f32 0.0, %v2376
          %v2505 = vsub.f32 0.0, %v2377
          %v2506 = vsub.f32 0.0, %v2378
          %v2507 = vsub.f32 0.0, %v2379
          %v2508 = vsub.f32 0.0, %v2380
          %v2509 = vsub.f32 0.0, %v2381
          %v2510 = vsub.f32 0.0, %v2382
          %v2511 = vsub.f32 0.0, %v2383
          %v2512 = vsub.f32 0.0, %v2384
          %v2513 = vsub.f32 0.0, %v2385
          %v2514 = vsub.f32 0.0, %v2386
          %v2515 = vsub.f32 0.0, %v2387
          %v2516 = vsub.f32 0.0, %v2388
          %v2517 = vsub.f32 0.0, %v2389
          %v2518 = vsub.f32 0.0, %v2390
          %v2519 = vsub.f32 0.0, %v2391
          %v2520 = vsub.f32 0.0, %v2392
          %v2521 = vsub.f32 0.0, %v2393
          %v2522 = vsub.f32 0.0, %v2394
          %v2523 = vsub.f32 0.0, %v2395
          %v2524 = vsub.f32 0.0, %v2396
          %v2525 = vsub.f32 0.0, %v2397
          %v2526 = vsub.f32 0.0, %v2398
          %v2527 = vsub.f32 0.0, %v2399
          %v2528 = vsub.f32 0.0, %v2400
          %v2529 = vsub.f32 0.0, %v2401
          %v2530 = vsub.f32 0.0, %v2402
          %v2531 = vsub.f32 0.0, %v2403
          %v2532 = vsub.f32 0.0, %v2404
          %v2533 = vsub.f32 0.0, %v2405
          %v2534 = vsub.f32 0.0, %v2406
          %v2535 = vsub.f32 0.0, %v2407
          %v2536 = vsub.f32 0.0, %v2408
          %v2537 = vsub.f32 0.0, %v2409
          %v2538 = vsub.f32 0.0, %v2410
          %v2539 = vsub.f32 0.0, %v2411
          %v2540 = vsub.f32 0.0, %v2412
          %v2541 = vsub.f32 0.0, %v2413
          %v2542 = vsub.f32 0.0, %v2414
          %v2543 = vsub.f32 0.0, %v2415
          %v2544 = vsub.f32 0.0, %v2416
          %v2545 = vsub.f32 0.0, %v2417
          %v2546 = vsub.f32 0.0, %v2418
          %v2547 = vsub.f32 0.0, %v2419
          %v2548 = vsub.f32 0.0, %v2420
          %v2549 = vsub.f32 0.0, %v2421
          %v2550 = vsub.f32 0.0, %v2422
          %v2551 = vsub.f32 0.0, %v2423
          %v2552 = vsub.f32 0.0, %v2424
          %v2553 = vsub.f32 0.0, %v2425
          %v2554 = vsub.f32 0.0, %v2426
          %v2555 = vsub.f32 0.0, %v2427
          %v2556 = vsub.f32 0.0, %v2428
          %v2557 = vsub.f32 0.0, %v2429
          %v2558 = vsub.f32 0.0, %v2430
          %v2559 = vsub.f32 0.0, %v2431
          %v2560 = vsub.f32 0.0, %v2432
          %v2561 = vsub.f32 0.0, %v2433
          %v2562 = vsub.f32 0.0, %v2434
          %v2563 = vsub.f32 0.0, %v2435
          %v2564 = vsub.f32 0.0, %v2436
          %v2565 = vsub.f32 0.0, %v2437
          %v2566 = vsub.f32 0.0, %v2438
          %v2567 = vmul.f32 %v2439, 1.442695
          %v2568 = vpow.pop %v2567
          %v2569 = vmul.f32 %v2440, 1.442695
          %v2570 = vpow.pop %v2569
          %v2571 = vmul.f32 %v2441, 1.442695
          %v2572 = vpow.pop %v2571
          %v2573 = vmul.f32 %v2442, 1.442695
          %v2574 = vpow.pop %v2573
          %v2575 = vmul.f32 %v2443, 1.442695
          %v2576 = vpow.pop %v2575
          %v2577 = vmul.f32 %v2444, 1.442695
          %v2578 = vpow.pop %v2577
          %v2579 = vmul.f32 %v2445, 1.442695
          %v2580 = vpow.pop %v2579
          %v2581 = vmul.f32 %v2446, 1.442695
          %v2582 = vpow.pop %v2581
          %v2583 = vmul.f32 %v2447, 1.442695
          %v2584 = vpow.pop %v2583
          %v2585 = vmul.f32 %v2448, 1.442695
          %v2586 = vpow.pop %v2585
          %v2587 = vmul.f32 %v2449, 1.442695
          %v2588 = vpow.pop %v2587
          %v2589 = vmul.f32 %v2450, 1.442695
          %v2590 = vpow.pop %v2589
          %v2591 = vmul.f32 %v2451, 1.442695
          %v2592 = vpow.pop %v2591
          %v2593 = vmul.f32 %v2452, 1.442695
          %v2594 = vpow.pop %v2593
          %v2595 = vmul.f32 %v2453, 1.442695
          %v2596 = vpow.pop %v2595
          %v2597 = vmul.f32 %v2454, 1.442695
          %v2598 = vpow.pop %v2597
          %v2599 = vmul.f32 %v2455, 1.442695
          %v2600 = vpow.pop %v2599
          %v2601 = vmul.f32 %v2456, 1.442695
          %v2602 = vpow.pop %v2601
          %v2603 = vmul.f32 %v2457, 1.442695
          %v2604 = vpow.pop %v2603
          %v2605 = vmul.f32 %v2458, 1.442695
          %v2606 = vpow.pop %v2605
          %v2607 = vmul.f32 %v2459, 1.442695
          %v2608 = vpow.pop %v2607
          %v2609 = vmul.f32 %v2460, 1.442695
          %v2610 = vpow.pop %v2609
          %v2611 = vmul.f32 %v2461, 1.442695
          %v2612 = vpow.pop %v2611
          %v2613 = vmul.f32 %v2462, 1.442695
          %v2614 = vpow.pop %v2613
          %v2615 = vmul.f32 %v2463, 1.442695
          %v2616 = vpow.pop %v2615
          %v2617 = vmul.f32 %v2464, 1.442695
          %v2618 = vpow.pop %v2617
          %v2619 = vmul.f32 %v2465, 1.442695
          %v2620 = vpow.pop %v2619
          %v2621 = vmul.f32 %v2466, 1.442695
          %v2622 = vpow.pop %v2621
          %v2623 = vmul.f32 %v2467, 1.442695
          %v2624 = vpow.pop %v2623
          %v2625 = vmul.f32 %v2468, 1.442695
          %v2626 = vpow.pop %v2625
          %v2627 = vmul.f32 %v2469, 1.442695
          %v2628 = vpow.pop %v2627
          %v2629 = vmul.f32 %v2470, 1.442695
          %v2630 = vpow.pop %v2629
          %v2631 = vmul.f32 %v2471, 1.442695
          %v2632 = vpow.pop %v2631
          %v2633 = vmul.f32 %v2472, 1.442695
          %v2634 = vpow.pop %v2633
          %v2635 = vmul.f32 %v2473, 1.442695
          %v2636 = vpow.pop %v2635
          %v2637 = vmul.f32 %v2474, 1.442695
          %v2638 = vpow.pop %v2637
          %v2639 = vmul.f32 %v2475, 1.442695
          %v2640 = vpow.pop %v2639
          %v2641 = vmul.f32 %v2476, 1.442695
          %v2642 = vpow.pop %v2641
          %v2643 = vmul.f32 %v2477, 1.442695
          %v2644 = vpow.pop %v2643
          %v2645 = vmul.f32 %v2478, 1.442695
          %v2646 = vpow.pop %v2645
          %v2647 = vmul.f32 %v2479, 1.442695
          %v2648 = vpow.pop %v2647
          %v2649 = vmul.f32 %v2480, 1.442695
          %v2650 = vpow.pop %v2649
          %v2651 = vmul.f32 %v2481, 1.442695
          %v2652 = vpow.pop %v2651
          %v2653 = vmul.f32 %v2482, 1.442695
          %v2654 = vpow.pop %v2653
          %v2655 = vmul.f32 %v2483, 1.442695
          %v2656 = vpow.pop %v2655
          %v2657 = vmul.f32 %v2484, 1.442695
          %v2658 = vpow.pop %v2657
          %v2659 = vmul.f32 %v2485, 1.442695
          %v2660 = vpow.pop %v2659
          %v2661 = vmul.f32 %v2486, 1.442695
          %v2662 = vpow.pop %v2661
          %v2663 = vmul.f32 %v2487, 1.442695
          %v2664 = vpow.pop %v2663
          %v2665 = vmul.f32 %v2488, 1.442695
          %v2666 = vpow.pop %v2665
          %v2667 = vmul.f32 %v2489, 1.442695
          %v2668 = vpow.pop %v2667
          %v2669 = vmul.f32 %v2490, 1.442695
          %v2670 = vpow.pop %v2669
          %v2671 = vmul.f32 %v2491, 1.442695
          %v2672 = vpow.pop %v2671
          %v2673 = vmul.f32 %v2492, 1.442695
          %v2674 = vpow.pop %v2673
          %v2675 = vmul.f32 %v2493, 1.442695
          %v2676 = vpow.pop %v2675
          %v2677 = vmul.f32 %v2494, 1.442695
          %v2678 = vpow.pop %v2677
          %v2679 = vmul.f32 %v2495, 1.442695
          %v2680 = vpow.pop %v2679
          %v2681 = vmul.f32 %v2496, 1.442695
          %v2682 = vpow.pop %v2681
          %v2683 = vmul.f32 %v2497, 1.442695
          %v2684 = vpow.pop %v2683
          %v2685 = vmul.f32 %v2498, 1.442695
          %v2686 = vpow.pop %v2685
          %v2687 = vmul.f32 %v2499, 1.442695
          %v2688 = vpow.pop %v2687
          %v2689 = vmul.f32 %v2500, 1.442695
          %v2690 = vpow.pop %v2689
          %v2691 = vmul.f32 %v2501, 1.442695
          %v2692 = vpow.pop %v2691
          %v2693 = vmul.f32 %v2502, 1.442695
          %v2694 = vpow.pop %v2693
          %v2695 = vmul.f32 %v2503, 1.442695
          %v2696 = vpow.pop %v2695
          %v2697 = vmul.f32 %v2504, 1.442695
          %v2698 = vpow.pop %v2697
          %v2699 = vmul.f32 %v2505, 1.442695
          %v2700 = vpow.pop %v2699
          %v2701 = vmul.f32 %v2506, 1.442695
          %v2702 = vpow.pop %v2701
          %v2703 = vmul.f32 %v2507, 1.442695
          %v2704 = vpow.pop %v2703
          %v2705 = vmul.f32 %v2508, 1.442695
          %v2706 = vpow.pop %v2705
          %v2707 = vmul.f32 %v2509, 1.442695
          %v2708 = vpow.pop %v2707
          %v2709 = vmul.f32 %v2510, 1.442695
          %v2710 = vpow.pop %v2709
          %v2711 = vmul.f32 %v2511, 1.442695
          %v2712 = vpow.pop %v2711
          %v2713 = vmul.f32 %v2512, 1.442695
          %v2714 = vpow.pop %v2713
          %v2715 = vmul.f32 %v2513, 1.442695
          %v2716 = vpow.pop %v2715
          %v2717 = vmul.f32 %v2514, 1.442695
          %v2718 = vpow.pop %v2717
          %v2719 = vmul.f32 %v2515, 1.442695
          %v2720 = vpow.pop %v2719
          %v2721 = vmul.f32 %v2516, 1.442695
          %v2722 = vpow.pop %v2721
          %v2723 = vmul.f32 %v2517, 1.442695
          %v2724 = vpow.pop %v2723
          %v2725 = vmul.f32 %v2518, 1.442695
          %v2726 = vpow.pop %v2725
          %v2727 = vmul.f32 %v2519, 1.442695
          %v2728 = vpow.pop %v2727
          %v2729 = vmul.f32 %v2520, 1.442695
          %v2730 = vpow.pop %v2729
          %v2731 = vmul.f32 %v2521, 1.442695
          %v2732 = vpow.pop %v2731
          %v2733 = vmul.f32 %v2522, 1.442695
          %v2734 = vpow.pop %v2733
          %v2735 = vmul.f32 %v2523, 1.442695
          %v2736 = vpow.pop %v2735
          %v2737 = vmul.f32 %v2524, 1.442695
          %v2738 = vpow.pop %v2737
          %v2739 = vmul.f32 %v2525, 1.442695
          %v2740 = vpow.pop %v2739
          %v2741 = vmul.f32 %v2526, 1.442695
          %v2742 = vpow.pop %v2741
          %v2743 = vmul.f32 %v2527, 1.442695
          %v2744 = vpow.pop %v2743
          %v2745 = vmul.f32 %v2528, 1.442695
          %v2746 = vpow.pop %v2745
          %v2747 = vmul.f32 %v2529, 1.442695
          %v2748 = vpow.pop %v2747
          %v2749 = vmul.f32 %v2530, 1.442695
          %v2750 = vpow.pop %v2749
          %v2751 = vmul.f32 %v2531, 1.442695
          %v2752 = vpow.pop %v2751
          %v2753 = vmul.f32 %v2532, 1.442695
          %v2754 = vpow.pop %v2753
          %v2755 = vmul.f32 %v2533, 1.442695
          %v2756 = vpow.pop %v2755
          %v2757 = vmul.f32 %v2534, 1.442695
          %v2758 = vpow.pop %v2757
          %v2759 = vmul.f32 %v2535, 1.442695
          %v2760 = vpow.pop %v2759
          %v2761 = vmul.f32 %v2536, 1.442695
          %v2762 = vpow.pop %v2761
          %v2763 = vmul.f32 %v2537, 1.442695
          %v2764 = vpow.pop %v2763
          %v2765 = vmul.f32 %v2538, 1.442695
          %v2766 = vpow.pop %v2765
          %v2767 = vmul.f32 %v2539, 1.442695
          %v2768 = vpow.pop %v2767
          %v2769 = vmul.f32 %v2540, 1.442695
          %v2770 = vpow.pop %v2769
          %v2771 = vmul.f32 %v2541, 1.442695
          %v2772 = vpow.pop %v2771
          %v2773 = vmul.f32 %v2542, 1.442695
          %v2774 = vpow.pop %v2773
          %v2775 = vmul.f32 %v2543, 1.442695
          %v2776 = vpow.pop %v2775
          %v2777 = vmul.f32 %v2544, 1.442695
          %v2778 = vpow.pop %v2777
          %v2779 = vmul.f32 %v2545, 1.442695
          %v2780 = vpow.pop %v2779
          %v2781 = vmul.f32 %v2546, 1.442695
          %v2782 = vpow.pop %v2781
          %v2783 = vmul.f32 %v2547, 1.442695
          %v2784 = vpow.pop %v2783
          %v2785 = vmul.f32 %v2548, 1.442695
          %v2786 = vpow.pop %v2785
          %v2787 = vmul.f32 %v2549, 1.442695
          %v2788 = vpow.pop %v2787
          %v2789 = vmul.f32 %v2550, 1.442695
          %v2790 = vpow.pop %v2789
          %v2791 = vmul.f32 %v2551, 1.442695
          %v2792 = vpow.pop %v2791
          %v2793 = vmul.f32 %v2552, 1.442695
          %v2794 = vpow.pop %v2793
          %v2795 = vmul.f32 %v2553, 1.442695
          %v2796 = vpow.pop %v2795
          %v2797 = vmul.f32 %v2554, 1.442695
          %v2798 = vpow.pop %v2797
          %v2799 = vmul.f32 %v2555, 1.442695
          %v2800 = vpow.pop %v2799
          %v2801 = vmul.f32 %v2556, 1.442695
          %v2802 = vpow.pop %v2801
          %v2803 = vmul.f32 %v2557, 1.442695
          %v2804 = vpow.pop %v2803
          %v2805 = vmul.f32 %v2558, 1.442695
          %v2806 = vpow.pop %v2805
          %v2807 = vmul.f32 %v2559, 1.442695
          %v2808 = vpow.pop %v2807
          %v2809 = vmul.f32 %v2560, 1.442695
          %v2810 = vpow.pop %v2809
          %v2811 = vmul.f32 %v2561, 1.442695
          %v2812 = vpow.pop %v2811
          %v2813 = vmul.f32 %v2562, 1.442695
          %v2814 = vpow.pop %v2813
          %v2815 = vmul.f32 %v2563, 1.442695
          %v2816 = vpow.pop %v2815
          %v2817 = vmul.f32 %v2564, 1.442695
          %v2818 = vpow.pop %v2817
          %v2819 = vmul.f32 %v2565, 1.442695
          %v2820 = vpow.pop %v2819
          %v2821 = vmul.f32 %v2566, 1.442695
          %v2822 = vpow.pop %v2821
          %v2823 = vadd.f32 %v2568, 1.0
          %v2824 = vadd.f32 %v2570, 1.0
          %v2825 = vadd.f32 %v2572, 1.0
          %v2826 = vadd.f32 %v2574, 1.0
          %v2827 = vadd.f32 %v2576, 1.0
          %v2828 = vadd.f32 %v2578, 1.0
          %v2829 = vadd.f32 %v2580, 1.0
          %v2830 = vadd.f32 %v2582, 1.0
          %v2831 = vadd.f32 %v2584, 1.0
          %v2832 = vadd.f32 %v2586, 1.0
          %v2833 = vadd.f32 %v2588, 1.0
          %v2834 = vadd.f32 %v2590, 1.0
          %v2835 = vadd.f32 %v2592, 1.0
          %v2836 = vadd.f32 %v2594, 1.0
          %v2837 = vadd.f32 %v2596, 1.0
          %v2838 = vadd.f32 %v2598, 1.0
          %v2839 = vadd.f32 %v2600, 1.0
          %v2840 = vadd.f32 %v2602, 1.0
          %v2841 = vadd.f32 %v2604, 1.0
          %v2842 = vadd.f32 %v2606, 1.0
          %v2843 = vadd.f32 %v2608, 1.0
          %v2844 = vadd.f32 %v2610, 1.0
          %v2845 = vadd.f32 %v2612, 1.0
          %v2846 = vadd.f32 %v2614, 1.0
          %v2847 = vadd.f32 %v2616, 1.0
          %v2848 = vadd.f32 %v2618, 1.0
          %v2849 = vadd.f32 %v2620, 1.0
          %v2850 = vadd.f32 %v2622, 1.0
          %v2851 = vadd.f32 %v2624, 1.0
          %v2852 = vadd.f32 %v2626, 1.0
          %v2853 = vadd.f32 %v2628, 1.0
          %v2854 = vadd.f32 %v2630, 1.0
          %v2855 = vadd.f32 %v2632, 1.0
          %v2856 = vadd.f32 %v2634, 1.0
          %v2857 = vadd.f32 %v2636, 1.0
          %v2858 = vadd.f32 %v2638, 1.0
          %v2859 = vadd.f32 %v2640, 1.0
          %v2860 = vadd.f32 %v2642, 1.0
          %v2861 = vadd.f32 %v2644, 1.0
          %v2862 = vadd.f32 %v2646, 1.0
          %v2863 = vadd.f32 %v2648, 1.0
          %v2864 = vadd.f32 %v2650, 1.0
          %v2865 = vadd.f32 %v2652, 1.0
          %v2866 = vadd.f32 %v2654, 1.0
          %v2867 = vadd.f32 %v2656, 1.0
          %v2868 = vadd.f32 %v2658, 1.0
          %v2869 = vadd.f32 %v2660, 1.0
          %v2870 = vadd.f32 %v2662, 1.0
          %v2871 = vadd.f32 %v2664, 1.0
          %v2872 = vadd.f32 %v2666, 1.0
          %v2873 = vadd.f32 %v2668, 1.0
          %v2874 = vadd.f32 %v2670, 1.0
          %v2875 = vadd.f32 %v2672, 1.0
          %v2876 = vadd.f32 %v2674, 1.0
          %v2877 = vadd.f32 %v2676, 1.0
          %v2878 = vadd.f32 %v2678, 1.0
          %v2879 = vadd.f32 %v2680, 1.0
          %v2880 = vadd.f32 %v2682, 1.0
          %v2881 = vadd.f32 %v2684, 1.0
          %v2882 = vadd.f32 %v2686, 1.0
          %v2883 = vadd.f32 %v2688, 1.0
          %v2884 = vadd.f32 %v2690, 1.0
          %v2885 = vadd.f32 %v2692, 1.0
          %v2886 = vadd.f32 %v2694, 1.0
          %v2887 = vadd.f32 %v2696, 1.0
          %v2888 = vadd.f32 %v2698, 1.0
          %v2889 = vadd.f32 %v2700, 1.0
          %v2890 = vadd.f32 %v2702, 1.0
          %v2891 = vadd.f32 %v2704, 1.0
          %v2892 = vadd.f32 %v2706, 1.0
          %v2893 = vadd.f32 %v2708, 1.0
          %v2894 = vadd.f32 %v2710, 1.0
          %v2895 = vadd.f32 %v2712, 1.0
          %v2896 = vadd.f32 %v2714, 1.0
          %v2897 = vadd.f32 %v2716, 1.0
          %v2898 = vadd.f32 %v2718, 1.0
          %v2899 = vadd.f32 %v2720, 1.0
          %v2900 = vadd.f32 %v2722, 1.0
          %v2901 = vadd.f32 %v2724, 1.0
          %v2902 = vadd.f32 %v2726, 1.0
          %v2903 = vadd.f32 %v2728, 1.0
          %v2904 = vadd.f32 %v2730, 1.0
          %v2905 = vadd.f32 %v2732, 1.0
          %v2906 = vadd.f32 %v2734, 1.0
          %v2907 = vadd.f32 %v2736, 1.0
          %v2908 = vadd.f32 %v2738, 1.0
          %v2909 = vadd.f32 %v2740, 1.0
          %v2910 = vadd.f32 %v2742, 1.0
          %v2911 = vadd.f32 %v2744, 1.0
          %v2912 = vadd.f32 %v2746, 1.0
          %v2913 = vadd.f32 %v2748, 1.0
          %v2914 = vadd.f32 %v2750, 1.0
          %v2915 = vadd.f32 %v2752, 1.0
          %v2916 = vadd.f32 %v2754, 1.0
          %v2917 = vadd.f32 %v2756, 1.0
          %v2918 = vadd.f32 %v2758, 1.0
          %v2919 = vadd.f32 %v2760, 1.0
          %v2920 = vadd.f32 %v2762, 1.0
          %v2921 = vadd.f32 %v2764, 1.0
          %v2922 = vadd.f32 %v2766, 1.0
          %v2923 = vadd.f32 %v2768, 1.0
          %v2924 = vadd.f32 %v2770, 1.0
          %v2925 = vadd.f32 %v2772, 1.0
          %v2926 = vadd.f32 %v2774, 1.0
          %v2927 = vadd.f32 %v2776, 1.0
          %v2928 = vadd.f32 %v2778, 1.0
          %v2929 = vadd.f32 %v2780, 1.0
          %v2930 = vadd.f32 %v2782, 1.0
          %v2931 = vadd.f32 %v2784, 1.0
          %v2932 = vadd.f32 %v2786, 1.0
          %v2933 = vadd.f32 %v2788, 1.0
          %v2934 = vadd.f32 %v2790, 1.0
          %v2935 = vadd.f32 %v2792, 1.0
          %v2936 = vadd.f32 %v2794, 1.0
          %v2937 = vadd.f32 %v2796, 1.0
          %v2938 = vadd.f32 %v2798, 1.0
          %v2939 = vadd.f32 %v2800, 1.0
          %v2940 = vadd.f32 %v2802, 1.0
          %v2941 = vadd.f32 %v2804, 1.0
          %v2942 = vadd.f32 %v2806, 1.0
          %v2943 = vadd.f32 %v2808, 1.0
          %v2944 = vadd.f32 %v2810, 1.0
          %v2945 = vadd.f32 %v2812, 1.0
          %v2946 = vadd.f32 %v2814, 1.0
          %v2947 = vadd.f32 %v2816, 1.0
          %v2948 = vadd.f32 %v2818, 1.0
          %v2949 = vadd.f32 %v2820, 1.0
          %v2950 = vadd.f32 %v2822, 1.0
          %v2951 = vrcp.pop %v2823
          %v2952 = vmul.f32 1.0, %v2951
          %v2953 = vrcp.pop %v2824
          %v2954 = vmul.f32 1.0, %v2953
          %v2955 = vrcp.pop %v2825
          %v2956 = vmul.f32 1.0, %v2955
          %v2957 = vrcp.pop %v2826
          %v2958 = vmul.f32 1.0, %v2957
          %v2959 = vrcp.pop %v2827
          %v2960 = vmul.f32 1.0, %v2959
          %v2961 = vrcp.pop %v2828
          %v2962 = vmul.f32 1.0, %v2961
          %v2963 = vrcp.pop %v2829
          %v2964 = vmul.f32 1.0, %v2963
          %v2965 = vrcp.pop %v2830
          %v2966 = vmul.f32 1.0, %v2965
          %v2967 = vrcp.pop %v2831
          %v2968 = vmul.f32 1.0, %v2967
          %v2969 = vrcp.pop %v2832
          %v2970 = vmul.f32 1.0, %v2969
          %v2971 = vrcp.pop %v2833
          %v2972 = vmul.f32 1.0, %v2971
          %v2973 = vrcp.pop %v2834
          %v2974 = vmul.f32 1.0, %v2973
          %v2975 = vrcp.pop %v2835
          %v2976 = vmul.f32 1.0, %v2975
          %v2977 = vrcp.pop %v2836
          %v2978 = vmul.f32 1.0, %v2977
          %v2979 = vrcp.pop %v2837
          %v2980 = vmul.f32 1.0, %v2979
          %v2981 = vrcp.pop %v2838
          %v2982 = vmul.f32 1.0, %v2981
          %v2983 = vrcp.pop %v2839
          %v2984 = vmul.f32 1.0, %v2983
          %v2985 = vrcp.pop %v2840
          %v2986 = vmul.f32 1.0, %v2985
          %v2987 = vrcp.pop %v2841
          %v2988 = vmul.f32 1.0, %v2987
          %v2989 = vrcp.pop %v2842
          %v2990 = vmul.f32 1.0, %v2989
          %v2991 = vrcp.pop %v2843
          %v2992 = vmul.f32 1.0, %v2991
          %v2993 = vrcp.pop %v2844
          %v2994 = vmul.f32 1.0, %v2993
          %v2995 = vrcp.pop %v2845
          %v2996 = vmul.f32 1.0, %v2995
          %v2997 = vrcp.pop %v2846
          %v2998 = vmul.f32 1.0, %v2997
          %v2999 = vrcp.pop %v2847
          %v3000 = vmul.f32 1.0, %v2999
          %v3001 = vrcp.pop %v2848
          %v3002 = vmul.f32 1.0, %v3001
          %v3003 = vrcp.pop %v2849
          %v3004 = vmul.f32 1.0, %v3003
          %v3005 = vrcp.pop %v2850
          %v3006 = vmul.f32 1.0, %v3005
          %v3007 = vrcp.pop %v2851
          %v3008 = vmul.f32 1.0, %v3007
          %v3009 = vrcp.pop %v2852
          %v3010 = vmul.f32 1.0, %v3009
          %v3011 = vrcp.pop %v2853
          %v3012 = vmul.f32 1.0, %v3011
          %v3013 = vrcp.pop %v2854
          %v3014 = vmul.f32 1.0, %v3013
          %v3015 = vrcp.pop %v2855
          %v3016 = vmul.f32 1.0, %v3015
          %v3017 = vrcp.pop %v2856
          %v3018 = vmul.f32 1.0, %v3017
          %v3019 = vrcp.pop %v2857
          %v3020 = vmul.f32 1.0, %v3019
          %v3021 = vrcp.pop %v2858
          %v3022 = vmul.f32 1.0, %v3021
          %v3023 = vrcp.pop %v2859
          %v3024 = vmul.f32 1.0, %v3023
          %v3025 = vrcp.pop %v2860
          %v3026 = vmul.f32 1.0, %v3025
          %v3027 = vrcp.pop %v2861
          %v3028 = vmul.f32 1.0, %v3027
          %v3029 = vrcp.pop %v2862
          %v3030 = vmul.f32 1.0, %v3029
          %v3031 = vrcp.pop %v2863
          %v3032 = vmul.f32 1.0, %v3031
          %v3033 = vrcp.pop %v2864
          %v3034 = vmul.f32 1.0, %v3033
          %v3035 = vrcp.pop %v2865
          %v3036 = vmul.f32 1.0, %v3035
          %v3037 = vrcp.pop %v2866
          %v3038 = vmul.f32 1.0, %v3037
          %v3039 = vrcp.pop %v2867
          %v3040 = vmul.f32 1.0, %v3039
          %v3041 = vrcp.pop %v2868
          %v3042 = vmul.f32 1.0, %v3041
          %v3043 = vrcp.pop %v2869
          %v3044 = vmul.f32 1.0, %v3043
          %v3045 = vrcp.pop %v2870
          %v3046 = vmul.f32 1.0, %v3045
          %v3047 = vrcp.pop %v2871
          %v3048 = vmul.f32 1.0, %v3047
          %v3049 = vrcp.pop %v2872
          %v3050 = vmul.f32 1.0, %v3049
          %v3051 = vrcp.pop %v2873
          %v3052 = vmul.f32 1.0, %v3051
          %v3053 = vrcp.pop %v2874
          %v3054 = vmul.f32 1.0, %v3053
          %v3055 = vrcp.pop %v2875
          %v3056 = vmul.f32 1.0, %v3055
          %v3057 = vrcp.pop %v2876
          %v3058 = vmul.f32 1.0, %v3057
          %v3059 = vrcp.pop %v2877
          %v3060 = vmul.f32 1.0, %v3059
          %v3061 = vrcp.pop %v2878
          %v3062 = vmul.f32 1.0, %v3061
          %v3063 = vrcp.pop %v2879
          %v3064 = vmul.f32 1.0, %v3063
          %v3065 = vrcp.pop %v2880
          %v3066 = vmul.f32 1.0, %v3065
          %v3067 = vrcp.pop %v2881
          %v3068 = vmul.f32 1.0, %v3067
          %v3069 = vrcp.pop %v2882
          %v3070 = vmul.f32 1.0, %v3069
          %v3071 = vrcp.pop %v2883
          %v3072 = vmul.f32 1.0, %v3071
          %v3073 = vrcp.pop %v2884
          %v3074 = vmul.f32 1.0, %v3073
          %v3075 = vrcp.pop %v2885
          %v3076 = vmul.f32 1.0, %v3075
          %v3077 = vrcp.pop %v2886
          %v3078 = vmul.f32 1.0, %v3077
          %v3079 = vrcp.pop %v2887
          %v3080 = vmul.f32 1.0, %v3079
          %v3081 = vrcp.pop %v2888
          %v3082 = vmul.f32 1.0, %v3081
          %v3083 = vrcp.pop %v2889
          %v3084 = vmul.f32 1.0, %v3083
          %v3085 = vrcp.pop %v2890
          %v3086 = vmul.f32 1.0, %v3085
          %v3087 = vrcp.pop %v2891
          %v3088 = vmul.f32 1.0, %v3087
          %v3089 = vrcp.pop %v2892
          %v3090 = vmul.f32 1.0, %v3089
          %v3091 = vrcp.pop %v2893
          %v3092 = vmul.f32 1.0, %v3091
          %v3093 = vrcp.pop %v2894
          %v3094 = vmul.f32 1.0, %v3093
          %v3095 = vrcp.pop %v2895
          %v3096 = vmul.f32 1.0, %v3095
          %v3097 = vrcp.pop %v2896
          %v3098 = vmul.f32 1.0, %v3097
          %v3099 = vrcp.pop %v2897
          %v3100 = vmul.f32 1.0, %v3099
          %v3101 = vrcp.pop %v2898
          %v3102 = vmul.f32 1.0, %v3101
          %v3103 = vrcp.pop %v2899
          %v3104 = vmul.f32 1.0, %v3103
          %v3105 = vrcp.pop %v2900
          %v3106 = vmul.f32 1.0, %v3105
          %v3107 = vrcp.pop %v2901
          %v3108 = vmul.f32 1.0, %v3107
          %v3109 = vrcp.pop %v2902
          %v3110 = vmul.f32 1.0, %v3109
          %v3111 = vrcp.pop %v2903
          %v3112 = vmul.f32 1.0, %v3111
          %v3113 = vrcp.pop %v2904
          %v3114 = vmul.f32 1.0, %v3113
          %v3115 = vrcp.pop %v2905
          %v3116 = vmul.f32 1.0, %v3115
          %v3117 = vrcp.pop %v2906
          %v3118 = vmul.f32 1.0, %v3117
          %v3119 = vrcp.pop %v2907
          %v3120 = vmul.f32 1.0, %v3119
          %v3121 = vrcp.pop %v2908
          %v3122 = vmul.f32 1.0, %v3121
          %v3123 = vrcp.pop %v2909
          %v3124 = vmul.f32 1.0, %v3123
          %v3125 = vrcp.pop %v2910
          %v3126 = vmul.f32 1.0, %v3125
          %v3127 = vrcp.pop %v2911
          %v3128 = vmul.f32 1.0, %v3127
          %v3129 = vrcp.pop %v2912
          %v3130 = vmul.f32 1.0, %v3129
          %v3131 = vrcp.pop %v2913
          %v3132 = vmul.f32 1.0, %v3131
          %v3133 = vrcp.pop %v2914
          %v3134 = vmul.f32 1.0, %v3133
          %v3135 = vrcp.pop %v2915
          %v3136 = vmul.f32 1.0, %v3135
          %v3137 = vrcp.pop %v2916
          %v3138 = vmul.f32 1.0, %v3137
          %v3139 = vrcp.pop %v2917
          %v3140 = vmul.f32 1.0, %v3139
          %v3141 = vrcp.pop %v2918
          %v3142 = vmul.f32 1.0, %v3141
          %v3143 = vrcp.pop %v2919
          %v3144 = vmul.f32 1.0, %v3143
          %v3145 = vrcp.pop %v2920
          %v3146 = vmul.f32 1.0, %v3145
          %v3147 = vrcp.pop %v2921
          %v3148 = vmul.f32 1.0, %v3147
          %v3149 = vrcp.pop %v2922
          %v3150 = vmul.f32 1.0, %v3149
          %v3151 = vrcp.pop %v2923
          %v3152 = vmul.f32 1.0, %v3151
          %v3153 = vrcp.pop %v2924
          %v3154 = vmul.f32 1.0, %v3153
          %v3155 = vrcp.pop %v2925
          %v3156 = vmul.f32 1.0, %v3155
          %v3157 = vrcp.pop %v2926
          %v3158 = vmul.f32 1.0, %v3157
          %v3159 = vrcp.pop %v2927
          %v3160 = vmul.f32 1.0, %v3159
          %v3161 = vrcp.pop %v2928
          %v3162 = vmul.f32 1.0, %v3161
          %v3163 = vrcp.pop %v2929
          %v3164 = vmul.f32 1.0, %v3163
          %v3165 = vrcp.pop %v2930
          %v3166 = vmul.f32 1.0, %v3165
          %v3167 = vrcp.pop %v2931
          %v3168 = vmul.f32 1.0, %v3167
          %v3169 = vrcp.pop %v2932
          %v3170 = vmul.f32 1.0, %v3169
          %v3171 = vrcp.pop %v2933
          %v3172 = vmul.f32 1.0, %v3171
          %v3173 = vrcp.pop %v2934
          %v3174 = vmul.f32 1.0, %v3173
          %v3175 = vrcp.pop %v2935
          %v3176 = vmul.f32 1.0, %v3175
          %v3177 = vrcp.pop %v2936
          %v3178 = vmul.f32 1.0, %v3177
          %v3179 = vrcp.pop %v2937
          %v3180 = vmul.f32 1.0, %v3179
          %v3181 = vrcp.pop %v2938
          %v3182 = vmul.f32 1.0, %v3181
          %v3183 = vrcp.pop %v2939
          %v3184 = vmul.f32 1.0, %v3183
          %v3185 = vrcp.pop %v2940
          %v3186 = vmul.f32 1.0, %v3185
          %v3187 = vrcp.pop %v2941
          %v3188 = vmul.f32 1.0, %v3187
          %v3189 = vrcp.pop %v2942
          %v3190 = vmul.f32 1.0, %v3189
          %v3191 = vrcp.pop %v2943
          %v3192 = vmul.f32 1.0, %v3191
          %v3193 = vrcp.pop %v2944
          %v3194 = vmul.f32 1.0, %v3193
          %v3195 = vrcp.pop %v2945
          %v3196 = vmul.f32 1.0, %v3195
          %v3197 = vrcp.pop %v2946
          %v3198 = vmul.f32 1.0, %v3197
          %v3199 = vrcp.pop %v2947
          %v3200 = vmul.f32 1.0, %v3199
          %v3201 = vrcp.pop %v2948
          %v3202 = vmul.f32 1.0, %v3201
          %v3203 = vrcp.pop %v2949
          %v3204 = vmul.f32 1.0, %v3203
          %v3205 = vrcp.pop %v2950
          %v3206 = vmul.f32 1.0, %v3205
          %v3207 = vmul.f32 %v2311, %v2952
          %v3208 = vmul.f32 %v2312, %v2954
          %v3209 = vmul.f32 %v2313, %v2956
          %v3210 = vmul.f32 %v2314, %v2958
          %v3211 = vmul.f32 %v2315, %v2960
          %v3212 = vmul.f32 %v2316, %v2962
          %v3213 = vmul.f32 %v2317, %v2964
          %v3214 = vmul.f32 %v2318, %v2966
          %v3215 = vmul.f32 %v2319, %v2968
          %v3216 = vmul.f32 %v2320, %v2970
          %v3217 = vmul.f32 %v2321, %v2972
          %v3218 = vmul.f32 %v2322, %v2974
          %v3219 = vmul.f32 %v2323, %v2976
          %v3220 = vmul.f32 %v2324, %v2978
          %v3221 = vmul.f32 %v2325, %v2980
          %v3222 = vmul.f32 %v2326, %v2982
          %v3223 = vmul.f32 %v2327, %v2984
          %v3224 = vmul.f32 %v2328, %v2986
          %v3225 = vmul.f32 %v2329, %v2988
          %v3226 = vmul.f32 %v2330, %v2990
          %v3227 = vmul.f32 %v2331, %v2992
          %v3228 = vmul.f32 %v2332, %v2994
          %v3229 = vmul.f32 %v2333, %v2996
          %v3230 = vmul.f32 %v2334, %v2998
          %v3231 = vmul.f32 %v2335, %v3000
          %v3232 = vmul.f32 %v2336, %v3002
          %v3233 = vmul.f32 %v2337, %v3004
          %v3234 = vmul.f32 %v2338, %v3006
          %v3235 = vmul.f32 %v2339, %v3008
          %v3236 = vmul.f32 %v2340, %v3010
          %v3237 = vmul.f32 %v2341, %v3012
          %v3238 = vmul.f32 %v2342, %v3014
          %v3239 = vmul.f32 %v2343, %v3016
          %v3240 = vmul.f32 %v2344, %v3018
          %v3241 = vmul.f32 %v2345, %v3020
          %v3242 = vmul.f32 %v2346, %v3022
          %v3243 = vmul.f32 %v2347, %v3024
          %v3244 = vmul.f32 %v2348, %v3026
          %v3245 = vmul.f32 %v2349, %v3028
          %v3246 = vmul.f32 %v2350, %v3030
          %v3247 = vmul.f32 %v2351, %v3032
          %v3248 = vmul.f32 %v2352, %v3034
          %v3249 = vmul.f32 %v2353, %v3036
          %v3250 = vmul.f32 %v2354, %v3038
          %v3251 = vmul.f32 %v2355, %v3040
          %v3252 = vmul.f32 %v2356, %v3042
          %v3253 = vmul.f32 %v2357, %v3044
          %v3254 = vmul.f32 %v2358, %v3046
          %v3255 = vmul.f32 %v2359, %v3048
          %v3256 = vmul.f32 %v2360, %v3050
          %v3257 = vmul.f32 %v2361, %v3052
          %v3258 = vmul.f32 %v2362, %v3054
          %v3259 = vmul.f32 %v2363, %v3056
          %v3260 = vmul.f32 %v2364, %v3058
          %v3261 = vmul.f32 %v2365, %v3060
          %v3262 = vmul.f32 %v2366, %v3062
          %v3263 = vmul.f32 %v2367, %v3064
          %v3264 = vmul.f32 %v2368, %v3066
          %v3265 = vmul.f32 %v2369, %v3068
          %v3266 = vmul.f32 %v2370, %v3070
          %v3267 = vmul.f32 %v2371, %v3072
          %v3268 = vmul.f32 %v2372, %v3074
          %v3269 = vmul.f32 %v2373, %v3076
          %v3270 = vmul.f32 %v2374, %v3078
          %v3271 = vmul.f32 %v2375, %v3080
          %v3272 = vmul.f32 %v2376, %v3082
          %v3273 = vmul.f32 %v2377, %v3084
          %v3274 = vmul.f32 %v2378, %v3086
          %v3275 = vmul.f32 %v2379, %v3088
          %v3276 = vmul.f32 %v2380, %v3090
          %v3277 = vmul.f32 %v2381, %v3092
          %v3278 = vmul.f32 %v2382, %v3094
          %v3279 = vmul.f32 %v2383, %v3096
          %v3280 = vmul.f32 %v2384, %v3098
          %v3281 = vmul.f32 %v2385, %v3100
          %v3282 = vmul.f32 %v2386, %v3102
          %v3283 = vmul.f32 %v2387, %v3104
          %v3284 = vmul.f32 %v2388, %v3106
          %v3285 = vmul.f32 %v2389, %v3108
          %v3286 = vmul.f32 %v2390, %v3110
          %v3287 = vmul.f32 %v2391, %v3112
          %v3288 = vmul.f32 %v2392, %v3114
          %v3289 = vmul.f32 %v2393, %v3116
          %v3290 = vmul.f32 %v2394, %v3118
          %v3291 = vmul.f32 %v2395, %v3120
          %v3292 = vmul.f32 %v2396, %v3122
          %v3293 = vmul.f32 %v2397, %v3124
          %v3294 = vmul.f32 %v2398, %v3126
          %v3295 = vmul.f32 %v2399, %v3128
          %v3296 = vmul.f32 %v2400, %v3130
          %v3297 = vmul.f32 %v2401, %v3132
          %v3298 = vmul.f32 %v2402, %v3134
          %v3299 = vmul.f32 %v2403, %v3136
          %v3300 = vmul.f32 %v2404, %v3138
          %v3301 = vmul.f32 %v2405, %v3140
          %v3302 = vmul.f32 %v2406, %v3142
          %v3303 = vmul.f32 %v2407, %v3144
          %v3304 = vmul.f32 %v2408, %v3146
          %v3305 = vmul.f32 %v2409, %v3148
          %v3306 = vmul.f32 %v2410, %v3150
          %v3307 = vmul.f32 %v2411, %v3152
          %v3308 = vmul.f32 %v2412, %v3154
          %v3309 = vmul.f32 %v2413, %v3156
          %v3310 = vmul.f32 %v2414, %v3158
          %v3311 = vmul.f32 %v2415, %v3160
          %v3312 = vmul.f32 %v2416, %v3162
          %v3313 = vmul.f32 %v2417, %v3164
          %v3314 = vmul.f32 %v2418, %v3166
          %v3315 = vmul.f32 %v2419, %v3168
          %v3316 = vmul.f32 %v2420, %v3170
          %v3317 = vmul.f32 %v2421, %v3172
          %v3318 = vmul.f32 %v2422, %v3174
          %v3319 = vmul.f32 %v2423, %v3176
          %v3320 = vmul.f32 %v2424, %v3178
          %v3321 = vmul.f32 %v2425, %v3180
          %v3322 = vmul.f32 %v2426, %v3182
          %v3323 = vmul.f32 %v2427, %v3184
          %v3324 = vmul.f32 %v2428, %v3186
          %v3325 = vmul.f32 %v2429, %v3188
          %v3326 = vmul.f32 %v2430, %v3190
          %v3327 = vmul.f32 %v2431, %v3192
          %v3328 = vmul.f32 %v2432, %v3194
          %v3329 = vmul.f32 %v2433, %v3196
          %v3330 = vmul.f32 %v2434, %v3198
          %v3331 = vmul.f32 %v2435, %v3200
          %v3332 = vmul.f32 %v2436, %v3202
          %v3333 = vmul.f32 %v2437, %v3204
          %v3334 = vmul.f32 %v2438, %v3206
          %v3335 = vpack.c.bf16 %v3208, %v3207
          %v3336 = vpack.c.bf16 %v3210, %v3209
          %v3337 = vpack.c.bf16 %v3212, %v3211
          %v3338 = vpack.c.bf16 %v3214, %v3213
          %v3339 = vpack.c.bf16 %v3216, %v3215
          %v3340 = vpack.c.bf16 %v3218, %v3217
          %v3341 = vpack.c.bf16 %v3220, %v3219
          %v3342 = vpack.c.bf16 %v3222, %v3221
          %v3343 = vpack.c.bf16 %v3224, %v3223
          %v3344 = vpack.c.bf16 %v3226, %v3225
          %v3345 = vpack.c.bf16 %v3228, %v3227
          %v3346 = vpack.c.bf16 %v3230, %v3229
          %v3347 = vpack.c.bf16 %v3232, %v3231
          %v3348 = vpack.c.bf16 %v3234, %v3233
          %v3349 = vpack.c.bf16 %v3236, %v3235
          %v3350 = vpack.c.bf16 %v3238, %v3237
          %v3351 = vpack.c.bf16 %v3240, %v3239
          %v3352 = vpack.c.bf16 %v3242, %v3241
          %v3353 = vpack.c.bf16 %v3244, %v3243
          %v3354 = vpack.c.bf16 %v3246, %v3245
          %v3355 = vpack.c.bf16 %v3248, %v3247
          %v3356 = vpack.c.bf16 %v3250, %v3249
          %v3357 = vpack.c.bf16 %v3252, %v3251
          %v3358 = vpack.c.bf16 %v3254, %v3253
          %v3359 = vpack.c.bf16 %v3256, %v3255
          %v3360 = vpack.c.bf16 %v3258, %v3257
          %v3361 = vpack.c.bf16 %v3260, %v3259
          %v3362 = vpack.c.bf16 %v3262, %v3261
          %v3363 = vpack.c.bf16 %v3264, %v3263
          %v3364 = vpack.c.bf16 %v3266, %v3265
          %v3365 = vpack.c.bf16 %v3268, %v3267
          %v3366 = vpack.c.bf16 %v3270, %v3269
          %v3367 = vpack.c.bf16 %v3272, %v3271
          %v3368 = vpack.c.bf16 %v3274, %v3273
          %v3369 = vpack.c.bf16 %v3276, %v3275
          %v3370 = vpack.c.bf16 %v3278, %v3277
          %v3371 = vpack.c.bf16 %v3280, %v3279
          %v3372 = vpack.c.bf16 %v3282, %v3281
          %v3373 = vpack.c.bf16 %v3284, %v3283
          %v3374 = vpack.c.bf16 %v3286, %v3285
          %v3375 = vpack.c.bf16 %v3288, %v3287
          %v3376 = vpack.c.bf16 %v3290, %v3289
          %v3377 = vpack.c.bf16 %v3292, %v3291
          %v3378 = vpack.c.bf16 %v3294, %v3293
          %v3379 = vpack.c.bf16 %v3296, %v3295
          %v3380 = vpack.c.bf16 %v3298, %v3297
          %v3381 = vpack.c.bf16 %v3300, %v3299
          %v3382 = vpack.c.bf16 %v3302, %v3301
          %v3383 = vpack.c.bf16 %v3304, %v3303
          %v3384 = vpack.c.bf16 %v3306, %v3305
          %v3385 = vpack.c.bf16 %v3308, %v3307
          %v3386 = vpack.c.bf16 %v3310, %v3309
          %v3387 = vpack.c.bf16 %v3312, %v3311
          %v3388 = vpack.c.bf16 %v3314, %v3313
          %v3389 = vpack.c.bf16 %v3316, %v3315
          %v3390 = vpack.c.bf16 %v3318, %v3317
          %v3391 = vpack.c.bf16 %v3320, %v3319
          %v3392 = vpack.c.bf16 %v3322, %v3321
          %v3393 = vpack.c.bf16 %v3324, %v3323
          %v3394 = vpack.c.bf16 %v3326, %v3325
          %v3395 = vpack.c.bf16 %v3328, %v3327
          %v3396 = vpack.c.bf16 %v3330, %v3329
          %v3397 = vpack.c.bf16 %v3332, %v3331
          %v3398 = vpack.c.bf16 %v3334, %v3333
          %v3463 = vunpack.c.l.b16 %v3335
          %v3464 = vunpack.c.h.b16 %v3335
          %v3465 = vunpack.c.l.b16 %v3336
          %v3466 = vunpack.c.h.b16 %v3336
          %v3467 = vunpack.c.l.b16 %v3337
          %v3468 = vunpack.c.h.b16 %v3337
          %v3469 = vunpack.c.l.b16 %v3338
          %v3470 = vunpack.c.h.b16 %v3338
          %v3471 = vunpack.c.l.b16 %v3339
          %v3472 = vunpack.c.h.b16 %v3339
          %v3473 = vunpack.c.l.b16 %v3340
          %v3474 = vunpack.c.h.b16 %v3340
          %v3475 = vunpack.c.l.b16 %v3341
          %v3476 = vunpack.c.h.b16 %v3341
          %v3477 = vunpack.c.l.b16 %v3342
          %v3478 = vunpack.c.h.b16 %v3342
          %v3479 = vunpack.c.l.b16 %v3343
          %v3480 = vunpack.c.h.b16 %v3343
          %v3481 = vunpack.c.l.b16 %v3344
          %v3482 = vunpack.c.h.b16 %v3344
          %v3483 = vunpack.c.l.b16 %v3345
          %v3484 = vunpack.c.h.b16 %v3345
          %v3485 = vunpack.c.l.b16 %v3346
          %v3486 = vunpack.c.h.b16 %v3346
          %v3487 = vunpack.c.l.b16 %v3347
          %v3488 = vunpack.c.h.b16 %v3347
          %v3489 = vunpack.c.l.b16 %v3348
          %v3490 = vunpack.c.h.b16 %v3348
          %v3491 = vunpack.c.l.b16 %v3349
          %v3492 = vunpack.c.h.b16 %v3349
          %v3493 = vunpack.c.l.b16 %v3350
          %v3494 = vunpack.c.h.b16 %v3350
          %v3495 = vunpack.c.l.b16 %v3351
          %v3496 = vunpack.c.h.b16 %v3351
          %v3497 = vunpack.c.l.b16 %v3352
          %v3498 = vunpack.c.h.b16 %v3352
          %v3499 = vunpack.c.l.b16 %v3353
          %v3500 = vunpack.c.h.b16 %v3353
          %v3501 = vunpack.c.l.b16 %v3354
          %v3502 = vunpack.c.h.b16 %v3354
          %v3503 = vunpack.c.l.b16 %v3355
          %v3504 = vunpack.c.h.b16 %v3355
          %v3505 = vunpack.c.l.b16 %v3356
          %v3506 = vunpack.c.h.b16 %v3356
          %v3507 = vunpack.c.l.b16 %v3357
          %v3508 = vunpack.c.h.b16 %v3357
          %v3509 = vunpack.c.l.b16 %v3358
          %v3510 = vunpack.c.h.b16 %v3358
          %v3511 = vunpack.c.l.b16 %v3359
          %v3512 = vunpack.c.h.b16 %v3359
          %v3513 = vunpack.c.l.b16 %v3360
          %v3514 = vunpack.c.h.b16 %v3360
          %v3515 = vunpack.c.l.b16 %v3361
          %v3516 = vunpack.c.h.b16 %v3361
          %v3517 = vunpack.c.l.b16 %v3362
          %v3518 = vunpack.c.h.b16 %v3362
          %v3519 = vunpack.c.l.b16 %v3363
          %v3520 = vunpack.c.h.b16 %v3363
          %v3521 = vunpack.c.l.b16 %v3364
          %v3522 = vunpack.c.h.b16 %v3364
          %v3523 = vunpack.c.l.b16 %v3365
          %v3524 = vunpack.c.h.b16 %v3365
          %v3525 = vunpack.c.l.b16 %v3366
          %v3526 = vunpack.c.h.b16 %v3366
          %v3527 = vunpack.c.l.b16 %v3367
          %v3528 = vunpack.c.h.b16 %v3367
          %v3529 = vunpack.c.l.b16 %v3368
          %v3530 = vunpack.c.h.b16 %v3368
          %v3531 = vunpack.c.l.b16 %v3369
          %v3532 = vunpack.c.h.b16 %v3369
          %v3533 = vunpack.c.l.b16 %v3370
          %v3534 = vunpack.c.h.b16 %v3370
          %v3535 = vunpack.c.l.b16 %v3371
          %v3536 = vunpack.c.h.b16 %v3371
          %v3537 = vunpack.c.l.b16 %v3372
          %v3538 = vunpack.c.h.b16 %v3372
          %v3539 = vunpack.c.l.b16 %v3373
          %v3540 = vunpack.c.h.b16 %v3373
          %v3541 = vunpack.c.l.b16 %v3374
          %v3542 = vunpack.c.h.b16 %v3374
          %v3543 = vunpack.c.l.b16 %v3375
          %v3544 = vunpack.c.h.b16 %v3375
          %v3545 = vunpack.c.l.b16 %v3376
          %v3546 = vunpack.c.h.b16 %v3376
          %v3547 = vunpack.c.l.b16 %v3377
          %v3548 = vunpack.c.h.b16 %v3377
          %v3549 = vunpack.c.l.b16 %v3378
          %v3550 = vunpack.c.h.b16 %v3378
          %v3551 = vunpack.c.l.b16 %v3379
          %v3552 = vunpack.c.h.b16 %v3379
          %v3553 = vunpack.c.l.b16 %v3380
          %v3554 = vunpack.c.h.b16 %v3380
          %v3555 = vunpack.c.l.b16 %v3381
          %v3556 = vunpack.c.h.b16 %v3381
          %v3557 = vunpack.c.l.b16 %v3382
          %v3558 = vunpack.c.h.b16 %v3382
          %v3559 = vunpack.c.l.b16 %v3383
          %v3560 = vunpack.c.h.b16 %v3383
          %v3561 = vunpack.c.l.b16 %v3384
          %v3562 = vunpack.c.h.b16 %v3384
          %v3563 = vunpack.c.l.b16 %v3385
          %v3564 = vunpack.c.h.b16 %v3385
          %v3565 = vunpack.c.l.b16 %v3386
          %v3566 = vunpack.c.h.b16 %v3386
          %v3567 = vunpack.c.l.b16 %v3387
          %v3568 = vunpack.c.h.b16 %v3387
          %v3569 = vunpack.c.l.b16 %v3388
          %v3570 = vunpack.c.h.b16 %v3388
          %v3571 = vunpack.c.l.b16 %v3389
          %v3572 = vunpack.c.h.b16 %v3389
          %v3573 = vunpack.c.l.b16 %v3390
          %v3574 = vunpack.c.h.b16 %v3390
          %v3575 = vunpack.c.l.b16 %v3391
          %v3576 = vunpack.c.h.b16 %v3391
          %v3577 = vunpack.c.l.b16 %v3392
          %v3578 = vunpack.c.h.b16 %v3392
          %v3579 = vunpack.c.l.b16 %v3393
          %v3580 = vunpack.c.h.b16 %v3393
          %v3581 = vunpack.c.l.b16 %v3394
          %v3582 = vunpack.c.h.b16 %v3394
          %v3583 = vunpack.c.l.b16 %v3395
          %v3584 = vunpack.c.h.b16 %v3395
          %v3585 = vunpack.c.l.b16 %v3396
          %v3586 = vunpack.c.h.b16 %v3396
          %v3587 = vunpack.c.l.b16 %v3397
          %v3588 = vunpack.c.h.b16 %v3397
          %v3589 = vunpack.c.l.b16 %v3398
          %v3590 = vunpack.c.h.b16 %v3398
          %v3591 = vpack.c.b16 %v3463, %v3463
          %v3592 = vpack.c.b16 %v3464, %v3464
          %v3593 = vpack.c.b16 %v3465, %v3465
          %v3594 = vpack.c.b16 %v3466, %v3466
          %v3595 = vpack.c.b16 %v3467, %v3467
          %v3596 = vpack.c.b16 %v3468, %v3468
          %v3597 = vpack.c.b16 %v3469, %v3469
          %v3598 = vpack.c.b16 %v3470, %v3470
          %v3599 = vpack.c.b16 %v3471, %v3471
          %v3600 = vpack.c.b16 %v3472, %v3472
          %v3601 = vpack.c.b16 %v3473, %v3473
          %v3602 = vpack.c.b16 %v3474, %v3474
          %v3603 = vpack.c.b16 %v3475, %v3475
          %v3604 = vpack.c.b16 %v3476, %v3476
          %v3605 = vpack.c.b16 %v3477, %v3477
          %v3606 = vpack.c.b16 %v3478, %v3478
          %v3607 = vpack.c.b16 %v3479, %v3479
          %v3608 = vpack.c.b16 %v3480, %v3480
          %v3609 = vpack.c.b16 %v3481, %v3481
          %v3610 = vpack.c.b16 %v3482, %v3482
          %v3611 = vpack.c.b16 %v3483, %v3483
          %v3612 = vpack.c.b16 %v3484, %v3484
          %v3613 = vpack.c.b16 %v3485, %v3485
          %v3614 = vpack.c.b16 %v3486, %v3486
          %v3615 = vpack.c.b16 %v3487, %v3487
          %v3616 = vpack.c.b16 %v3488, %v3488
          %v3617 = vpack.c.b16 %v3489, %v3489
          %v3618 = vpack.c.b16 %v3490, %v3490
          %v3619 = vpack.c.b16 %v3491, %v3491
          %v3620 = vpack.c.b16 %v3492, %v3492
          %v3621 = vpack.c.b16 %v3493, %v3493
          %v3622 = vpack.c.b16 %v3494, %v3494
          %v3623 = vpack.c.b16 %v3495, %v3495
          %v3624 = vpack.c.b16 %v3496, %v3496
          %v3625 = vpack.c.b16 %v3497, %v3497
          %v3626 = vpack.c.b16 %v3498, %v3498
          %v3627 = vpack.c.b16 %v3499, %v3499
          %v3628 = vpack.c.b16 %v3500, %v3500
          %v3629 = vpack.c.b16 %v3501, %v3501
          %v3630 = vpack.c.b16 %v3502, %v3502
          %v3631 = vpack.c.b16 %v3503, %v3503
          %v3632 = vpack.c.b16 %v3504, %v3504
          %v3633 = vpack.c.b16 %v3505, %v3505
          %v3634 = vpack.c.b16 %v3506, %v3506
          %v3635 = vpack.c.b16 %v3507, %v3507
          %v3636 = vpack.c.b16 %v3508, %v3508
          %v3637 = vpack.c.b16 %v3509, %v3509
          %v3638 = vpack.c.b16 %v3510, %v3510
          %v3639 = vpack.c.b16 %v3511, %v3511
          %v3640 = vpack.c.b16 %v3512, %v3512
          %v3641 = vpack.c.b16 %v3513, %v3513
          %v3642 = vpack.c.b16 %v3514, %v3514
          %v3643 = vpack.c.b16 %v3515, %v3515
          %v3644 = vpack.c.b16 %v3516, %v3516
          %v3645 = vpack.c.b16 %v3517, %v3517
          %v3646 = vpack.c.b16 %v3518, %v3518
          %v3647 = vpack.c.b16 %v3519, %v3519
          %v3648 = vpack.c.b16 %v3520, %v3520
          %v3649 = vpack.c.b16 %v3521, %v3521
          %v3650 = vpack.c.b16 %v3522, %v3522
          %v3651 = vpack.c.b16 %v3523, %v3523
          %v3652 = vpack.c.b16 %v3524, %v3524
          %v3653 = vpack.c.b16 %v3525, %v3525
          %v3654 = vpack.c.b16 %v3526, %v3526
          %v3655 = vpack.c.b16 %v3527, %v3527
          %v3656 = vpack.c.b16 %v3528, %v3528
          %v3657 = vpack.c.b16 %v3529, %v3529
          %v3658 = vpack.c.b16 %v3530, %v3530
          %v3659 = vpack.c.b16 %v3531, %v3531
          %v3660 = vpack.c.b16 %v3532, %v3532
          %v3661 = vpack.c.b16 %v3533, %v3533
          %v3662 = vpack.c.b16 %v3534, %v3534
          %v3663 = vpack.c.b16 %v3535, %v3535
          %v3664 = vpack.c.b16 %v3536, %v3536
          %v3665 = vpack.c.b16 %v3537, %v3537
          %v3666 = vpack.c.b16 %v3538, %v3538
          %v3667 = vpack.c.b16 %v3539, %v3539
          %v3668 = vpack.c.b16 %v3540, %v3540
          %v3669 = vpack.c.b16 %v3541, %v3541
          %v3670 = vpack.c.b16 %v3542, %v3542
          %v3671 = vpack.c.b16 %v3543, %v3543
          %v3672 = vpack.c.b16 %v3544, %v3544
          %v3673 = vpack.c.b16 %v3545, %v3545
          %v3674 = vpack.c.b16 %v3546, %v3546
          %v3675 = vpack.c.b16 %v3547, %v3547
          %v3676 = vpack.c.b16 %v3548, %v3548
          %v3677 = vpack.c.b16 %v3549, %v3549
          %v3678 = vpack.c.b16 %v3550, %v3550
          %v3679 = vpack.c.b16 %v3551, %v3551
          %v3680 = vpack.c.b16 %v3552, %v3552
          %v3681 = vpack.c.b16 %v3553, %v3553
          %v3682 = vpack.c.b16 %v3554, %v3554
          %v3683 = vpack.c.b16 %v3555, %v3555
          %v3684 = vpack.c.b16 %v3556, %v3556
          %v3685 = vpack.c.b16 %v3557, %v3557
          %v3686 = vpack.c.b16 %v3558, %v3558
          %v3687 = vpack.c.b16 %v3559, %v3559
          %v3688 = vpack.c.b16 %v3560, %v3560
          %v3689 = vpack.c.b16 %v3561, %v3561
          %v3690 = vpack.c.b16 %v3562, %v3562
          %v3691 = vpack.c.b16 %v3563, %v3563
          %v3692 = vpack.c.b16 %v3564, %v3564
          %v3693 = vpack.c.b16 %v3565, %v3565
          %v3694 = vpack.c.b16 %v3566, %v3566
          %v3695 = vpack.c.b16 %v3567, %v3567
          %v3696 = vpack.c.b16 %v3568, %v3568
          %v3697 = vpack.c.b16 %v3569, %v3569
          %v3698 = vpack.c.b16 %v3570, %v3570
          %v3699 = vpack.c.b16 %v3571, %v3571
          %v3700 = vpack.c.b16 %v3572, %v3572
          %v3701 = vpack.c.b16 %v3573, %v3573
          %v3702 = vpack.c.b16 %v3574, %v3574
          %v3703 = vpack.c.b16 %v3575, %v3575
          %v3704 = vpack.c.b16 %v3576, %v3576
          %v3705 = vpack.c.b16 %v3577, %v3577
          %v3706 = vpack.c.b16 %v3578, %v3578
          %v3707 = vpack.c.b16 %v3579, %v3579
          %v3708 = vpack.c.b16 %v3580, %v3580
          %v3709 = vpack.c.b16 %v3581, %v3581
          %v3710 = vpack.c.b16 %v3582, %v3582
          %v3711 = vpack.c.b16 %v3583, %v3583
          %v3712 = vpack.c.b16 %v3584, %v3584
          %v3713 = vpack.c.b16 %v3585, %v3585
          %v3714 = vpack.c.b16 %v3586, %v3586
          %v3715 = vpack.c.b16 %v3587, %v3587
          %v3716 = vpack.c.b16 %v3588, %v3588
          %v3717 = vpack.c.b16 %v3589, %v3589
          %v3718 = vpack.c.b16 %v3590, %v3590
          %3847 = vst [vmem:[%s287] sm:$0xf] %v3591
          %3848 = vst [vmem:[%s287 + $0x4] sm:$0xf] %v3592
          %3849 = vst [vmem:[%s287 + $0x8] sm:$0xf] %v3593
          %3850 = vst [vmem:[%s287 + $0xc] sm:$0xf] %v3594
          %3851 = vst [vmem:[%s287 + $0x10] sm:$0xf] %v3595
          %3852 = vst [vmem:[%s287 + $0x14] sm:$0xf] %v3596
          %3853 = vst [vmem:[%s287 + $0x18] sm:$0xf] %v3597
          %3854 = vst [vmem:[%s287 + $0x1c] sm:$0xf] %v3598
          %3855 = vst [vmem:[%s287 + $0x20] sm:$0xf] %v3599
          %3856 = vst [vmem:[%s287 + $0x24] sm:$0xf] %v3600
          %3857 = vst [vmem:[%s287 + $0x28] sm:$0xf] %v3601
          %3858 = vst [vmem:[%s287 + $0x2c] sm:$0xf] %v3602
          %3859 = vst [vmem:[%s287 + $0x30] sm:$0xf] %v3603
          %3860 = vst [vmem:[%s287 + $0x34] sm:$0xf] %v3604
          %3861 = vst [vmem:[%s287 + $0x38] sm:$0xf] %v3605
          %3862 = vst [vmem:[%s287 + $0x3c] sm:$0xf] %v3606
          %3863 = vst [vmem:[%s287 + $0x40] sm:$0xf] %v3607
          %3864 = vst [vmem:[%s287 + $0x44] sm:$0xf] %v3608
          %3865 = vst [vmem:[%s287 + $0x48] sm:$0xf] %v3609
          %3866 = vst [vmem:[%s287 + $0x4c] sm:$0xf] %v3610
          %3867 = vst [vmem:[%s287 + $0x50] sm:$0xf] %v3611
          %3868 = vst [vmem:[%s287 + $0x54] sm:$0xf] %v3612
          %3869 = vst [vmem:[%s287 + $0x58] sm:$0xf] %v3613
          %3870 = vst [vmem:[%s287 + $0x5c] sm:$0xf] %v3614
          %3871 = vst [vmem:[%s287 + $0x60] sm:$0xf] %v3615
          %3872 = vst [vmem:[%s287 + $0x64] sm:$0xf] %v3616
          %3873 = vst [vmem:[%s287 + $0x68] sm:$0xf] %v3617
          %3874 = vst [vmem:[%s287 + $0x6c] sm:$0xf] %v3618
          %3875 = vst [vmem:[%s287 + $0x70] sm:$0xf] %v3619
          %3876 = vst [vmem:[%s287 + $0x74] sm:$0xf] %v3620
          %3877 = vst [vmem:[%s287 + $0x78] sm:$0xf] %v3621
          %3878 = vst [vmem:[%s287 + $0x7c] sm:$0xf] %v3622
          %3879 = vst [vmem:[%s287 + $0x80] sm:$0xf] %v3623
          %3880 = vst [vmem:[%s287 + $0x84] sm:$0xf] %v3624
          %3881 = vst [vmem:[%s287 + $0x88] sm:$0xf] %v3625
          %3882 = vst [vmem:[%s287 + $0x8c] sm:$0xf] %v3626
          %3883 = vst [vmem:[%s287 + $0x90] sm:$0xf] %v3627
          %3884 = vst [vmem:[%s287 + $0x94] sm:$0xf] %v3628
          %3885 = vst [vmem:[%s287 + $0x98] sm:$0xf] %v3629
          %3886 = vst [vmem:[%s287 + $0x9c] sm:$0xf] %v3630
          %3887 = vst [vmem:[%s287 + $0xa0] sm:$0xf] %v3631
          %3888 = vst [vmem:[%s287 + $0xa4] sm:$0xf] %v3632
          %3889 = vst [vmem:[%s287 + $0xa8] sm:$0xf] %v3633
          %3890 = vst [vmem:[%s287 + $0xac] sm:$0xf] %v3634
          %3891 = vst [vmem:[%s287 + $0xb0] sm:$0xf] %v3635
          %3892 = vst [vmem:[%s287 + $0xb4] sm:$0xf] %v3636
          %3893 = vst [vmem:[%s287 + $0xb8] sm:$0xf] %v3637
          %3894 = vst [vmem:[%s287 + $0xbc] sm:$0xf] %v3638
          %3895 = vst [vmem:[%s287 + $0xc0] sm:$0xf] %v3639
          %3896 = vst [vmem:[%s287 + $0xc4] sm:$0xf] %v3640
          %3897 = vst [vmem:[%s287 + $0xc8] sm:$0xf] %v3641
          %3898 = vst [vmem:[%s287 + $0xcc] sm:$0xf] %v3642
          %3899 = vst [vmem:[%s287 + $0xd0] sm:$0xf] %v3643
          %3900 = vst [vmem:[%s287 + $0xd4] sm:$0xf] %v3644
          %3901 = vst [vmem:[%s287 + $0xd8] sm:$0xf] %v3645
          %3902 = vst [vmem:[%s287 + $0xdc] sm:$0xf] %v3646
          %3903 = vst [vmem:[%s287 + $0xe0] sm:$0xf] %v3647
          %3904 = vst [vmem:[%s287 + $0xe4] sm:$0xf] %v3648
          %3905 = vst [vmem:[%s287 + $0xe8] sm:$0xf] %v3649
          %3906 = vst [vmem:[%s287 + $0xec] sm:$0xf] %v3650
          %3907 = vst [vmem:[%s287 + $0xf0] sm:$0xf] %v3651
          %3908 = vst [vmem:[%s287 + $0xf4] sm:$0xf] %v3652
          %3909 = vst [vmem:[%s287 + $0xf8] sm:$0xf] %v3653
          %3910 = vst [vmem:[%s287 + $0xfc] sm:$0xf] %v3654
          %3911 = vst [vmem:[%s287 + $0x100] sm:$0xf] %v3655
          %3912 = vst [vmem:[%s287 + $0x104] sm:$0xf] %v3656
          %3913 = vst [vmem:[%s287 + $0x108] sm:$0xf] %v3657
          %3914 = vst [vmem:[%s287 + $0x10c] sm:$0xf] %v3658
          %3915 = vst [vmem:[%s287 + $0x110] sm:$0xf] %v3659
          %3916 = vst [vmem:[%s287 + $0x114] sm:$0xf] %v3660
          %3917 = vst [vmem:[%s287 + $0x118] sm:$0xf] %v3661
          %3918 = vst [vmem:[%s287 + $0x11c] sm:$0xf] %v3662
          %3919 = vst [vmem:[%s287 + $0x120] sm:$0xf] %v3663
          %3920 = vst [vmem:[%s287 + $0x124] sm:$0xf] %v3664
          %3921 = vst [vmem:[%s287 + $0x128] sm:$0xf] %v3665
          %3922 = vst [vmem:[%s287 + $0x12c] sm:$0xf] %v3666
          %3923 = vst [vmem:[%s287 + $0x130] sm:$0xf] %v3667
          %3924 = vst [vmem:[%s287 + $0x134] sm:$0xf] %v3668
          %3925 = vst [vmem:[%s287 + $0x138] sm:$0xf] %v3669
          %3926 = vst [vmem:[%s287 + $0x13c] sm:$0xf] %v3670
          %3927 = vst [vmem:[%s287 + $0x140] sm:$0xf] %v3671
          %3928 = vst [vmem:[%s287 + $0x144] sm:$0xf] %v3672
          %3929 = vst [vmem:[%s287 + $0x148] sm:$0xf] %v3673
          %3930 = vst [vmem:[%s287 + $0x14c] sm:$0xf] %v3674
          %3931 = vst [vmem:[%s287 + $0x150] sm:$0xf] %v3675
          %3932 = vst [vmem:[%s287 + $0x154] sm:$0xf] %v3676
          %3933 = vst [vmem:[%s287 + $0x158] sm:$0xf] %v3677
          %3934 = vst [vmem:[%s287 + $0x15c] sm:$0xf] %v3678
          %3935 = vst [vmem:[%s287 + $0x160] sm:$0xf] %v3679
          %3936 = vst [vmem:[%s287 + $0x164] sm:$0xf] %v3680
          %3937 = vst [vmem:[%s287 + $0x168] sm:$0xf] %v3681
          %3938 = vst [vmem:[%s287 + $0x16c] sm:$0xf] %v3682
          %3939 = vst [vmem:[%s287 + $0x170] sm:$0xf] %v3683
          %3940 = vst [vmem:[%s287 + $0x174] sm:$0xf] %v3684
          %3941 = vst [vmem:[%s287 + $0x178] sm:$0xf] %v3685
          %3942 = vst [vmem:[%s287 + $0x17c] sm:$0xf] %v3686
          %3943 = vst [vmem:[%s287 + $0x180] sm:$0xf] %v3687
          %3944 = vst [vmem:[%s287 + $0x184] sm:$0xf] %v3688
          %3945 = vst [vmem:[%s287 + $0x188] sm:$0xf] %v3689
          %3946 = vst [vmem:[%s287 + $0x18c] sm:$0xf] %v3690
          %3947 = vst [vmem:[%s287 + $0x190] sm:$0xf] %v3691
          %3948 = vst [vmem:[%s287 + $0x194] sm:$0xf] %v3692
          %3949 = vst [vmem:[%s287 + $0x198] sm:$0xf] %v3693
          %3950 = vst [vmem:[%s287 + $0x19c] sm:$0xf] %v3694
          %3951 = vst [vmem:[%s287 + $0x1a0] sm:$0xf] %v3695
          %3952 = vst [vmem:[%s287 + $0x1a4] sm:$0xf] %v3696
          %3953 = vst [vmem:[%s287 + $0x1a8] sm:$0xf] %v3697
          %3954 = vst [vmem:[%s287 + $0x1ac] sm:$0xf] %v3698
          %3955 = vst [vmem:[%s287 + $0x1b0] sm:$0xf] %v3699
          %3956 = vst [vmem:[%s287 + $0x1b4] sm:$0xf] %v3700
          %3957 = vst [vmem:[%s287 + $0x1b8] sm:$0xf] %v3701
          %3958 = vst [vmem:[%s287 + $0x1bc] sm:$0xf] %v3702
          %3959 = vst [vmem:[%s287 + $0x1c0] sm:$0xf] %v3703
          %3960 = vst [vmem:[%s287 + $0x1c4] sm:$0xf] %v3704
          %3961 = vst [vmem:[%s287 + $0x1c8] sm:$0xf] %v3705
          %3962 = vst [vmem:[%s287 + $0x1cc] sm:$0xf] %v3706
          %3963 = vst [vmem:[%s287 + $0x1d0] sm:$0xf] %v3707
          %3964 = vst [vmem:[%s287 + $0x1d4] sm:$0xf] %v3708
          %3965 = vst [vmem:[%s287 + $0x1d8] sm:$0xf] %v3709
          %3966 = vst [vmem:[%s287 + $0x1dc] sm:$0xf] %v3710
          %3967 = vst [vmem:[%s287 + $0x1e0] sm:$0xf] %v3711
          %3968 = vst [vmem:[%s287 + $0x1e4] sm:$0xf] %v3712
          %3969 = vst [vmem:[%s287 + $0x1e8] sm:$0xf] %v3713
          %3970 = vst [vmem:[%s287 + $0x1ec] sm:$0xf] %v3714
          %3971 = vst [vmem:[%s287 + $0x1f0] sm:$0xf] %v3715
          %3972 = vst [vmem:[%s287 + $0x1f4] sm:$0xf] %v3716
          %3973 = vst [vmem:[%s287 + $0x1f8] sm:$0xf] %v3717
          %3974 = vst [vmem:[%s287 + $0x1fc] sm:$0xf] %v3718
        $region44: #{tpu_custom_call.1} parent=35 // pred_fallthru
          _
        %s3975 = sand.u32 %s170, 1
        %s3976 = scalar_lea.sflag [#allocation4], %s3975
        %s3977 = sand.u32 %s170, 1
        %s3978 = smul.addr %s3977, 512
        %s3979 = scalar_lea.vmem [#allocation3], %s3978
        // Predicated region
        $region45: #{tpu_custom_call.1} parent=35 // pred_check
          %p3980 = pneg %p180
        $region46: #{tpu_custom_call.1} parent=35 // pred_check_branch
          %3982 = sbr.rel (%p3980) target = $region48
        $region47: #{tpu_custom_call.1} parent=35 // pred_region
          %s3983 = smul.u32 %s24, 32
          %s3984 = sadd.s32 %s3983, %s25
          %s3985 = smul.u32 128, %s3984
          %s3987 = ssub.s32 8192, 8192
          %3988 = vsyncadd %s3976, %s3987
          %s3989 = sadd.s32 %s26, %s3985
          %s3990 = smul.addr %s3989, 64
          %s3991 = scalar_lea.hbm %s4, %s3990
          %s3992 = sshll.u32 %s3979, 4
          %s3993 = int_to_ptr.vmem [resolvable:$true] %s3992
          %3998 = dma.vmem_to_hbm [thread:$0]  %s3993, 8192, %s3991, %s3976, 64, 64, 4
        $region48: #{tpu_custom_call.1} parent=35 // pred_fallthru
          _
      $region36: #{tpu_custom_call.1} parent=5 // pred_fallthru
        _
      %p3999 = scmp.le.s32.totalorder 2, %s13
      // Predicated region
      $region49: #{tpu_custom_call.1} parent=5 // pred_check
        %p4000 = pneg %p3999
      $region50: #{tpu_custom_call.1} parent=5 // pred_check_branch
        %4002 = sbr.rel (%p4000) target = $region52
      $region51: #{tpu_custom_call.1} parent=5 // pred_region
        %s4003 = ssub.s32 %s13, 2
        // Predicated region
        $region53: #{tpu_custom_call.1} parent=51 // pred_check
          %p4004 = pneg %p186
        $region54: #{tpu_custom_call.1} parent=51 // pred_check_branch
          %4006 = sbr.rel (%p4004) target = $region56
        $region55: #{tpu_custom_call.1} parent=51 // pred_region
          %s4007 = sand.u32 %s171, 1
          %s4008 = scalar_lea.sflag [#allocation4], %s4007
          %s4009 = sand.u32 %s171, 1
          %s4010 = smul.addr %s4009, 512
          %s4011 = scalar_lea.vmem [#allocation3], %s4010
          %4012 = dma.done %s4008, 8192
        $region56: #{tpu_custom_call.1} parent=51 // pred_fallthru
          _
      $region52: #{tpu_custom_call.1} parent=5 // pred_fallthru
        _
    $region6: #{tpu_custom_call.1} parent=1 // loop_footer
      %s17 = sadd.s32 1, %s13
    $region7: #{tpu_custom_call.1} parent=1 // loop_footer_branch
      %12 = sbr.rel target = $region3
    $region8: #{tpu_custom_call.1} parent=1 // loop_exit
      _
    %4013 = vsyncpa [#allocation4], 1
    %s4014 = scalar_lea.sflag [#allocation4], 1
    %4015 = vsyncpa %s4014, 1

</llo_original>
